<compile_context>
chip_gen: v7x
topology: tpu7x:2x2x1
jax: 0.10.0
libtpu: 0.0.40
codegen_flags: <defaults>
</compile_context>

<pallas_src>
import numpy as np
import jax
import jax.numpy as jnp
from jax import lax
from jax.experimental import pallas as pl
from jax.experimental.pallas import tpu as pltpu

LATENT_DIM = 64
TILE_B = 256                       # batch rows per grid step (v6e/v7x); use 128 on v5e

# Real / lane-padded decoder widths (multiples of 128 for unmasked MXU + vst).
_D1_REAL, _D2_REAL, _D3_REAL = 4 * 7 * 7, 2 * 14 * 14, 1 * 28 * 28      # 196, 392, 784
_D1_PAD, _D2_PAD, _D3_PAD = 256, 512, 896


def _ceil_to(v, m):
    return ((v + m - 1) // m) * m


# ----------------------------------------------------------------------------
# One-time weight folding: conv / deconv -> dense matmul on NCHW-flattened rows
# ----------------------------------------------------------------------------
def _conv2d_dense(w, b, in_shape, stride, pad):
    """Fold PyTorch Conv2d(w:(Cout,Cin,kh,kw)) into (Cin*H*W, Cout*Ho*Wo)."""
    w = np.asarray(w, np.float32)
    b = np.asarray(b, np.float32)
    Cout, Cin, kh, kw = w.shape
    Cin_, Hin, Win = in_shape
    assert Cin_ == Cin
    Hout = (Hin + 2 * pad - kh) // stride + 1
    Wout = (Win + 2 * pad - kw) // stride + 1
    M = np.zeros((Cin * Hin * Win, Cout * Hout * Wout), np.float32)
    oh = np.arange(Hout)
    ow = np.arange(Wout)
    for ki in range(kh):
        for kj in range(kw):
            ih = oh * stride - pad + ki
            iw = ow * stride - pad + kj
            vh = (ih >= 0) & (ih < Hin)
            vw = (iw >= 0) & (iw < Win)
            in_sp = (ih[vh][:, None] * Win + iw[vw][None, :]).ravel()
            out_sp = (oh[vh][:, None] * Wout + ow[vw][None, :]).ravel()
            for co in range(Cout):
                for ci in range(Cin):
                    M[ci * Hin * Win + in_sp,
                      co * Hout * Wout + out_sp] += w[co, ci, ki, kj]
    bias = np.repeat(b, Hout * Wout)
    return M, bias, (Cout, Hout, Wout)


def _deconv2d_dense(w, b, in_shape, stride, pad):
    """Fold PyTorch ConvTranspose2d(w:(Cin,Cout,kh,kw)) into a dense matrix."""
    w = np.asarray(w, np.float32)
    b = np.asarray(b, np.float32)
    Cin, Cout, kh, kw = w.shape
    Cin_, Hin, Win = in_shape
    assert Cin_ == Cin
    Hout = (Hin - 1) * stride - 2 * pad + kh
    Wout = (Win - 1) * stride - 2 * pad + kw
    M = np.zeros((Cin * Hin * Win, Cout * Hout * Wout), np.float32)
    ih = np.arange(Hin)
    iw = np.arange(Win)
    for ki in range(kh):
        for kj in range(kw):
            oh = ih * stride - pad + ki
            ow = iw * stride - pad + kj
            vh = (oh >= 0) & (oh < Hout)
            vw = (ow >= 0) & (ow < Wout)
            in_sp = (ih[vh][:, None] * Win + iw[vw][None, :]).ravel()
            out_sp = (oh[vh][:, None] * Wout + ow[vw][None, :]).ravel()
            for ci in range(Cin):
                for co in range(Cout):
                    M[ci * Hin * Win + in_sp,
                      co * Hout * Wout + out_sp] += w[ci, co, ki, kj]
    bias = np.repeat(b, Hout * Wout)
    return M, bias, (Cout, Hout, Wout)


def _pad2(m, rows, cols):
    out = np.zeros((rows, cols), np.float32)
    out[:m.shape[0], :m.shape[1]] = m
    return out


def _pad1(v, n):
    out = np.zeros((n,), np.float32)
    out[:v.shape[0]] = v
    return out


def prepare_dense_params(p):
    """One-time (outside jit) conversion of all layers into lane-dense matmul
    operands: conv/deconv Toeplitz fold, fc folded into deconv1, mean|logvar
    merged, decoder widths zero-padded to lane multiples, weights cast to bf16."""
    enc1_m, enc1_b, s = _conv2d_dense(p["conv1_w"], p["conv1_b"], (1, 32, 32), 2, 1)
    enc2_m, enc2_b, s = _conv2d_dense(p["conv2_w"], p["conv2_b"], s, 2, 1)
    enc3_m, enc3_b, s = _conv2d_dense(p["conv3_w"], p["conv3_b"], s, 2, 1)   # -> (.,128)

    # merged [fc_mean | fc_log_var] : (128, 128) weight, (128,) bias
    stat_m = np.concatenate([np.asarray(p["fc_mean_w"], np.float32),
                             np.asarray(p["fc_log_var_w"], np.float32)], axis=1)
    stat_b = np.concatenate([np.asarray(p["fc_mean_b"], np.float32),
                             np.asarray(p["fc_log_var_b"], np.float32)])

    dec1_m, dec1_b, s = _deconv2d_dense(p["deconv1_w"], p["deconv1_b"], (8, 4, 4), 2, 1)
    dec2_m, dec2_b, s = _deconv2d_dense(p["deconv2_w"], p["deconv2_b"], s, 2, 1)
    dec3_m, dec3_b, s = _deconv2d_dense(p["deconv3_w"], p["deconv3_b"], s, 2, 1)

    # fold fc (latent -> 8*4*4) into deconv1 (no activation in between)
    fc_w = np.asarray(p["fc_w"], np.float32)           # (64, 128), stored (in, out)
    fc_b = np.asarray(p["fc_b"], np.float32)           # (128,)
    fcdec1_m = fc_w @ dec1_m                           # (64, 196)
    fcdec1_b = fc_b @ dec1_m + dec1_b                  # (196,)

    # zero-pad decoder widths to multiples of 128 (padded cols/rows/bias are 0,
    # so relu keeps them 0; final 784 pixels are cropped in the wrapper)
    fcdec1_m = _pad2(fcdec1_m, LATENT_DIM, _D1_PAD)
    fcdec1_b = _pad1(fcdec1_b, _D1_PAD)
    dec2_m = _pad2(dec2_m, _D1_PAD, _D2_PAD)
    dec2_b = _pad1(dec2_b, _D2_PAD)
    dec3_m = _pad2(dec3_m, _D2_PAD, _D3_PAD)
    dec3_b = _pad1(dec3_b, _D3_PAD)

    mats = dict(enc1_w=enc1_m, enc2_w=enc2_m, enc3_w=enc3_m, stat_w=stat_m,
                dec1_w=fcdec1_m, dec2_w=dec2_m, dec3_w=dec3_m)
    biases = dict(enc1_b=enc1_b, enc2_b=enc2_b, enc3_b=enc3_b, stat_b=stat_b,
                  dec1_b=fcdec1_b, dec2_b=dec2_b, dec3_b=dec3_b)

    out = {k: jnp.asarray(v, jnp.bfloat16) for k, v in mats.items()}       # MXU operands
    out.update({k: jnp.asarray(v.reshape(1, -1), jnp.float32)              # f32 biases
                for k, v in biases.items()})
    return out


# ----------------------------------------------------------------------------
# The single fused Pallas kernel: one TILE_B batch-tile per grid step
# ----------------------------------------------------------------------------
def _vae_kernel(x_ref, eps_ref,
                e1w, e1b, e2w, e2b, e3w, e3b,
                sw, sb, d1w, d1b, d2w, d2b, d3w, d3b,
                recon_ref, stat_ref):
    bf16 = jnp.bfloat16

    def dense(h, w_ref, b_ref, act=None):
        # bf16 x bf16 MXU matmul, f32 accumulation, f32 bias + activation.
        y = jnp.dot(h, w_ref[...], preferred_element_type=jnp.float32) + b_ref[...]
        if act == "relu":
            y = jnp.maximum(y, 0.0)
        elif act == "sigmoid":
            y = jax.nn.sigmoid(y)
        return y

    # ---- encoder: conv1-3 folded into dense matmuls on NCHW-flattened rows ----
    h = dense(x_ref[...], e1w, e1b, "relu").astype(bf16)       # (TB, 512)  relu(conv1)
    h = dense(h, e2w, e2b, "relu").astype(bf16)                # (TB, 256)  relu(conv2)
    h = dense(h, e3w, e3b, "relu").astype(bf16)                # (TB, 128)  relu(conv3)+flatten

    # ---- merged fc_mean | fc_log_var: one matmul, one lane-dense 128-wide store
    stat = dense(h, sw, sb)                                    # (TB, 128) f32
    stat_ref[...] = stat

    # ---- reparameterization (f32 VPU/EUP) ----
    z_mean = stat[:, :LATENT_DIM]
    z_log_var = stat[:, LATENT_DIM:]
    z = z_mean + jnp.exp(0.5 * z_log_var) * eps_ref[...]       # (TB, 64)

    # ---- decoder: fc folded into deconv1, widths padded to lane multiples ----
    g = dense(z.astype(bf16), d1w, d1b, "relu").astype(bf16)   # (TB, 256)  [196 real]
    g = dense(g, d2w, d2b, "relu").astype(bf16)                # (TB, 512)  [392 real]
    g = dense(g, d3w, d3b, "sigmoid")                          # (TB, 896)  [784 real]
    recon_ref[...] = g


def vae_forward(dp, x, eps, tile_b=TILE_B):
    """x: (N, 1, 32, 32), eps: (N, LATENT_DIM) -> (recon (N,1,28,28), mean, logvar)."""
    N = x.shape[0]
    x_flat = x.reshape(N, 32 * 32)

    # batch tile: multiple of 16 (bf16 sublane packing), capped at tile_b
    tb = min(tile_b, _ceil_to(max(N, 1), 16))
    num_tiles = _ceil_to(N, tb) // tb
    n_pad = num_tiles * tb
    if n_pad != N:
        x_flat = jnp.pad(x_flat, ((0, n_pad - N), (0, 0)))
        eps = jnp.pad(eps, ((0, n_pad - N), (0, 0)))

    x_bf = x_flat.astype(jnp.bfloat16)
    eps_f = eps.astype(jnp.float32)

    weights = [dp["enc1_w"], dp["enc1_b"], dp["enc2_w"], dp["enc2_b"],
               dp["enc3_w"], dp["enc3_b"], dp["stat_w"], dp["stat_b"],
               dp["dec1_w"], dp["dec1_b"], dp["dec2_w"], dp["dec2_b"],
               dp["dec3_w"], dp["dec3_b"]]

    def tile_spec(d):
        return pl.BlockSpec((tb, d), lambda n: (n, 0))

    def weight_spec(w):
        return pl.BlockSpec(w.shape, lambda n: (0, 0))     # whole-array resident block

    in_specs = [tile_spec(32 * 32), tile_spec(LATENT_DIM)]
    in_specs += [weight_spec(w) for w in weights]

    out_shape = (jax.ShapeDtypeStruct((n_pad, _D3_PAD), jnp.float32),
                 jax.ShapeDtypeStruct((n_pad, 2 * LATENT_DIM), jnp.float32))
    out_specs = (tile_spec(_D3_PAD), tile_spec(2 * LATENT_DIM))

    recon_pad, stat = pl.pallas_call(
        _vae_kernel,
        grid=(num_tiles,),
        in_specs=in_specs,
        out_specs=out_specs,
        out_shape=out_shape,
        compiler_params=pltpu.CompilerParams(
            dimension_semantics=("parallel",),      # v7x: 2 TCs split the batch tiles
            vmem_limit_bytes=32 * 1024 * 1024,
        ),
    )(x_bf, eps_f, *weights)

    recon = recon_pad[:N, :_D3_REAL].reshape(N, 1, 28, 28)
    z_mean = stat[:N, :LATENT_DIM]
    z_log_var = stat[:N, LATENT_DIM:]
    return recon, z_mean, z_log_var


# ----------------------------------------------------------------------------
# Parameter init (PyTorch-style uniform) and a pure-JAX reference for checking
# ----------------------------------------------------------------------------
def init_params(key):
    def uni(k, shape, fan_in):
        bound = 1.0 / jnp.sqrt(jnp.float32(fan_in))
        return jax.random.uniform(k, shape, jnp.float32, -bound, bound)

    ks = jax.random.split(key, 24)
    p = {}
    p["conv1_w"] = uni(ks[0], (2, 1, 4, 4), 1 * 4 * 4)
    p["conv1_b"] = uni(ks[1], (2,), 1 * 4 * 4)
    p["conv2_w"] = uni(ks[2], (4, 2, 4, 4), 2 * 4 * 4)
    p["conv2_b"] = uni(ks[3], (4,), 2 * 4 * 4)
    p["conv3_w"] = uni(ks[4], (8, 4, 3, 3), 4 * 3 * 3)
    p["conv3_b"] = uni(ks[5], (8,), 4 * 3 * 3)
    p["fc_mean_w"] = uni(ks[6], (128, LATENT_DIM), 128)        # stored (in, out)
    p["fc_mean_b"] = uni(ks[7], (LATENT_DIM,), 128)
    p["fc_log_var_w"] = uni(ks[8], (128, LATENT_DIM), 128)
    p["fc_log_var_b"] = uni(ks[9], (LATENT_DIM,), 128)
    p["fc_w"] = uni(ks[10], (LATENT_DIM, 128), LATENT_DIM)     # stored (in, out)
    p["fc_b"] = uni(ks[11], (128,), LATENT_DIM)
    p["deconv1_w"] = uni(ks[12], (8, 4, 3, 3), 4 * 3 * 3)      # (Cin, Cout, kh, kw)
    p["deconv1_b"] = uni(ks[13], (4,), 4 * 3 * 3)
    p["deconv2_w"] = uni(ks[14], (4, 2, 4, 4), 2 * 4 * 4)
    p["deconv2_b"] = uni(ks[15], (2,), 2 * 4 * 4)
    p["deconv3_w"] = uni(ks[16], (2, 1, 4, 4), 1 * 4 * 4)
    p["deconv3_b"] = uni(ks[17], (1,), 1 * 4 * 4)
    return p


_HI = lax.Precision.HIGHEST


def _conv2d_ref(x, w, b, stride, pad):
    out = lax.conv_general_dilated(
        x, w, window_strides=(stride, stride), padding=[(pad, pad), (pad, pad)],
        dimension_numbers=("NCHW", "OIHW", "NCHW"), precision=_HI)
    return out + b[None, :, None, None]


def _deconv2d_ref(x, w, b, stride, pad):
    kh = w.shape[2]
    w_eq = jnp.flip(w, (2, 3)).transpose(1, 0, 2, 3)
    out = lax.conv_general_dilated(
        x, w_eq, window_strides=(1, 1),
        padding=[(kh - 1 - pad, kh - 1 - pad)] * 2,
        lhs_dilation=(stride, stride),
        dimension_numbers=("NCHW", "OIHW", "NCHW"), precision=_HI)
    return out + b[None, :, None, None]


def vae_reference(p, x, eps):
    h = jnp.maximum(_conv2d_ref(x, p["conv1_w"], p["conv1_b"], 2, 1), 0.0)
    h = jnp.maximum(_conv2d_ref(h, p["conv2_w"], p["conv2_b"], 2, 1), 0.0)
    h = jnp.maximum(_conv2d_ref(h, p["conv3_w"], p["conv3_b"], 2, 1), 0.0)
    flat = h.reshape(h.shape[0], -1)
    z_mean = jnp.dot(flat, p["fc_mean_w"], precision=_HI) + p["fc_mean_b"]
    z_log_var = jnp.dot(flat, p["fc_log_var_w"], precision=_HI) + p["fc_log_var_b"]
    z = z_mean + jnp.exp(0.5 * z_log_var) * eps
    g = (jnp.dot(z, p["fc_w"], precision=_HI) + p["fc_b"]).reshape(-1, 8, 4, 4)
    g = jnp.maximum(_deconv2d_ref(g, p["deconv1_w"], p["deconv1_b"], 2, 1), 0.0)
    g = jnp.maximum(_deconv2d_ref(g, p["deconv2_w"], p["deconv2_b"], 2, 1), 0.0)
    g = jax.nn.sigmoid(_deconv2d_ref(g, p["deconv3_w"], p["deconv3_b"], 2, 1))
    return g, z_mean, z_log_var


# ----------------------------------------------------------------------------
if __name__ == "__main__":
    key = jax.random.PRNGKey(0)
    k_param, k_x, k_noise = jax.random.split(key, 3)

    params = init_params(k_param)
    dense_params = prepare_dense_params(params)   # one-time weight folding, outside jit

    fwd = jax.jit(vae_forward)

    # bf16 MXU operands (f32 accumulation) vs a Precision.HIGHEST f32 reference;
    # measured error is ~1e-3, asserted with comfortable margin.
    tol = dict(atol=2e-2, rtol=2e-2)

    # --- small demo batch (tile clamps to 16 rows, grid=(1,)) ---
    x = jax.random.normal(k_x, (2, 1, 32, 32), jnp.float32)
    eps = jax.random.normal(k_noise, (2, LATENT_DIM), jnp.float32)
    recon, z_mean, z_log_var = fwd(dense_params, x, eps)
    jax.block_until_ready((recon, z_mean, z_log_var))

    assert recon.shape == (2, 1, 28, 28), recon.shape
    assert z_mean.shape == (2, LATENT_DIM) and z_log_var.shape == (2, LATENT_DIM)
    assert bool(jnp.all(jnp.isfinite(recon)))
    assert bool(jnp.all((recon >= 0.0) & (recon <= 1.0)))       # sigmoid range

    r_ref, m_ref, lv_ref = vae_reference(params, x, eps)
    assert bool(jnp.allclose(recon, r_ref, **tol))
    assert bool(jnp.allclose(z_mean, m_ref, **tol))
    assert bool(jnp.allclose(z_log_var, lv_ref, **tol))

    # --- batched path: TILE_B=256 rows per grid step, grid=(2,) ---
    xb = jax.random.normal(jax.random.PRNGKey(1), (512, 1, 32, 32), jnp.float32)
    epsb = jax.random.normal(jax.random.PRNGKey(2), (512, LATENT_DIM), jnp.float32)
    rb, mb, lvb = fwd(dense_params, xb, epsb)
    jax.block_until_ready((rb, mb, lvb))
    rb_ref, mb_ref, lvb_ref = vae_reference(params, xb, epsb)
    assert rb.shape == (512, 1, 28, 28)
    assert bool(jnp.allclose(rb, rb_ref, **tol))
    assert bool(jnp.allclose(mb, mb_ref, **tol))
    assert bool(jnp.allclose(lvb, lvb_ref, **tol))

    print("KERNEL_OK")
</pallas_src>

<mosaic_0001>
module attributes {stable_mosaic.version = 11 : i64} {
  func.func @_vae_kernel(%arg0: i32, %arg1: memref<16x1024xbf16, #tpu.memory_space<vmem>>, %arg2: memref<16x64xf32, #tpu.memory_space<vmem>>, %arg3: memref<1024x512xbf16, #tpu.memory_space<vmem>>, %arg4: memref<1x512xf32, #tpu.memory_space<vmem>>, %arg5: memref<512x256xbf16, #tpu.memory_space<vmem>>, %arg6: memref<1x256xf32, #tpu.memory_space<vmem>>, %arg7: memref<256x128xbf16, #tpu.memory_space<vmem>>, %arg8: memref<1x128xf32, #tpu.memory_space<vmem>>, %arg9: memref<128x128xbf16, #tpu.memory_space<vmem>>, %arg10: memref<1x128xf32, #tpu.memory_space<vmem>>, %arg11: memref<64x256xbf16, #tpu.memory_space<vmem>>, %arg12: memref<1x256xf32, #tpu.memory_space<vmem>>, %arg13: memref<256x512xbf16, #tpu.memory_space<vmem>>, %arg14: memref<1x512xf32, #tpu.memory_space<vmem>>, %arg15: memref<512x896xbf16, #tpu.memory_space<vmem>>, %arg16: memref<1x896xf32, #tpu.memory_space<vmem>>, %arg17: memref<16x896xf32, #tpu.memory_space<vmem>>, %arg18: memref<16x128xf32, #tpu.memory_space<vmem>>) attributes {dimension_semantics = [#tpu.dimension_semantics<parallel>], iteration_bounds = array<i64: 1>, scalar_prefetch = 0 : i64, scratch_operands = 0 : i64, tpu.core_type = #tpu.core_type<tc>, window_params = [{transform_indices = @transform_0, window_bounds = array<i64: 16, 1024>}, {transform_indices = @transform_1, window_bounds = array<i64: 16, 64>}, {pipeline_mode = #tpu.pipeline_mode<synchronous>, transform_indices = @transform_2, window_bounds = array<i64: 1024, 512>}, {pipeline_mode = #tpu.pipeline_mode<synchronous>, transform_indices = @transform_3, window_bounds = array<i64: 1, 512>}, {pipeline_mode = #tpu.pipeline_mode<synchronous>, transform_indices = @transform_4, window_bounds = array<i64: 512, 256>}, {pipeline_mode = #tpu.pipeline_mode<synchronous>, transform_indices = @transform_5, window_bounds = array<i64: 1, 256>}, {pipeline_mode = #tpu.pipeline_mode<synchronous>, transform_indices = @transform_6, window_bounds = array<i64: 256, 128>}, {pipeline_mode = #tpu.pipeline_mode<synchronous>, transform_indices = @transform_7, window_bounds = array<i64: 1, 128>}, {pipeline_mode = #tpu.pipeline_mode<synchronous>, transform_indices = @transform_8, window_bounds = array<i64: 128, 128>}, {pipeline_mode = #tpu.pipeline_mode<synchronous>, transform_indices = @transform_9, window_bounds = array<i64: 1, 128>}, {pipeline_mode = #tpu.pipeline_mode<synchronous>, transform_indices = @transform_10, window_bounds = array<i64: 64, 256>}, {pipeline_mode = #tpu.pipeline_mode<synchronous>, transform_indices = @transform_11, window_bounds = array<i64: 1, 256>}, {pipeline_mode = #tpu.pipeline_mode<synchronous>, transform_indices = @transform_12, window_bounds = array<i64: 256, 512>}, {pipeline_mode = #tpu.pipeline_mode<synchronous>, transform_indices = @transform_13, window_bounds = array<i64: 1, 512>}, {pipeline_mode = #tpu.pipeline_mode<synchronous>, transform_indices = @transform_14, window_bounds = array<i64: 512, 896>}, {pipeline_mode = #tpu.pipeline_mode<synchronous>, transform_indices = @transform_15, window_bounds = array<i64: 1, 896>}, {transform_indices = @transform_16, window_bounds = array<i64: 16, 896>}, {transform_indices = @transform_17, window_bounds = array<i64: 16, 128>}]} {
    %c0 = arith.constant 0 : index
    %c0_0 = arith.constant 0 : index
    %0 = vector.load %arg1[%c0, %c0_0] : memref<16x1024xbf16, #tpu.memory_space<vmem>>, vector<16x1024xbf16>
    %c0_1 = arith.constant 0 : index
    %c0_2 = arith.constant 0 : index
    %1 = vector.load %arg3[%c0_1, %c0_2] : memref<1024x512xbf16, #tpu.memory_space<vmem>>, vector<1024x512xbf16>
    %cst = arith.constant dense<0.000000e+00> : vector<16x512xf32>
    %2 = tpu.matmul %0, %1, %cst {dimension_numbers = #tpu.dot_dimension_numbers<[1], [0], [0], [1], [0, 0, 1, 1], [], []>} : vector<16x1024xbf16>, vector<1024x512xbf16>, vector<16x512xf32> -> vector<16x512xf32>
    %c0_3 = arith.constant 0 : index
    %c0_4 = arith.constant 0 : index
    %3 = vector.load %arg4[%c0_3, %c0_4] : memref<1x512xf32, #tpu.memory_space<vmem>>, vector<1x512xf32>
    %4 = vector.broadcast %3 : vector<1x512xf32> to vector<16x512xf32>
    %5 = arith.addf %2, %4 : vector<16x512xf32>
    %cst_5 = arith.constant 0.000000e+00 : f32
    %6 = vector.broadcast %cst_5 : f32 to vector<16x512xf32>
    %7 = arith.maximumf %5, %6 : vector<16x512xf32>
    %8 = arith.truncf %7 : vector<16x512xf32> to vector<16x512xbf16>
    %c0_6 = arith.constant 0 : index
    %c0_7 = arith.constant 0 : index
    %9 = vector.load %arg5[%c0_6, %c0_7] : memref<512x256xbf16, #tpu.memory_space<vmem>>, vector<512x256xbf16>
    %cst_8 = arith.constant dense<0.000000e+00> : vector<16x256xf32>
    %10 = tpu.matmul %8, %9, %cst_8 {dimension_numbers = #tpu.dot_dimension_numbers<[1], [0], [0], [1], [0, 0, 1, 1], [], []>} : vector<16x512xbf16>, vector<512x256xbf16>, vector<16x256xf32> -> vector<16x256xf32>
    %c0_9 = arith.constant 0 : index
    %c0_10 = arith.constant 0 : index
    %11 = vector.load %arg6[%c0_9, %c0_10] : memref<1x256xf32, #tpu.memory_space<vmem>>, vector<1x256xf32>
    %12 = vector.broadcast %11 : vector<1x256xf32> to vector<16x256xf32>
    %13 = arith.addf %10, %12 : vector<16x256xf32>
    %cst_11 = arith.constant 0.000000e+00 : f32
    %14 = vector.broadcast %cst_11 : f32 to vector<16x256xf32>
    %15 = arith.maximumf %13, %14 : vector<16x256xf32>
    %16 = arith.truncf %15 : vector<16x256xf32> to vector<16x256xbf16>
    %c0_12 = arith.constant 0 : index
    %c0_13 = arith.constant 0 : index
    %17 = vector.load %arg7[%c0_12, %c0_13] : memref<256x128xbf16, #tpu.memory_space<vmem>>, vector<256x128xbf16>
    %cst_14 = arith.constant dense<0.000000e+00> : vector<16x128xf32>
    %18 = tpu.matmul %16, %17, %cst_14 {dimension_numbers = #tpu.dot_dimension_numbers<[1], [0], [0], [1], [0, 0, 1, 1], [], []>} : vector<16x256xbf16>, vector<256x128xbf16>, vector<16x128xf32> -> vector<16x128xf32>
    %c0_15 = arith.constant 0 : index
    %c0_16 = arith.constant 0 : index
    %19 = vector.load %arg8[%c0_15, %c0_16] : memref<1x128xf32, #tpu.memory_space<vmem>>, vector<1x128xf32>
    %20 = vector.broadcast %19 : vector<1x128xf32> to vector<16x128xf32>
    %21 = arith.addf %18, %20 : vector<16x128xf32>
    %cst_17 = arith.constant 0.000000e+00 : f32
    %22 = vector.broadcast %cst_17 : f32 to vector<16x128xf32>
    %23 = arith.maximumf %21, %22 : vector<16x128xf32>
    %24 = arith.truncf %23 : vector<16x128xf32> to vector<16x128xbf16>
    %c0_18 = arith.constant 0 : index
    %c0_19 = arith.constant 0 : index
    %25 = vector.load %arg9[%c0_18, %c0_19] : memref<128x128xbf16, #tpu.memory_space<vmem>>, vector<128x128xbf16>
    %cst_20 = arith.constant dense<0.000000e+00> : vector<16x128xf32>
    %26 = tpu.matmul %24, %25, %cst_20 {dimension_numbers = #tpu.dot_dimension_numbers<[1], [0], [0], [1], [0, 0, 1, 1], [], []>} : vector<16x128xbf16>, vector<128x128xbf16>, vector<16x128xf32> -> vector<16x128xf32>
    %c0_21 = arith.constant 0 : index
    %c0_22 = arith.constant 0 : index
    %27 = vector.load %arg10[%c0_21, %c0_22] : memref<1x128xf32, #tpu.memory_space<vmem>>, vector<1x128xf32>
    %28 = vector.broadcast %27 : vector<1x128xf32> to vector<16x128xf32>
    %29 = arith.addf %26, %28 : vector<16x128xf32>
    %c0_23 = arith.constant 0 : index
    %c0_24 = arith.constant 0 : index
    %30 = vector.load %arg18[%c0_23, %c0_24] : memref<16x128xf32, #tpu.memory_space<vmem>>, vector<16x128xf32>
    tpu.vector_store %arg18[%c0_23, %c0_24], %29 {strides = array<i32>} : memref<16x128xf32, #tpu.memory_space<vmem>>, vector<16x128xf32>,
    %31 = vector.extract_strided_slice %29 {offsets = [0, 0], sizes = [16, 64], strides = [1, 1]} : vector<16x128xf32> to vector<16x64xf32>
    %32 = vector.extract_strided_slice %29 {offsets = [0, 64], sizes = [16, 64], strides = [1, 1]} : vector<16x128xf32> to vector<16x64xf32>
    %cst_25 = arith.constant 5.000000e-01 : f32
    %33 = vector.broadcast %cst_25 : f32 to vector<16x64xf32>
    %34 = arith.mulf %33, %32 : vector<16x64xf32>
    %35 = math.exp %34 : vector<16x64xf32>
    %c0_26 = arith.constant 0 : index
    %c0_27 = arith.constant 0 : index
    %36 = vector.load %arg2[%c0_26, %c0_27] : memref<16x64xf32, #tpu.memory_space<vmem>>, vector<16x64xf32>
    %37 = arith.mulf %35, %36 : vector<16x64xf32>
    %38 = arith.addf %31, %37 : vector<16x64xf32>
    %39 = arith.truncf %38 : vector<16x64xf32> to vector<16x64xbf16>
    %c0_28 = arith.constant 0 : index
    %c0_29 = arith.constant 0 : index
    %40 = vector.load %arg11[%c0_28, %c0_29] : memref<64x256xbf16, #tpu.memory_space<vmem>>, vector<64x256xbf16>
    %cst_30 = arith.constant dense<0.000000e+00> : vector<16x256xf32>
    %41 = tpu.matmul %39, %40, %cst_30 {dimension_numbers = #tpu.dot_dimension_numbers<[1], [0], [0], [1], [0, 0, 1, 1], [], []>} : vector<16x64xbf16>, vector<64x256xbf16>, vector<16x256xf32> -> vector<16x256xf32>
    %c0_31 = arith.constant 0 : index
    %c0_32 = arith.constant 0 : index
    %42 = vector.load %arg12[%c0_31, %c0_32] : memref<1x256xf32, #tpu.memory_space<vmem>>, vector<1x256xf32>
    %43 = vector.broadcast %42 : vector<1x256xf32> to vector<16x256xf32>
    %44 = arith.addf %41, %43 : vector<16x256xf32>
    %cst_33 = arith.constant 0.000000e+00 : f32
    %45 = vector.broadcast %cst_33 : f32 to vector<16x256xf32>
    %46 = arith.maximumf %44, %45 : vector<16x256xf32>
    %47 = arith.truncf %46 : vector<16x256xf32> to vector<16x256xbf16>
    %c0_34 = arith.constant 0 : index
    %c0_35 = arith.constant 0 : index
    %48 = vector.load %arg13[%c0_34, %c0_35] : memref<256x512xbf16, #tpu.memory_space<vmem>>, vector<256x512xbf16>
    %cst_36 = arith.constant dense<0.000000e+00> : vector<16x512xf32>
    %49 = tpu.matmul %47, %48, %cst_36 {dimension_numbers = #tpu.dot_dimension_numbers<[1], [0], [0], [1], [0, 0, 1, 1], [], []>} : vector<16x256xbf16>, vector<256x512xbf16>, vector<16x512xf32> -> vector<16x512xf32>
    %c0_37 = arith.constant 0 : index
    %c0_38 = arith.constant 0 : index
    %50 = vector.load %arg14[%c0_37, %c0_38] : memref<1x512xf32, #tpu.memory_space<vmem>>, vector<1x512xf32>
    %51 = vector.broadcast %50 : vector<1x512xf32> to vector<16x512xf32>
    %52 = arith.addf %49, %51 : vector<16x512xf32>
    %cst_39 = arith.constant 0.000000e+00 : f32
    %53 = vector.broadcast %cst_39 : f32 to vector<16x512xf32>
    %54 = arith.maximumf %52, %53 : vector<16x512xf32>
    %55 = arith.truncf %54 : vector<16x512xf32> to vector<16x512xbf16>
    %c0_40 = arith.constant 0 : index
    %c0_41 = arith.constant 0 : index
    %56 = vector.load %arg15[%c0_40, %c0_41] : memref<512x896xbf16, #tpu.memory_space<vmem>>, vector<512x896xbf16>
    %cst_42 = arith.constant dense<0.000000e+00> : vector<16x896xf32>
    %57 = tpu.matmul %55, %56, %cst_42 {dimension_numbers = #tpu.dot_dimension_numbers<[1], [0], [0], [1], [0, 0, 1, 1], [], []>} : vector<16x512xbf16>, vector<512x896xbf16>, vector<16x896xf32> -> vector<16x896xf32>
    %c0_43 = arith.constant 0 : index
    %c0_44 = arith.constant 0 : index
    %58 = vector.load %arg16[%c0_43, %c0_44] : memref<1x896xf32, #tpu.memory_space<vmem>>, vector<1x896xf32>
    %59 = vector.broadcast %58 : vector<1x896xf32> to vector<16x896xf32>
    %60 = arith.addf %57, %59 : vector<16x896xf32>
    %61 = arith.negf %60 : vector<16x896xf32>
    %62 = math.exp %61 : vector<16x896xf32>
    %cst_45 = arith.constant 1.000000e+00 : f32
    %63 = vector.broadcast %cst_45 : f32 to vector<16x896xf32>
    %64 = arith.addf %63, %62 : vector<16x896xf32>
    %65 = arith.divf %63, %64 : vector<16x896xf32>
    %c0_46 = arith.constant 0 : index
    %c0_47 = arith.constant 0 : index
    %66 = vector.load %arg17[%c0_46, %c0_47] : memref<16x896xf32, #tpu.memory_space<vmem>>, vector<16x896xf32>
    tpu.vector_store %arg17[%c0_46, %c0_47], %65 {strides = array<i32>} : memref<16x896xf32, #tpu.memory_space<vmem>>, vector<16x896xf32>,
    return
  }
  func.func @transform_0(%arg0: i32) -> (i32, i32) {
    %c0_i32 = arith.constant 0 : i32
    %c0_i32_0 = arith.constant 0 : i32
    return %arg0, %c0_i32 : i32, i32
  }
  func.func @transform_1(%arg0: i32) -> (i32, i32) {
    %c0_i32 = arith.constant 0 : i32
    %c0_i32_0 = arith.constant 0 : i32
    return %arg0, %c0_i32 : i32, i32
  }
  func.func @transform_2(%arg0: i32) -> (i32, i32) {
    %c0_i32 = arith.constant 0 : i32
    %c0_i32_0 = arith.constant 0 : i32
    %c0_i32_1 = arith.constant 0 : i32
    return %c0_i32, %c0_i32_0 : i32, i32
  }
  func.func @transform_3(%arg0: i32) -> (i32, i32) {
    %c0_i32 = arith.constant 0 : i32
    %c0_i32_0 = arith.constant 0 : i32
    %c0_i32_1 = arith.constant 0 : i32
    return %c0_i32, %c0_i32_0 : i32, i32
  }
  func.func @transform_4(%arg0: i32) -> (i32, i32) {
    %c0_i32 = arith.constant 0 : i32
    %c0_i32_0 = arith.constant 0 : i32
    %c0_i32_1 = arith.constant 0 : i32
    return %c0_i32, %c0_i32_0 : i32, i32
  }
  func.func @transform_5(%arg0: i32) -> (i32, i32) {
    %c0_i32 = arith.constant 0 : i32
    %c0_i32_0 = arith.constant 0 : i32
    %c0_i32_1 = arith.constant 0 : i32
    return %c0_i32, %c0_i32_0 : i32, i32
  }
  func.func @transform_6(%arg0: i32) -> (i32, i32) {
    %c0_i32 = arith.constant 0 : i32
    %c0_i32_0 = arith.constant 0 : i32
    %c0_i32_1 = arith.constant 0 : i32
    return %c0_i32, %c0_i32_0 : i32, i32
  }
  func.func @transform_7(%arg0: i32) -> (i32, i32) {
    %c0_i32 = arith.constant 0 : i32
    %c0_i32_0 = arith.constant 0 : i32
    %c0_i32_1 = arith.constant 0 : i32
    return %c0_i32, %c0_i32_0 : i32, i32
  }
  func.func @transform_8(%arg0: i32) -> (i32, i32) {
    %c0_i32 = arith.constant 0 : i32
    %c0_i32_0 = arith.constant 0 : i32
    %c0_i32_1 = arith.constant 0 : i32
    return %c0_i32, %c0_i32_0 : i32, i32
  }
  func.func @transform_9(%arg0: i32) -> (i32, i32) {
    %c0_i32 = arith.constant 0 : i32
    %c0_i32_0 = arith.constant 0 : i32
    %c0_i32_1 = arith.constant 0 : i32
    return %c0_i32, %c0_i32_0 : i32, i32
  }
  func.func @transform_10(%arg0: i32) -> (i32, i32) {
    %c0_i32 = arith.constant 0 : i32
    %c0_i32_0 = arith.constant 0 : i32
    %c0_i32_1 = arith.constant 0 : i32
    return %c0_i32, %c0_i32_0 : i32, i32
  }
  func.func @transform_11(%arg0: i32) -> (i32, i32) {
    %c0_i32 = arith.constant 0 : i32
    %c0_i32_0 = arith.constant 0 : i32
    %c0_i32_1 = arith.constant 0 : i32
    return %c0_i32, %c0_i32_0 : i32, i32
  }
  func.func @transform_12(%arg0: i32) -> (i32, i32) {
    %c0_i32 = arith.constant 0 : i32
    %c0_i32_0 = arith.constant 0 : i32
    %c0_i32_1 = arith.constant 0 : i32
    return %c0_i32, %c0_i32_0 : i32, i32
  }
  func.func @transform_13(%arg0: i32) -> (i32, i32) {
    %c0_i32 = arith.constant 0 : i32
    %c0_i32_0 = arith.constant 0 : i32
    %c0_i32_1 = arith.constant 0 : i32
    return %c0_i32, %c0_i32_0 : i32, i32
  }
  func.func @transform_14(%arg0: i32) -> (i32, i32) {
    %c0_i32 = arith.constant 0 : i32
    %c0_i32_0 = arith.constant 0 : i32
    %c0_i32_1 = arith.constant 0 : i32
    return %c0_i32, %c0_i32_0 : i32, i32
  }
  func.func @transform_15(%arg0: i32) -> (i32, i32) {
    %c0_i32 = arith.constant 0 : i32
    %c0_i32_0 = arith.constant 0 : i32
    %c0_i32_1 = arith.constant 0 : i32
    return %c0_i32, %c0_i32_0 : i32, i32
  }
  func.func @transform_16(%arg0: i32) -> (i32, i32) {
    %c0_i32 = arith.constant 0 : i32
    %c0_i32_0 = arith.constant 0 : i32
    return %arg0, %c0_i32 : i32, i32
  }
  func.func @transform_17(%arg0: i32) -> (i32, i32) {
    %c0_i32 = arith.constant 0 : i32
    %c0_i32_0 = arith.constant 0 : i32
    return %arg0, %c0_i32 : i32, i32
  }
}

</mosaic_0001>

<llo_original>
// kernel: vae_forward.1
$region0: #{vae_forward.1}
  #allocation0 [shape = 'u32[]', space=smem, size = 0x4, offset = 0x4, fixed_abs, tag = 'smem constant byte address 0x4 - core index']
  #allocation1 [shape = 'u32[144,128]{1,0:T(1,128)}', space=vmem, size = 0x12000, scoped, tag = 'internal scratch']
  %s0 = inlined_call_operand.vmem [shape: bf16[16,1024], index: 0, kind: input, shape index: {}]
  %s1 = inlined_call_operand.vmem [shape: f32[16,64], index: 1, kind: input, shape index: {}]
  %s2 = inlined_call_operand.hbm [shape: bf16[1024,512], index: 2, kind: input, shape index: {}]
  %s3 = inlined_call_operand.vmem [shape: f32[1,512], index: 3, kind: input, shape index: {}]
  %s4 = inlined_call_operand.hbm [shape: bf16[512,256], index: 4, kind: input, shape index: {}]
  %s5 = inlined_call_operand.vmem [shape: f32[1,256], index: 5, kind: input, shape index: {}]
  %s6 = inlined_call_operand.vmem [shape: bf16[256,128], index: 6, kind: input, shape index: {}]
  %s7 = inlined_call_operand.vmem [shape: f32[1,128], index: 7, kind: input, shape index: {}]
  %s8 = inlined_call_operand.vmem [shape: bf16[128,128], index: 8, kind: input, shape index: {}]
  %s9 = inlined_call_operand.vmem [shape: f32[1,128], index: 9, kind: input, shape index: {}]
  %s10 = inlined_call_operand.hbm [shape: bf16[64,256], index: 10, kind: input, shape index: {}]
  %s11 = inlined_call_operand.vmem [shape: f32[1,256], index: 11, kind: input, shape index: {}]
  %s12 = inlined_call_operand.hbm [shape: bf16[256,512], index: 12, kind: input, shape index: {}]
  %s13 = inlined_call_operand.vmem [shape: f32[1,512], index: 13, kind: input, shape index: {}]
  %s14 = inlined_call_operand.hbm [shape: bf16[512,896], index: 14, kind: input, shape index: {}]
  %s15 = inlined_call_operand.vmem [shape: f32[1,896], index: 15, kind: input, shape index: {}]
  %s16 = inlined_call_operand.vmem [shape: f32[16,896], index: 16, kind: output, shape index: {0}]
  %s17 = inlined_call_operand.vmem [shape: f32[16,128], index: 17, kind: output, shape index: {1}]
  %18 = xla_tuple %s16, %s17
  %s19 = sld [smem:[#allocation0]]
  $region102: #{vae_forward.1} parent=0
    _
  %s21 = ssub.s32 1, %s19
  %s22 = scalar_select 0, %s21, %s19
  $region1: #{vae_forward.1} parent=0
    #allocation2 [shape = 'u8[1048576]{0}', space=vmem, size = 0x100000, scoped, tag = 'input window, operand 2, single buffered']
    #allocation3 [shape = 's32[1]{0}', space=sflag, size = 0x4, scoped, tag = 'scoped memory for vae_forward.1']
    #allocation4 [shape = 'u8[262144]{0}', space=vmem, size = 0x40000, scoped, tag = 'input window, operand 4, single buffered']
    #allocation5 [shape = 's32[1]{0}', space=sflag, size = 0x4, scoped, tag = 'scoped memory for vae_forward.1']
    #allocation6 [shape = 'u8[32768]{0}', space=vmem, size = 0x8000, scoped, tag = 'input window, operand 10, single buffered']
    #allocation7 [shape = 'u8[262144]{0}', space=vmem, size = 0x40000, scoped, tag = 'input window, operand 12, single buffered']
    #allocation8 [shape = 's32[1]{0}', space=sflag, size = 0x4, scoped, tag = 'scoped memory for vae_forward.1']
    #allocation9 [shape = 'u8[917504]{0}', space=vmem, size = 0xe0000, scoped, tag = 'input window, operand 14, single buffered']
    %23 = vsyncpa [#allocation3], 0
    %24 = vsyncpa [#allocation5], 0
    %25 = vsyncpa [#allocation8], 0
    // Predicated region
    $region2: #{vae_forward.1} parent=1 // pred_check
      _
    $region3: #{vae_forward.1} parent=1 // pred_check_branch
      %27 = sbr.rel (0) target = $region5
    $region4: #{vae_forward.1} parent=1 // pred_region
      _
    $region5: #{vae_forward.1} parent=1 // pred_fallthru
      _
    // Predicated region
    $region6: #{vae_forward.1} parent=1 // pred_check
      _
    $region7: #{vae_forward.1} parent=1 // pred_check_branch
      %29 = sbr.rel (0) target = $region9
    $region8: #{vae_forward.1} parent=1 // pred_region
      _
    $region9: #{vae_forward.1} parent=1 // pred_fallthru
      _
    // Predicated region
    $region10: #{vae_forward.1} parent=1 // pred_check
      _
    $region11: #{vae_forward.1} parent=1 // pred_check_branch
      %31 = sbr.rel (0) target = $region13
    $region12: #{vae_forward.1} parent=1 // pred_region
      %s33 = ssub.s32 32768, 32768
      %34 = vsyncadd [#allocation3], %s33
      %s35 = sshll.u32 [#allocation2], 4
      %s36 = int_to_ptr.vmem [resolvable:$true] %s35
      %41 = dma.hbm_to_vmem [thread:$0]  %s2, 32768, %s36, [#allocation3], 256, 256, 16
    $region13: #{vae_forward.1} parent=1 // pred_fallthru
      _
    // Predicated region
    $region14: #{vae_forward.1} parent=1 // pred_check
      _
    $region15: #{vae_forward.1} parent=1 // pred_check_branch
      %43 = sbr.rel (0) target = $region17
    $region16: #{vae_forward.1} parent=1 // pred_region
      _
    $region17: #{vae_forward.1} parent=1 // pred_fallthru
      _
    // Predicated region
    $region18: #{vae_forward.1} parent=1 // pred_check
      _
    $region19: #{vae_forward.1} parent=1 // pred_check_branch
      %45 = sbr.rel (0) target = $region21
    $region20: #{vae_forward.1} parent=1 // pred_region
      %s47 = ssub.s32 8192, 8192
      %48 = vsyncadd [#allocation5], %s47
      %s49 = sshll.u32 [#allocation4], 4
      %s50 = int_to_ptr.vmem [resolvable:$true] %s49
      %55 = dma.hbm_to_vmem [thread:$0]  %s4, 8192, %s50, [#allocation5], 128, 128, 8
    $region21: #{vae_forward.1} parent=1 // pred_fallthru
      _
    // Predicated region
    $region22: #{vae_forward.1} parent=1 // pred_check
      _
    $region23: #{vae_forward.1} parent=1 // pred_check_branch
      %57 = sbr.rel (0) target = $region25
    $region24: #{vae_forward.1} parent=1 // pred_region
      _
    $region25: #{vae_forward.1} parent=1 // pred_fallthru
      _
    // Predicated region
    $region26: #{vae_forward.1} parent=1 // pred_check
      _
    $region27: #{vae_forward.1} parent=1 // pred_check_branch
      %59 = sbr.rel (0) target = $region29
    $region28: #{vae_forward.1} parent=1 // pred_region
      _
    $region29: #{vae_forward.1} parent=1 // pred_fallthru
      _
    // Predicated region
    $region30: #{vae_forward.1} parent=1 // pred_check
      _
    $region31: #{vae_forward.1} parent=1 // pred_check_branch
      %61 = sbr.rel (0) target = $region33
    $region32: #{vae_forward.1} parent=1 // pred_region
      _
    $region33: #{vae_forward.1} parent=1 // pred_fallthru
      _
    // Predicated region
    $region34: #{vae_forward.1} parent=1 // pred_check
      _
    $region35: #{vae_forward.1} parent=1 // pred_check_branch
      %63 = sbr.rel (0) target = $region37
    $region36: #{vae_forward.1} parent=1 // pred_region
      _
    $region37: #{vae_forward.1} parent=1 // pred_fallthru
      _
    // Predicated region
    $region38: #{vae_forward.1} parent=1 // pred_check
      _
    $region39: #{vae_forward.1} parent=1 // pred_check_branch
      %65 = sbr.rel (0) target = $region41
    $region40: #{vae_forward.1} parent=1 // pred_region
      _
    $region41: #{vae_forward.1} parent=1 // pred_fallthru
      _
    // Predicated region
    $region42: #{vae_forward.1} parent=1 // pred_check
      _
    $region43: #{vae_forward.1} parent=1 // pred_check_branch
      %67 = sbr.rel (0) target = $region45
    $region44: #{vae_forward.1} parent=1 // pred_region
      %s69 = ssub.s32 1024, 1024
      %70 = vsyncadd [#allocation5], %s69
      %s71 = sshll.u32 [#allocation6], 4
      %s72 = int_to_ptr.vmem [resolvable:$true] %s71
      %77 = dma.hbm_to_vmem [thread:$0]  %s10, 1024, %s72, [#allocation5], 128, 128, 8
    $region45: #{vae_forward.1} parent=1 // pred_fallthru
      _
    // Predicated region
    $region46: #{vae_forward.1} parent=1 // pred_check
      _
    $region47: #{vae_forward.1} parent=1 // pred_check_branch
      %79 = sbr.rel (0) target = $region49
    $region48: #{vae_forward.1} parent=1 // pred_region
      _
    $region49: #{vae_forward.1} parent=1 // pred_fallthru
      _
    // Predicated region
    $region50: #{vae_forward.1} parent=1 // pred_check
      _
    $region51: #{vae_forward.1} parent=1 // pred_check_branch
      %81 = sbr.rel (0) target = $region53
    $region52: #{vae_forward.1} parent=1 // pred_region
      %s83 = ssub.s32 8192, 8192
      %84 = vsyncadd [#allocation8], %s83
      %s85 = sshll.u32 [#allocation7], 4
      %s86 = int_to_ptr.vmem [resolvable:$true] %s85
      %91 = dma.hbm_to_vmem [thread:$0]  %s12, 8192, %s86, [#allocation8], 256, 256, 16
    $region53: #{vae_forward.1} parent=1 // pred_fallthru
      _
    // Predicated region
    $region54: #{vae_forward.1} parent=1 // pred_check
      _
    $region55: #{vae_forward.1} parent=1 // pred_check_branch
      %93 = sbr.rel (0) target = $region57
    $region56: #{vae_forward.1} parent=1 // pred_region
      _
    $region57: #{vae_forward.1} parent=1 // pred_fallthru
      _
    // Predicated region
    $region58: #{vae_forward.1} parent=1 // pred_check
      _
    $region59: #{vae_forward.1} parent=1 // pred_check_branch
      %95 = sbr.rel (0) target = $region61
    $region60: #{vae_forward.1} parent=1 // pred_region
      %s97 = ssub.s32 28672, 28672
      %98 = vsyncadd [#allocation8], %s97
      %s99 = sshll.u32 [#allocation9], 4
      %s100 = int_to_ptr.vmem [resolvable:$true] %s99
      %105 = dma.hbm_to_vmem [thread:$0]  %s14, 28672, %s100, [#allocation8], 448, 448, 28
    $region61: #{vae_forward.1} parent=1 // pred_fallthru
      _
    // Predicated region
    $region62: #{vae_forward.1} parent=1 // pred_check
      _
    $region63: #{vae_forward.1} parent=1 // pred_check_branch
      %107 = sbr.rel (0) target = $region65
    $region64: #{vae_forward.1} parent=1 // pred_region
      _
    $region65: #{vae_forward.1} parent=1 // pred_fallthru
      _
    // Predicated region
    $region66: #{vae_forward.1} parent=1 // pred_check
      _
    $region67: #{vae_forward.1} parent=1 // pred_check_branch
      %109 = sbr.rel (0) target = $region69
    $region68: #{vae_forward.1} parent=1 // pred_region
      %110 = dma.done [#allocation3], 32768
    $region69: #{vae_forward.1} parent=1 // pred_fallthru
      _
    // Predicated region
    $region70: #{vae_forward.1} parent=1 // pred_check
      _
    $region71: #{vae_forward.1} parent=1 // pred_check_branch
      %112 = sbr.rel (0) target = $region73
    $region72: #{vae_forward.1} parent=1 // pred_region
      %113 = dma.done [#allocation5], 8192
    $region73: #{vae_forward.1} parent=1 // pred_fallthru
      _
    // Predicated region
    $region74: #{vae_forward.1} parent=1 // pred_check
      _
    $region75: #{vae_forward.1} parent=1 // pred_check_branch
      %115 = sbr.rel (0) target = $region77
    $region76: #{vae_forward.1} parent=1 // pred_region
      %116 = dma.done [#allocation5], 1024
    $region77: #{vae_forward.1} parent=1 // pred_fallthru
      _
    // Predicated region
    $region78: #{vae_forward.1} parent=1 // pred_check
      _
    $region79: #{vae_forward.1} parent=1 // pred_check_branch
      %118 = sbr.rel (0) target = $region81
    $region80: #{vae_forward.1} parent=1 // pred_region
      %119 = dma.done [#allocation8], 8192
    $region81: #{vae_forward.1} parent=1 // pred_fallthru
      _
    // Predicated region
    $region82: #{vae_forward.1} parent=1 // pred_check
      _
    $region83: #{vae_forward.1} parent=1 // pred_check_branch
      %121 = sbr.rel (0) target = $region85
    $region84: #{vae_forward.1} parent=1 // pred_region
      %122 = dma.done [#allocation8], 28672
    $region85: #{vae_forward.1} parent=1 // pred_fallthru
      _
    %v124 = vld [vmem:[%s0] sm:$0xff]
    %v125 = vld [vmem:[%s0 + $0x8] sm:$0xff]
    %v126 = vld [vmem:[%s0 + $0x10] sm:$0xff]
    %v127 = vld [vmem:[%s0 + $0x18] sm:$0xff]
    %v128 = vld [vmem:[%s0 + $0x20] sm:$0xff]
    %v129 = vld [vmem:[%s0 + $0x28] sm:$0xff]
    %v130 = vld [vmem:[%s0 + $0x30] sm:$0xff]
    %v131 = vld [vmem:[%s0 + $0x38] sm:$0xff]
    %v132 = vld [vmem:[#allocation2] sm:$0xff]
    %v133 = vld [vmem:[#allocation2 + $0x8] sm:$0xff]
    %v134 = vld [vmem:[#allocation2 + $0x10] sm:$0xff]
    %v135 = vld [vmem:[#allocation2 + $0x18] sm:$0xff]
    %v136 = vld [vmem:[#allocation2 + $0x20] sm:$0xff]
    %v137 = vld [vmem:[#allocation2 + $0x28] sm:$0xff]
    %v138 = vld [vmem:[#allocation2 + $0x30] sm:$0xff]
    %v139 = vld [vmem:[#allocation2 + $0x38] sm:$0xff]
    %v140 = vld [vmem:[#allocation2 + $0x40] sm:$0xff]
    %v141 = vld [vmem:[#allocation2 + $0x48] sm:$0xff]
    %v142 = vld [vmem:[#allocation2 + $0x50] sm:$0xff]
    %v143 = vld [vmem:[#allocation2 + $0x58] sm:$0xff]
    %v144 = vld [vmem:[#allocation2 + $0x60] sm:$0xff]
    %v145 = vld [vmem:[#allocation2 + $0x68] sm:$0xff]
    %v146 = vld [vmem:[#allocation2 + $0x70] sm:$0xff]
    %v147 = vld [vmem:[#allocation2 + $0x78] sm:$0xff]
    %v148 = vld [vmem:[#allocation2 + $0x80] sm:$0xff]
    %v149 = vld [vmem:[#allocation2 + $0x88] sm:$0xff]
    %v150 = vld [vmem:[#allocation2 + $0x90] sm:$0xff]
    %v151 = vld [vmem:[#allocation2 + $0x98] sm:$0xff]
    %v152 = vld [vmem:[#allocation2 + $0xa0] sm:$0xff]
    %v153 = vld [vmem:[#allocation2 + $0xa8] sm:$0xff]
    %v154 = vld [vmem:[#allocation2 + $0xb0] sm:$0xff]
    %v155 = vld [vmem:[#allocation2 + $0xb8] sm:$0xff]
    %v156 = vld [vmem:[#allocation2 + $0xc0] sm:$0xff]
    %v157 = vld [vmem:[#allocation2 + $0xc8] sm:$0xff]
    %v158 = vld [vmem:[#allocation2 + $0xd0] sm:$0xff]
    %v159 = vld [vmem:[#allocation2 + $0xd8] sm:$0xff]
    %v160 = vld [vmem:[#allocation2 + $0xe0] sm:$0xff]
    %v161 = vld [vmem:[#allocation2 + $0xe8] sm:$0xff]
    %v162 = vld [vmem:[#allocation2 + $0xf0] sm:$0xff]
    %v163 = vld [vmem:[#allocation2 + $0xf8] sm:$0xff]
    %v164 = vld [vmem:[#allocation2 + $0x100] sm:$0xff]
    %v165 = vld [vmem:[#allocation2 + $0x108] sm:$0xff]
    %v166 = vld [vmem:[#allocation2 + $0x110] sm:$0xff]
    %v167 = vld [vmem:[#allocation2 + $0x118] sm:$0xff]
    %v168 = vld [vmem:[#allocation2 + $0x120] sm:$0xff]
    %v169 = vld [vmem:[#allocation2 + $0x128] sm:$0xff]
    %v170 = vld [vmem:[#allocation2 + $0x130] sm:$0xff]
    %v171 = vld [vmem:[#allocation2 + $0x138] sm:$0xff]
    %v172 = vld [vmem:[#allocation2 + $0x140] sm:$0xff]
    %v173 = vld [vmem:[#allocation2 + $0x148] sm:$0xff]
    %v174 = vld [vmem:[#allocation2 + $0x150] sm:$0xff]
    %v175 = vld [vmem:[#allocation2 + $0x158] sm:$0xff]
    %v176 = vld [vmem:[#allocation2 + $0x160] sm:$0xff]
    %v177 = vld [vmem:[#allocation2 + $0x168] sm:$0xff]
    %v178 = vld [vmem:[#allocation2 + $0x170] sm:$0xff]
    %v179 = vld [vmem:[#allocation2 + $0x178] sm:$0xff]
    %v180 = vld [vmem:[#allocation2 + $0x180] sm:$0xff]
    %v181 = vld [vmem:[#allocation2 + $0x188] sm:$0xff]
    %v182 = vld [vmem:[#allocation2 + $0x190] sm:$0xff]
    %v183 = vld [vmem:[#allocation2 + $0x198] sm:$0xff]
    %v184 = vld [vmem:[#allocation2 + $0x1a0] sm:$0xff]
    %v185 = vld [vmem:[#allocation2 + $0x1a8] sm:$0xff]
    %v186 = vld [vmem:[#allocation2 + $0x1b0] sm:$0xff]
    %v187 = vld [vmem:[#allocation2 + $0x1b8] sm:$0xff]
    %v188 = vld [vmem:[#allocation2 + $0x1c0] sm:$0xff]
    %v189 = vld [vmem:[#allocation2 + $0x1c8] sm:$0xff]
    %v190 = vld [vmem:[#allocation2 + $0x1d0] sm:$0xff]
    %v191 = vld [vmem:[#allocation2 + $0x1d8] sm:$0xff]
    %v192 = vld [vmem:[#allocation2 + $0x1e0] sm:$0xff]
    %v193 = vld [vmem:[#allocation2 + $0x1e8] sm:$0xff]
    %v194 = vld [vmem:[#allocation2 + $0x1f0] sm:$0xff]
    %v195 = vld [vmem:[#allocation2 + $0x1f8] sm:$0xff]
    %v196 = vld [vmem:[#allocation2 + $0x200] sm:$0xff]
    %v197 = vld [vmem:[#allocation2 + $0x208] sm:$0xff]
    %v198 = vld [vmem:[#allocation2 + $0x210] sm:$0xff]
    %v199 = vld [vmem:[#allocation2 + $0x218] sm:$0xff]
    %v200 = vld [vmem:[#allocation2 + $0x220] sm:$0xff]
    %v201 = vld [vmem:[#allocation2 + $0x228] sm:$0xff]
    %v202 = vld [vmem:[#allocation2 + $0x230] sm:$0xff]
    %v203 = vld [vmem:[#allocation2 + $0x238] sm:$0xff]
    %v204 = vld [vmem:[#allocation2 + $0x240] sm:$0xff]
    %v205 = vld [vmem:[#allocation2 + $0x248] sm:$0xff]
    %v206 = vld [vmem:[#allocation2 + $0x250] sm:$0xff]
    %v207 = vld [vmem:[#allocation2 + $0x258] sm:$0xff]
    %v208 = vld [vmem:[#allocation2 + $0x260] sm:$0xff]
    %v209 = vld [vmem:[#allocation2 + $0x268] sm:$0xff]
    %v210 = vld [vmem:[#allocation2 + $0x270] sm:$0xff]
    %v211 = vld [vmem:[#allocation2 + $0x278] sm:$0xff]
    %v212 = vld [vmem:[#allocation2 + $0x280] sm:$0xff]
    %v213 = vld [vmem:[#allocation2 + $0x288] sm:$0xff]
    %v214 = vld [vmem:[#allocation2 + $0x290] sm:$0xff]
    %v215 = vld [vmem:[#allocation2 + $0x298] sm:$0xff]
    %v216 = vld [vmem:[#allocation2 + $0x2a0] sm:$0xff]
    %v217 = vld [vmem:[#allocation2 + $0x2a8] sm:$0xff]
    %v218 = vld [vmem:[#allocation2 + $0x2b0] sm:$0xff]
    %v219 = vld [vmem:[#allocation2 + $0x2b8] sm:$0xff]
    %v220 = vld [vmem:[#allocation2 + $0x2c0] sm:$0xff]
    %v221 = vld [vmem:[#allocation2 + $0x2c8] sm:$0xff]
    %v222 = vld [vmem:[#allocation2 + $0x2d0] sm:$0xff]
    %v223 = vld [vmem:[#allocation2 + $0x2d8] sm:$0xff]
    %v224 = vld [vmem:[#allocation2 + $0x2e0] sm:$0xff]
    %v225 = vld [vmem:[#allocation2 + $0x2e8] sm:$0xff]
    %v226 = vld [vmem:[#allocation2 + $0x2f0] sm:$0xff]
    %v227 = vld [vmem:[#allocation2 + $0x2f8] sm:$0xff]
    %v228 = vld [vmem:[#allocation2 + $0x300] sm:$0xff]
    %v229 = vld [vmem:[#allocation2 + $0x308] sm:$0xff]
    %v230 = vld [vmem:[#allocation2 + $0x310] sm:$0xff]
    %v231 = vld [vmem:[#allocation2 + $0x318] sm:$0xff]
    %v232 = vld [vmem:[#allocation2 + $0x320] sm:$0xff]
    %v233 = vld [vmem:[#allocation2 + $0x328] sm:$0xff]
    %v234 = vld [vmem:[#allocation2 + $0x330] sm:$0xff]
    %v235 = vld [vmem:[#allocation2 + $0x338] sm:$0xff]
    %v236 = vld [vmem:[#allocation2 + $0x340] sm:$0xff]
    %v237 = vld [vmem:[#allocation2 + $0x348] sm:$0xff]
    %v238 = vld [vmem:[#allocation2 + $0x350] sm:$0xff]
    %v239 = vld [vmem:[#allocation2 + $0x358] sm:$0xff]
    %v240 = vld [vmem:[#allocation2 + $0x360] sm:$0xff]
    %v241 = vld [vmem:[#allocation2 + $0x368] sm:$0xff]
    %v242 = vld [vmem:[#allocation2 + $0x370] sm:$0xff]
    %v243 = vld [vmem:[#allocation2 + $0x378] sm:$0xff]
    %v244 = vld [vmem:[#allocation2 + $0x380] sm:$0xff]
    %v245 = vld [vmem:[#allocation2 + $0x388] sm:$0xff]
    %v246 = vld [vmem:[#allocation2 + $0x390] sm:$0xff]
    %v247 = vld [vmem:[#allocation2 + $0x398] sm:$0xff]
    %v248 = vld [vmem:[#allocation2 + $0x3a0] sm:$0xff]
    %v249 = vld [vmem:[#allocation2 + $0x3a8] sm:$0xff]
    %v250 = vld [vmem:[#allocation2 + $0x3b0] sm:$0xff]
    %v251 = vld [vmem:[#allocation2 + $0x3b8] sm:$0xff]
    %v252 = vld [vmem:[#allocation2 + $0x3c0] sm:$0xff]
    %v253 = vld [vmem:[#allocation2 + $0x3c8] sm:$0xff]
    %v254 = vld [vmem:[#allocation2 + $0x3d0] sm:$0xff]
    %v255 = vld [vmem:[#allocation2 + $0x3d8] sm:$0xff]
    %v256 = vld [vmem:[#allocation2 + $0x3e0] sm:$0xff]
    %v257 = vld [vmem:[#allocation2 + $0x3e8] sm:$0xff]
    %v258 = vld [vmem:[#allocation2 + $0x3f0] sm:$0xff]
    %v259 = vld [vmem:[#allocation2 + $0x3f8] sm:$0xff]
    %v260 = vld [vmem:[#allocation2 + $0x400] sm:$0xff]
    %v261 = vld [vmem:[#allocation2 + $0x408] sm:$0xff]
    %v262 = vld [vmem:[#allocation2 + $0x410] sm:$0xff]
    %v263 = vld [vmem:[#allocation2 + $0x418] sm:$0xff]
    %v264 = vld [vmem:[#allocation2 + $0x420] sm:$0xff]
    %v265 = vld [vmem:[#allocation2 + $0x428] sm:$0xff]
    %v266 = vld [vmem:[#allocation2 + $0x430] sm:$0xff]
    %v267 = vld [vmem:[#allocation2 + $0x438] sm:$0xff]
    %v268 = vld [vmem:[#allocation2 + $0x440] sm:$0xff]
    %v269 = vld [vmem:[#allocation2 + $0x448] sm:$0xff]
    %v270 = vld [vmem:[#allocation2 + $0x450] sm:$0xff]
    %v271 = vld [vmem:[#allocation2 + $0x458] sm:$0xff]
    %v272 = vld [vmem:[#allocation2 + $0x460] sm:$0xff]
    %v273 = vld [vmem:[#allocation2 + $0x468] sm:$0xff]
    %v274 = vld [vmem:[#allocation2 + $0x470] sm:$0xff]
    %v275 = vld [vmem:[#allocation2 + $0x478] sm:$0xff]
    %v276 = vld [vmem:[#allocation2 + $0x480] sm:$0xff]
    %v277 = vld [vmem:[#allocation2 + $0x488] sm:$0xff]
    %v278 = vld [vmem:[#allocation2 + $0x490] sm:$0xff]
    %v279 = vld [vmem:[#allocation2 + $0x498] sm:$0xff]
    %v280 = vld [vmem:[#allocation2 + $0x4a0] sm:$0xff]
    %v281 = vld [vmem:[#allocation2 + $0x4a8] sm:$0xff]
    %v282 = vld [vmem:[#allocation2 + $0x4b0] sm:$0xff]
    %v283 = vld [vmem:[#allocation2 + $0x4b8] sm:$0xff]
    %v284 = vld [vmem:[#allocation2 + $0x4c0] sm:$0xff]
    %v285 = vld [vmem:[#allocation2 + $0x4c8] sm:$0xff]
    %v286 = vld [vmem:[#allocation2 + $0x4d0] sm:$0xff]
    %v287 = vld [vmem:[#allocation2 + $0x4d8] sm:$0xff]
    %v288 = vld [vmem:[#allocation2 + $0x4e0] sm:$0xff]
    %v289 = vld [vmem:[#allocation2 + $0x4e8] sm:$0xff]
    %v290 = vld [vmem:[#allocation2 + $0x4f0] sm:$0xff]
    %v291 = vld [vmem:[#allocation2 + $0x4f8] sm:$0xff]
    %v292 = vld [vmem:[#allocation2 + $0x500] sm:$0xff]
    %v293 = vld [vmem:[#allocation2 + $0x508] sm:$0xff]
    %v294 = vld [vmem:[#allocation2 + $0x510] sm:$0xff]
    %v295 = vld [vmem:[#allocation2 + $0x518] sm:$0xff]
    %v296 = vld [vmem:[#allocation2 + $0x520] sm:$0xff]
    %v297 = vld [vmem:[#allocation2 + $0x528] sm:$0xff]
    %v298 = vld [vmem:[#allocation2 + $0x530] sm:$0xff]
    %v299 = vld [vmem:[#allocation2 + $0x538] sm:$0xff]
    %v300 = vld [vmem:[#allocation2 + $0x540] sm:$0xff]
    %v301 = vld [vmem:[#allocation2 + $0x548] sm:$0xff]
    %v302 = vld [vmem:[#allocation2 + $0x550] sm:$0xff]
    %v303 = vld [vmem:[#allocation2 + $0x558] sm:$0xff]
    %v304 = vld [vmem:[#allocation2 + $0x560] sm:$0xff]
    %v305 = vld [vmem:[#allocation2 + $0x568] sm:$0xff]
    %v306 = vld [vmem:[#allocation2 + $0x570] sm:$0xff]
    %v307 = vld [vmem:[#allocation2 + $0x578] sm:$0xff]
    %v308 = vld [vmem:[#allocation2 + $0x580] sm:$0xff]
    %v309 = vld [vmem:[#allocation2 + $0x588] sm:$0xff]
    %v310 = vld [vmem:[#allocation2 + $0x590] sm:$0xff]
    %v311 = vld [vmem:[#allocation2 + $0x598] sm:$0xff]
    %v312 = vld [vmem:[#allocation2 + $0x5a0] sm:$0xff]
    %v313 = vld [vmem:[#allocation2 + $0x5a8] sm:$0xff]
    %v314 = vld [vmem:[#allocation2 + $0x5b0] sm:$0xff]
    %v315 = vld [vmem:[#allocation2 + $0x5b8] sm:$0xff]
    %v316 = vld [vmem:[#allocation2 + $0x5c0] sm:$0xff]
    %v317 = vld [vmem:[#allocation2 + $0x5c8] sm:$0xff]
    %v318 = vld [vmem:[#allocation2 + $0x5d0] sm:$0xff]
    %v319 = vld [vmem:[#allocation2 + $0x5d8] sm:$0xff]
    %v320 = vld [vmem:[#allocation2 + $0x5e0] sm:$0xff]
    %v321 = vld [vmem:[#allocation2 + $0x5e8] sm:$0xff]
    %v322 = vld [vmem:[#allocation2 + $0x5f0] sm:$0xff]
    %v323 = vld [vmem:[#allocation2 + $0x5f8] sm:$0xff]
    %v324 = vld [vmem:[#allocation2 + $0x600] sm:$0xff]
    %v325 = vld [vmem:[#allocation2 + $0x608] sm:$0xff]
    %v326 = vld [vmem:[#allocation2 + $0x610] sm:$0xff]
    %v327 = vld [vmem:[#allocation2 + $0x618] sm:$0xff]
    %v328 = vld [vmem:[#allocation2 + $0x620] sm:$0xff]
    %v329 = vld [vmem:[#allocation2 + $0x628] sm:$0xff]
    %v330 = vld [vmem:[#allocation2 + $0x630] sm:$0xff]
    %v331 = vld [vmem:[#allocation2 + $0x638] sm:$0xff]
    %v332 = vld [vmem:[#allocation2 + $0x640] sm:$0xff]
    %v333 = vld [vmem:[#allocation2 + $0x648] sm:$0xff]
    %v334 = vld [vmem:[#allocation2 + $0x650] sm:$0xff]
    %v335 = vld [vmem:[#allocation2 + $0x658] sm:$0xff]
    %v336 = vld [vmem:[#allocation2 + $0x660] sm:$0xff]
    %v337 = vld [vmem:[#allocation2 + $0x668] sm:$0xff]
    %v338 = vld [vmem:[#allocation2 + $0x670] sm:$0xff]
    %v339 = vld [vmem:[#allocation2 + $0x678] sm:$0xff]
    %v340 = vld [vmem:[#allocation2 + $0x680] sm:$0xff]
    %v341 = vld [vmem:[#allocation2 + $0x688] sm:$0xff]
    %v342 = vld [vmem:[#allocation2 + $0x690] sm:$0xff]
    %v343 = vld [vmem:[#allocation2 + $0x698] sm:$0xff]
    %v344 = vld [vmem:[#allocation2 + $0x6a0] sm:$0xff]
    %v345 = vld [vmem:[#allocation2 + $0x6a8] sm:$0xff]
    %v346 = vld [vmem:[#allocation2 + $0x6b0] sm:$0xff]
    %v347 = vld [vmem:[#allocation2 + $0x6b8] sm:$0xff]
    %v348 = vld [vmem:[#allocation2 + $0x6c0] sm:$0xff]
    %v349 = vld [vmem:[#allocation2 + $0x6c8] sm:$0xff]
    %v350 = vld [vmem:[#allocation2 + $0x6d0] sm:$0xff]
    %v351 = vld [vmem:[#allocation2 + $0x6d8] sm:$0xff]
    %v352 = vld [vmem:[#allocation2 + $0x6e0] sm:$0xff]
    %v353 = vld [vmem:[#allocation2 + $0x6e8] sm:$0xff]
    %v354 = vld [vmem:[#allocation2 + $0x6f0] sm:$0xff]
    %v355 = vld [vmem:[#allocation2 + $0x6f8] sm:$0xff]
    %v356 = vld [vmem:[#allocation2 + $0x700] sm:$0xff]
    %v357 = vld [vmem:[#allocation2 + $0x708] sm:$0xff]
    %v358 = vld [vmem:[#allocation2 + $0x710] sm:$0xff]
    %v359 = vld [vmem:[#allocation2 + $0x718] sm:$0xff]
    %v360 = vld [vmem:[#allocation2 + $0x720] sm:$0xff]
    %v361 = vld [vmem:[#allocation2 + $0x728] sm:$0xff]
    %v362 = vld [vmem:[#allocation2 + $0x730] sm:$0xff]
    %v363 = vld [vmem:[#allocation2 + $0x738] sm:$0xff]
    %v364 = vld [vmem:[#allocation2 + $0x740] sm:$0xff]
    %v365 = vld [vmem:[#allocation2 + $0x748] sm:$0xff]
    %v366 = vld [vmem:[#allocation2 + $0x750] sm:$0xff]
    %v367 = vld [vmem:[#allocation2 + $0x758] sm:$0xff]
    %v368 = vld [vmem:[#allocation2 + $0x760] sm:$0xff]
    %v369 = vld [vmem:[#allocation2 + $0x768] sm:$0xff]
    %v370 = vld [vmem:[#allocation2 + $0x770] sm:$0xff]
    %v371 = vld [vmem:[#allocation2 + $0x778] sm:$0xff]
    %v372 = vld [vmem:[#allocation2 + $0x780] sm:$0xff]
    %v373 = vld [vmem:[#allocation2 + $0x788] sm:$0xff]
    %v374 = vld [vmem:[#allocation2 + $0x790] sm:$0xff]
    %v375 = vld [vmem:[#allocation2 + $0x798] sm:$0xff]
    %v376 = vld [vmem:[#allocation2 + $0x7a0] sm:$0xff]
    %v377 = vld [vmem:[#allocation2 + $0x7a8] sm:$0xff]
    %v378 = vld [vmem:[#allocation2 + $0x7b0] sm:$0xff]
    %v379 = vld [vmem:[#allocation2 + $0x7b8] sm:$0xff]
    %v380 = vld [vmem:[#allocation2 + $0x7c0] sm:$0xff]
    %v381 = vld [vmem:[#allocation2 + $0x7c8] sm:$0xff]
    %v382 = vld [vmem:[#allocation2 + $0x7d0] sm:$0xff]
    %v383 = vld [vmem:[#allocation2 + $0x7d8] sm:$0xff]
    %v384 = vld [vmem:[#allocation2 + $0x7e0] sm:$0xff]
    %v385 = vld [vmem:[#allocation2 + $0x7e8] sm:$0xff]
    %v386 = vld [vmem:[#allocation2 + $0x7f0] sm:$0xff]
    %v387 = vld [vmem:[#allocation2 + $0x7f8] sm:$0xff]
    %v388 = vld [vmem:[%s3] sm:$0xf]
    %v390 = vlaneseq
    %v391 = vshrl.u32 %v390, 7
    %v392 = vsub.s32 0, %v391
    %v393 = vrot.slane %v388, %v392
    %v394 = vlaneseq
    %v395 = vshrl.u32 %v394, 7
    %v396 = vsub.s32 1, %v395
    %v397 = vrot.slane %v388, %v396
    %v398 = vlaneseq
    %v399 = vshrl.u32 %v398, 7
    %v400 = vsub.s32 2, %v399
    %v401 = vrot.slane %v388, %v400
    %v402 = vlaneseq
    %v403 = vshrl.u32 %v402, 7
    %v404 = vsub.s32 3, %v403
    %v405 = vrot.slane %v388, %v404
    %v418 = vunpack.c.l.b16 %v124
    %v419 = vunpack.c.h.b16 %v124
    %v420 = vunpack.c.l.b16 %v125
    %v421 = vunpack.c.h.b16 %v125
    %v422 = vunpack.c.l.b16 %v126
    %v423 = vunpack.c.h.b16 %v126
    %v424 = vunpack.c.l.b16 %v127
    %v425 = vunpack.c.h.b16 %v127
    %v426 = vunpack.c.l.b16 %v128
    %v427 = vunpack.c.h.b16 %v128
    %v428 = vunpack.c.l.b16 %v129
    %v429 = vunpack.c.h.b16 %v129
    %v430 = vunpack.c.l.b16 %v130
    %v431 = vunpack.c.h.b16 %v130
    %v432 = vunpack.c.l.b16 %v131
    %v433 = vunpack.c.h.b16 %v131
    %v434 = vpack.c.b16 %v426, %v418
    %v435 = vpack.c.b16 %v427, %v419
    %v436 = vpack.c.b16 %v428, %v420
    %v437 = vpack.c.b16 %v429, %v421
    %v438 = vpack.c.b16 %v430, %v422
    %v439 = vpack.c.b16 %v431, %v423
    %v440 = vpack.c.b16 %v432, %v424
    %v441 = vpack.c.b16 %v433, %v425
    %v706 = vunpack.c.l.b16 %v132
    %v707 = vunpack.c.h.b16 %v132
    %v708 = vunpack.c.l.b16 %v133
    %v709 = vunpack.c.h.b16 %v133
    %v710 = vunpack.c.l.b16 %v134
    %v711 = vunpack.c.h.b16 %v134
    %v712 = vunpack.c.l.b16 %v135
    %v713 = vunpack.c.h.b16 %v135
    %v714 = vunpack.c.l.b16 %v136
    %v715 = vunpack.c.h.b16 %v136
    %v716 = vunpack.c.l.b16 %v137
    %v717 = vunpack.c.h.b16 %v137
    %v718 = vunpack.c.l.b16 %v138
    %v719 = vunpack.c.h.b16 %v138
    %v720 = vunpack.c.l.b16 %v139
    %v721 = vunpack.c.h.b16 %v139
    %v722 = vunpack.c.l.b16 %v140
    %v723 = vunpack.c.h.b16 %v140
    %v724 = vunpack.c.l.b16 %v141
    %v725 = vunpack.c.h.b16 %v141
    %v726 = vunpack.c.l.b16 %v142
    %v727 = vunpack.c.h.b16 %v142
    %v728 = vunpack.c.l.b16 %v143
    %v729 = vunpack.c.h.b16 %v143
    %v730 = vunpack.c.l.b16 %v144
    %v731 = vunpack.c.h.b16 %v144
    %v732 = vunpack.c.l.b16 %v145
    %v733 = vunpack.c.h.b16 %v145
    %v734 = vunpack.c.l.b16 %v146
    %v735 = vunpack.c.h.b16 %v146
    %v736 = vunpack.c.l.b16 %v147
    %v737 = vunpack.c.h.b16 %v147
    %v738 = vunpack.c.l.b16 %v148
    %v739 = vunpack.c.h.b16 %v148
    %v740 = vunpack.c.l.b16 %v149
    %v741 = vunpack.c.h.b16 %v149
    %v742 = vunpack.c.l.b16 %v150
    %v743 = vunpack.c.h.b16 %v150
    %v744 = vunpack.c.l.b16 %v151
    %v745 = vunpack.c.h.b16 %v151
    %v746 = vunpack.c.l.b16 %v152
    %v747 = vunpack.c.h.b16 %v152
    %v748 = vunpack.c.l.b16 %v153
    %v749 = vunpack.c.h.b16 %v153
    %v750 = vunpack.c.l.b16 %v154
    %v751 = vunpack.c.h.b16 %v154
    %v752 = vunpack.c.l.b16 %v155
    %v753 = vunpack.c.h.b16 %v155
    %v754 = vunpack.c.l.b16 %v156
    %v755 = vunpack.c.h.b16 %v156
    %v756 = vunpack.c.l.b16 %v157
    %v757 = vunpack.c.h.b16 %v157
    %v758 = vunpack.c.l.b16 %v158
    %v759 = vunpack.c.h.b16 %v158
    %v760 = vunpack.c.l.b16 %v159
    %v761 = vunpack.c.h.b16 %v159
    %v762 = vunpack.c.l.b16 %v160
    %v763 = vunpack.c.h.b16 %v160
    %v764 = vunpack.c.l.b16 %v161
    %v765 = vunpack.c.h.b16 %v161
    %v766 = vunpack.c.l.b16 %v162
    %v767 = vunpack.c.h.b16 %v162
    %v768 = vunpack.c.l.b16 %v163
    %v769 = vunpack.c.h.b16 %v163
    %v770 = vunpack.c.l.b16 %v164
    %v771 = vunpack.c.h.b16 %v164
    %v772 = vunpack.c.l.b16 %v165
    %v773 = vunpack.c.h.b16 %v165
    %v774 = vunpack.c.l.b16 %v166
    %v775 = vunpack.c.h.b16 %v166
    %v776 = vunpack.c.l.b16 %v167
    %v777 = vunpack.c.h.b16 %v167
    %v778 = vunpack.c.l.b16 %v168
    %v779 = vunpack.c.h.b16 %v168
    %v780 = vunpack.c.l.b16 %v169
    %v781 = vunpack.c.h.b16 %v169
    %v782 = vunpack.c.l.b16 %v170
    %v783 = vunpack.c.h.b16 %v170
    %v784 = vunpack.c.l.b16 %v171
    %v785 = vunpack.c.h.b16 %v171
    %v786 = vunpack.c.l.b16 %v172
    %v787 = vunpack.c.h.b16 %v172
    %v788 = vunpack.c.l.b16 %v173
    %v789 = vunpack.c.h.b16 %v173
    %v790 = vunpack.c.l.b16 %v174
    %v791 = vunpack.c.h.b16 %v174
    %v792 = vunpack.c.l.b16 %v175
    %v793 = vunpack.c.h.b16 %v175
    %v794 = vunpack.c.l.b16 %v176
    %v795 = vunpack.c.h.b16 %v176
    %v796 = vunpack.c.l.b16 %v177
    %v797 = vunpack.c.h.b16 %v177
    %v798 = vunpack.c.l.b16 %v178
    %v799 = vunpack.c.h.b16 %v178
    %v800 = vunpack.c.l.b16 %v179
    %v801 = vunpack.c.h.b16 %v179
    %v802 = vunpack.c.l.b16 %v180
    %v803 = vunpack.c.h.b16 %v180
    %v804 = vunpack.c.l.b16 %v181
    %v805 = vunpack.c.h.b16 %v181
    %v806 = vunpack.c.l.b16 %v182
    %v807 = vunpack.c.h.b16 %v182
    %v808 = vunpack.c.l.b16 %v183
    %v809 = vunpack.c.h.b16 %v183
    %v810 = vunpack.c.l.b16 %v184
    %v811 = vunpack.c.h.b16 %v184
    %v812 = vunpack.c.l.b16 %v185
    %v813 = vunpack.c.h.b16 %v185
    %v814 = vunpack.c.l.b16 %v186
    %v815 = vunpack.c.h.b16 %v186
    %v816 = vunpack.c.l.b16 %v187
    %v817 = vunpack.c.h.b16 %v187
    %v818 = vunpack.c.l.b16 %v188
    %v819 = vunpack.c.h.b16 %v188
    %v820 = vunpack.c.l.b16 %v189
    %v821 = vunpack.c.h.b16 %v189
    %v822 = vunpack.c.l.b16 %v190
    %v823 = vunpack.c.h.b16 %v190
    %v824 = vunpack.c.l.b16 %v191
    %v825 = vunpack.c.h.b16 %v191
    %v826 = vunpack.c.l.b16 %v192
    %v827 = vunpack.c.h.b16 %v192
    %v828 = vunpack.c.l.b16 %v193
    %v829 = vunpack.c.h.b16 %v193
    %v830 = vunpack.c.l.b16 %v194
    %v831 = vunpack.c.h.b16 %v194
    %v832 = vunpack.c.l.b16 %v195
    %v833 = vunpack.c.h.b16 %v195
    %v834 = vunpack.c.l.b16 %v196
    %v835 = vunpack.c.h.b16 %v196
    %v836 = vunpack.c.l.b16 %v197
    %v837 = vunpack.c.h.b16 %v197
    %v838 = vunpack.c.l.b16 %v198
    %v839 = vunpack.c.h.b16 %v198
    %v840 = vunpack.c.l.b16 %v199
    %v841 = vunpack.c.h.b16 %v199
    %v842 = vunpack.c.l.b16 %v200
    %v843 = vunpack.c.h.b16 %v200
    %v844 = vunpack.c.l.b16 %v201
    %v845 = vunpack.c.h.b16 %v201
    %v846 = vunpack.c.l.b16 %v202
    %v847 = vunpack.c.h.b16 %v202
    %v848 = vunpack.c.l.b16 %v203
    %v849 = vunpack.c.h.b16 %v203
    %v850 = vunpack.c.l.b16 %v204
    %v851 = vunpack.c.h.b16 %v204
    %v852 = vunpack.c.l.b16 %v205
    %v853 = vunpack.c.h.b16 %v205
    %v854 = vunpack.c.l.b16 %v206
    %v855 = vunpack.c.h.b16 %v206
    %v856 = vunpack.c.l.b16 %v207
    %v857 = vunpack.c.h.b16 %v207
    %v858 = vunpack.c.l.b16 %v208
    %v859 = vunpack.c.h.b16 %v208
    %v860 = vunpack.c.l.b16 %v209
    %v861 = vunpack.c.h.b16 %v209
    %v862 = vunpack.c.l.b16 %v210
    %v863 = vunpack.c.h.b16 %v210
    %v864 = vunpack.c.l.b16 %v211
    %v865 = vunpack.c.h.b16 %v211
    %v866 = vunpack.c.l.b16 %v212
    %v867 = vunpack.c.h.b16 %v212
    %v868 = vunpack.c.l.b16 %v213
    %v869 = vunpack.c.h.b16 %v213
    %v870 = vunpack.c.l.b16 %v214
    %v871 = vunpack.c.h.b16 %v214
    %v872 = vunpack.c.l.b16 %v215
    %v873 = vunpack.c.h.b16 %v215
    %v874 = vunpack.c.l.b16 %v216
    %v875 = vunpack.c.h.b16 %v216
    %v876 = vunpack.c.l.b16 %v217
    %v877 = vunpack.c.h.b16 %v217
    %v878 = vunpack.c.l.b16 %v218
    %v879 = vunpack.c.h.b16 %v218
    %v880 = vunpack.c.l.b16 %v219
    %v881 = vunpack.c.h.b16 %v219
    %v882 = vunpack.c.l.b16 %v220
    %v883 = vunpack.c.h.b16 %v220
    %v884 = vunpack.c.l.b16 %v221
    %v885 = vunpack.c.h.b16 %v221
    %v886 = vunpack.c.l.b16 %v222
    %v887 = vunpack.c.h.b16 %v222
    %v888 = vunpack.c.l.b16 %v223
    %v889 = vunpack.c.h.b16 %v223
    %v890 = vunpack.c.l.b16 %v224
    %v891 = vunpack.c.h.b16 %v224
    %v892 = vunpack.c.l.b16 %v225
    %v893 = vunpack.c.h.b16 %v225
    %v894 = vunpack.c.l.b16 %v226
    %v895 = vunpack.c.h.b16 %v226
    %v896 = vunpack.c.l.b16 %v227
    %v897 = vunpack.c.h.b16 %v227
    %v898 = vunpack.c.l.b16 %v228
    %v899 = vunpack.c.h.b16 %v228
    %v900 = vunpack.c.l.b16 %v229
    %v901 = vunpack.c.h.b16 %v229
    %v902 = vunpack.c.l.b16 %v230
    %v903 = vunpack.c.h.b16 %v230
    %v904 = vunpack.c.l.b16 %v231
    %v905 = vunpack.c.h.b16 %v231
    %v906 = vunpack.c.l.b16 %v232
    %v907 = vunpack.c.h.b16 %v232
    %v908 = vunpack.c.l.b16 %v233
    %v909 = vunpack.c.h.b16 %v233
    %v910 = vunpack.c.l.b16 %v234
    %v911 = vunpack.c.h.b16 %v234
    %v912 = vunpack.c.l.b16 %v235
    %v913 = vunpack.c.h.b16 %v235
    %v914 = vunpack.c.l.b16 %v236
    %v915 = vunpack.c.h.b16 %v236
    %v916 = vunpack.c.l.b16 %v237
    %v917 = vunpack.c.h.b16 %v237
    %v918 = vunpack.c.l.b16 %v238
    %v919 = vunpack.c.h.b16 %v238
    %v920 = vunpack.c.l.b16 %v239
    %v921 = vunpack.c.h.b16 %v239
    %v922 = vunpack.c.l.b16 %v240
    %v923 = vunpack.c.h.b16 %v240
    %v924 = vunpack.c.l.b16 %v241
    %v925 = vunpack.c.h.b16 %v241
    %v926 = vunpack.c.l.b16 %v242
    %v927 = vunpack.c.h.b16 %v242
    %v928 = vunpack.c.l.b16 %v243
    %v929 = vunpack.c.h.b16 %v243
    %v930 = vunpack.c.l.b16 %v244
    %v931 = vunpack.c.h.b16 %v244
    %v932 = vunpack.c.l.b16 %v245
    %v933 = vunpack.c.h.b16 %v245
    %v934 = vunpack.c.l.b16 %v246
    %v935 = vunpack.c.h.b16 %v246
    %v936 = vunpack.c.l.b16 %v247
    %v937 = vunpack.c.h.b16 %v247
    %v938 = vunpack.c.l.b16 %v248
    %v939 = vunpack.c.h.b16 %v248
    %v940 = vunpack.c.l.b16 %v249
    %v941 = vunpack.c.h.b16 %v249
    %v942 = vunpack.c.l.b16 %v250
    %v943 = vunpack.c.h.b16 %v250
    %v944 = vunpack.c.l.b16 %v251
    %v945 = vunpack.c.h.b16 %v251
    %v946 = vunpack.c.l.b16 %v252
    %v947 = vunpack.c.h.b16 %v252
    %v948 = vunpack.c.l.b16 %v253
    %v949 = vunpack.c.h.b16 %v253
    %v950 = vunpack.c.l.b16 %v254
    %v951 = vunpack.c.h.b16 %v254
    %v952 = vunpack.c.l.b16 %v255
    %v953 = vunpack.c.h.b16 %v255
    %v954 = vunpack.c.l.b16 %v256
    %v955 = vunpack.c.h.b16 %v256
    %v956 = vunpack.c.l.b16 %v257
    %v957 = vunpack.c.h.b16 %v257
    %v958 = vunpack.c.l.b16 %v258
    %v959 = vunpack.c.h.b16 %v258
    %v960 = vunpack.c.l.b16 %v259
    %v961 = vunpack.c.h.b16 %v259
    %v962 = vunpack.c.l.b16 %v260
    %v963 = vunpack.c.h.b16 %v260
    %v964 = vunpack.c.l.b16 %v261
    %v965 = vunpack.c.h.b16 %v261
    %v966 = vunpack.c.l.b16 %v262
    %v967 = vunpack.c.h.b16 %v262
    %v968 = vunpack.c.l.b16 %v263
    %v969 = vunpack.c.h.b16 %v263
    %v970 = vunpack.c.l.b16 %v264
    %v971 = vunpack.c.h.b16 %v264
    %v972 = vunpack.c.l.b16 %v265
    %v973 = vunpack.c.h.b16 %v265
    %v974 = vunpack.c.l.b16 %v266
    %v975 = vunpack.c.h.b16 %v266
    %v976 = vunpack.c.l.b16 %v267
    %v977 = vunpack.c.h.b16 %v267
    %v978 = vunpack.c.l.b16 %v268
    %v979 = vunpack.c.h.b16 %v268
    %v980 = vunpack.c.l.b16 %v269
    %v981 = vunpack.c.h.b16 %v269
    %v982 = vunpack.c.l.b16 %v270
    %v983 = vunpack.c.h.b16 %v270
    %v984 = vunpack.c.l.b16 %v271
    %v985 = vunpack.c.h.b16 %v271
    %v986 = vunpack.c.l.b16 %v272
    %v987 = vunpack.c.h.b16 %v272
    %v988 = vunpack.c.l.b16 %v273
    %v989 = vunpack.c.h.b16 %v273
    %v990 = vunpack.c.l.b16 %v274
    %v991 = vunpack.c.h.b16 %v274
    %v992 = vunpack.c.l.b16 %v275
    %v993 = vunpack.c.h.b16 %v275
    %v994 = vunpack.c.l.b16 %v276
    %v995 = vunpack.c.h.b16 %v276
    %v996 = vunpack.c.l.b16 %v277
    %v997 = vunpack.c.h.b16 %v277
    %v998 = vunpack.c.l.b16 %v278
    %v999 = vunpack.c.h.b16 %v278
    %v1000 = vunpack.c.l.b16 %v279
    %v1001 = vunpack.c.h.b16 %v279
    %v1002 = vunpack.c.l.b16 %v280
    %v1003 = vunpack.c.h.b16 %v280
    %v1004 = vunpack.c.l.b16 %v281
    %v1005 = vunpack.c.h.b16 %v281
    %v1006 = vunpack.c.l.b16 %v282
    %v1007 = vunpack.c.h.b16 %v282
    %v1008 = vunpack.c.l.b16 %v283
    %v1009 = vunpack.c.h.b16 %v283
    %v1010 = vunpack.c.l.b16 %v284
    %v1011 = vunpack.c.h.b16 %v284
    %v1012 = vunpack.c.l.b16 %v285
    %v1013 = vunpack.c.h.b16 %v285
    %v1014 = vunpack.c.l.b16 %v286
    %v1015 = vunpack.c.h.b16 %v286
    %v1016 = vunpack.c.l.b16 %v287
    %v1017 = vunpack.c.h.b16 %v287
    %v1018 = vunpack.c.l.b16 %v288
    %v1019 = vunpack.c.h.b16 %v288
    %v1020 = vunpack.c.l.b16 %v289
    %v1021 = vunpack.c.h.b16 %v289
    %v1022 = vunpack.c.l.b16 %v290
    %v1023 = vunpack.c.h.b16 %v290
    %v1024 = vunpack.c.l.b16 %v291
    %v1025 = vunpack.c.h.b16 %v291
    %v1026 = vunpack.c.l.b16 %v292
    %v1027 = vunpack.c.h.b16 %v292
    %v1028 = vunpack.c.l.b16 %v293
    %v1029 = vunpack.c.h.b16 %v293
    %v1030 = vunpack.c.l.b16 %v294
    %v1031 = vunpack.c.h.b16 %v294
    %v1032 = vunpack.c.l.b16 %v295
    %v1033 = vunpack.c.h.b16 %v295
    %v1034 = vunpack.c.l.b16 %v296
    %v1035 = vunpack.c.h.b16 %v296
    %v1036 = vunpack.c.l.b16 %v297
    %v1037 = vunpack.c.h.b16 %v297
    %v1038 = vunpack.c.l.b16 %v298
    %v1039 = vunpack.c.h.b16 %v298
    %v1040 = vunpack.c.l.b16 %v299
    %v1041 = vunpack.c.h.b16 %v299
    %v1042 = vunpack.c.l.b16 %v300
    %v1043 = vunpack.c.h.b16 %v300
    %v1044 = vunpack.c.l.b16 %v301
    %v1045 = vunpack.c.h.b16 %v301
    %v1046 = vunpack.c.l.b16 %v302
    %v1047 = vunpack.c.h.b16 %v302
    %v1048 = vunpack.c.l.b16 %v303
    %v1049 = vunpack.c.h.b16 %v303
    %v1050 = vunpack.c.l.b16 %v304
    %v1051 = vunpack.c.h.b16 %v304
    %v1052 = vunpack.c.l.b16 %v305
    %v1053 = vunpack.c.h.b16 %v305
    %v1054 = vunpack.c.l.b16 %v306
    %v1055 = vunpack.c.h.b16 %v306
    %v1056 = vunpack.c.l.b16 %v307
    %v1057 = vunpack.c.h.b16 %v307
    %v1058 = vunpack.c.l.b16 %v308
    %v1059 = vunpack.c.h.b16 %v308
    %v1060 = vunpack.c.l.b16 %v309
    %v1061 = vunpack.c.h.b16 %v309
    %v1062 = vunpack.c.l.b16 %v310
    %v1063 = vunpack.c.h.b16 %v310
    %v1064 = vunpack.c.l.b16 %v311
    %v1065 = vunpack.c.h.b16 %v311
    %v1066 = vunpack.c.l.b16 %v312
    %v1067 = vunpack.c.h.b16 %v312
    %v1068 = vunpack.c.l.b16 %v313
    %v1069 = vunpack.c.h.b16 %v313
    %v1070 = vunpack.c.l.b16 %v314
    %v1071 = vunpack.c.h.b16 %v314
    %v1072 = vunpack.c.l.b16 %v315
    %v1073 = vunpack.c.h.b16 %v315
    %v1074 = vunpack.c.l.b16 %v316
    %v1075 = vunpack.c.h.b16 %v316
    %v1076 = vunpack.c.l.b16 %v317
    %v1077 = vunpack.c.h.b16 %v317
    %v1078 = vunpack.c.l.b16 %v318
    %v1079 = vunpack.c.h.b16 %v318
    %v1080 = vunpack.c.l.b16 %v319
    %v1081 = vunpack.c.h.b16 %v319
    %v1082 = vunpack.c.l.b16 %v320
    %v1083 = vunpack.c.h.b16 %v320
    %v1084 = vunpack.c.l.b16 %v321
    %v1085 = vunpack.c.h.b16 %v321
    %v1086 = vunpack.c.l.b16 %v322
    %v1087 = vunpack.c.h.b16 %v322
    %v1088 = vunpack.c.l.b16 %v323
    %v1089 = vunpack.c.h.b16 %v323
    %v1090 = vunpack.c.l.b16 %v324
    %v1091 = vunpack.c.h.b16 %v324
    %v1092 = vunpack.c.l.b16 %v325
    %v1093 = vunpack.c.h.b16 %v325
    %v1094 = vunpack.c.l.b16 %v326
    %v1095 = vunpack.c.h.b16 %v326
    %v1096 = vunpack.c.l.b16 %v327
    %v1097 = vunpack.c.h.b16 %v327
    %v1098 = vunpack.c.l.b16 %v328
    %v1099 = vunpack.c.h.b16 %v328
    %v1100 = vunpack.c.l.b16 %v329
    %v1101 = vunpack.c.h.b16 %v329
    %v1102 = vunpack.c.l.b16 %v330
    %v1103 = vunpack.c.h.b16 %v330
    %v1104 = vunpack.c.l.b16 %v331
    %v1105 = vunpack.c.h.b16 %v331
    %v1106 = vunpack.c.l.b16 %v332
    %v1107 = vunpack.c.h.b16 %v332
    %v1108 = vunpack.c.l.b16 %v333
    %v1109 = vunpack.c.h.b16 %v333
    %v1110 = vunpack.c.l.b16 %v334
    %v1111 = vunpack.c.h.b16 %v334
    %v1112 = vunpack.c.l.b16 %v335
    %v1113 = vunpack.c.h.b16 %v335
    %v1114 = vunpack.c.l.b16 %v336
    %v1115 = vunpack.c.h.b16 %v336
    %v1116 = vunpack.c.l.b16 %v337
    %v1117 = vunpack.c.h.b16 %v337
    %v1118 = vunpack.c.l.b16 %v338
    %v1119 = vunpack.c.h.b16 %v338
    %v1120 = vunpack.c.l.b16 %v339
    %v1121 = vunpack.c.h.b16 %v339
    %v1122 = vunpack.c.l.b16 %v340
    %v1123 = vunpack.c.h.b16 %v340
    %v1124 = vunpack.c.l.b16 %v341
    %v1125 = vunpack.c.h.b16 %v341
    %v1126 = vunpack.c.l.b16 %v342
    %v1127 = vunpack.c.h.b16 %v342
    %v1128 = vunpack.c.l.b16 %v343
    %v1129 = vunpack.c.h.b16 %v343
    %v1130 = vunpack.c.l.b16 %v344
    %v1131 = vunpack.c.h.b16 %v344
    %v1132 = vunpack.c.l.b16 %v345
    %v1133 = vunpack.c.h.b16 %v345
    %v1134 = vunpack.c.l.b16 %v346
    %v1135 = vunpack.c.h.b16 %v346
    %v1136 = vunpack.c.l.b16 %v347
    %v1137 = vunpack.c.h.b16 %v347
    %v1138 = vunpack.c.l.b16 %v348
    %v1139 = vunpack.c.h.b16 %v348
    %v1140 = vunpack.c.l.b16 %v349
    %v1141 = vunpack.c.h.b16 %v349
    %v1142 = vunpack.c.l.b16 %v350
    %v1143 = vunpack.c.h.b16 %v350
    %v1144 = vunpack.c.l.b16 %v351
    %v1145 = vunpack.c.h.b16 %v351
    %v1146 = vunpack.c.l.b16 %v352
    %v1147 = vunpack.c.h.b16 %v352
    %v1148 = vunpack.c.l.b16 %v353
    %v1149 = vunpack.c.h.b16 %v353
    %v1150 = vunpack.c.l.b16 %v354
    %v1151 = vunpack.c.h.b16 %v354
    %v1152 = vunpack.c.l.b16 %v355
    %v1153 = vunpack.c.h.b16 %v355
    %v1154 = vunpack.c.l.b16 %v356
    %v1155 = vunpack.c.h.b16 %v356
    %v1156 = vunpack.c.l.b16 %v357
    %v1157 = vunpack.c.h.b16 %v357
    %v1158 = vunpack.c.l.b16 %v358
    %v1159 = vunpack.c.h.b16 %v358
    %v1160 = vunpack.c.l.b16 %v359
    %v1161 = vunpack.c.h.b16 %v359
    %v1162 = vunpack.c.l.b16 %v360
    %v1163 = vunpack.c.h.b16 %v360
    %v1164 = vunpack.c.l.b16 %v361
    %v1165 = vunpack.c.h.b16 %v361
    %v1166 = vunpack.c.l.b16 %v362
    %v1167 = vunpack.c.h.b16 %v362
    %v1168 = vunpack.c.l.b16 %v363
    %v1169 = vunpack.c.h.b16 %v363
    %v1170 = vunpack.c.l.b16 %v364
    %v1171 = vunpack.c.h.b16 %v364
    %v1172 = vunpack.c.l.b16 %v365
    %v1173 = vunpack.c.h.b16 %v365
    %v1174 = vunpack.c.l.b16 %v366
    %v1175 = vunpack.c.h.b16 %v366
    %v1176 = vunpack.c.l.b16 %v367
    %v1177 = vunpack.c.h.b16 %v367
    %v1178 = vunpack.c.l.b16 %v368
    %v1179 = vunpack.c.h.b16 %v368
    %v1180 = vunpack.c.l.b16 %v369
    %v1181 = vunpack.c.h.b16 %v369
    %v1182 = vunpack.c.l.b16 %v370
    %v1183 = vunpack.c.h.b16 %v370
    %v1184 = vunpack.c.l.b16 %v371
    %v1185 = vunpack.c.h.b16 %v371
    %v1186 = vunpack.c.l.b16 %v372
    %v1187 = vunpack.c.h.b16 %v372
    %v1188 = vunpack.c.l.b16 %v373
    %v1189 = vunpack.c.h.b16 %v373
    %v1190 = vunpack.c.l.b16 %v374
    %v1191 = vunpack.c.h.b16 %v374
    %v1192 = vunpack.c.l.b16 %v375
    %v1193 = vunpack.c.h.b16 %v375
    %v1194 = vunpack.c.l.b16 %v376
    %v1195 = vunpack.c.h.b16 %v376
    %v1196 = vunpack.c.l.b16 %v377
    %v1197 = vunpack.c.h.b16 %v377
    %v1198 = vunpack.c.l.b16 %v378
    %v1199 = vunpack.c.h.b16 %v378
    %v1200 = vunpack.c.l.b16 %v379
    %v1201 = vunpack.c.h.b16 %v379
    %v1202 = vunpack.c.l.b16 %v380
    %v1203 = vunpack.c.h.b16 %v380
    %v1204 = vunpack.c.l.b16 %v381
    %v1205 = vunpack.c.h.b16 %v381
    %v1206 = vunpack.c.l.b16 %v382
    %v1207 = vunpack.c.h.b16 %v382
    %v1208 = vunpack.c.l.b16 %v383
    %v1209 = vunpack.c.h.b16 %v383
    %v1210 = vunpack.c.l.b16 %v384
    %v1211 = vunpack.c.h.b16 %v384
    %v1212 = vunpack.c.l.b16 %v385
    %v1213 = vunpack.c.h.b16 %v385
    %v1214 = vunpack.c.l.b16 %v386
    %v1215 = vunpack.c.h.b16 %v386
    %v1216 = vunpack.c.l.b16 %v387
    %v1217 = vunpack.c.h.b16 %v387
    %v1218 = vpack.c.b16 %v710, %v706
    %v1219 = vpack.c.b16 %v711, %v707
    %v1220 = vpack.c.b16 %v712, %v708
    %v1221 = vpack.c.b16 %v713, %v709
    %v1222 = vpack.c.b16 %v718, %v714
    %v1223 = vpack.c.b16 %v719, %v715
    %v1224 = vpack.c.b16 %v720, %v716
    %v1225 = vpack.c.b16 %v721, %v717
    %v1226 = vpack.c.b16 %v726, %v722
    %v1227 = vpack.c.b16 %v727, %v723
    %v1228 = vpack.c.b16 %v728, %v724
    %v1229 = vpack.c.b16 %v729, %v725
    %v1230 = vpack.c.b16 %v734, %v730
    %v1231 = vpack.c.b16 %v735, %v731
    %v1232 = vpack.c.b16 %v736, %v732
    %v1233 = vpack.c.b16 %v737, %v733
    %v1234 = vpack.c.b16 %v742, %v738
    %v1235 = vpack.c.b16 %v743, %v739
    %v1236 = vpack.c.b16 %v744, %v740
    %v1237 = vpack.c.b16 %v745, %v741
    %v1238 = vpack.c.b16 %v750, %v746
    %v1239 = vpack.c.b16 %v751, %v747
    %v1240 = vpack.c.b16 %v752, %v748
    %v1241 = vpack.c.b16 %v753, %v749
    %v1242 = vpack.c.b16 %v758, %v754
    %v1243 = vpack.c.b16 %v759, %v755
    %v1244 = vpack.c.b16 %v760, %v756
    %v1245 = vpack.c.b16 %v761, %v757
    %v1246 = vpack.c.b16 %v766, %v762
    %v1247 = vpack.c.b16 %v767, %v763
    %v1248 = vpack.c.b16 %v768, %v764
    %v1249 = vpack.c.b16 %v769, %v765
    %v1250 = vpack.c.b16 %v774, %v770
    %v1251 = vpack.c.b16 %v775, %v771
    %v1252 = vpack.c.b16 %v776, %v772
    %v1253 = vpack.c.b16 %v777, %v773
    %v1254 = vpack.c.b16 %v782, %v778
    %v1255 = vpack.c.b16 %v783, %v779
    %v1256 = vpack.c.b16 %v784, %v780
    %v1257 = vpack.c.b16 %v785, %v781
    %v1258 = vpack.c.b16 %v790, %v786
    %v1259 = vpack.c.b16 %v791, %v787
    %v1260 = vpack.c.b16 %v792, %v788
    %v1261 = vpack.c.b16 %v793, %v789
    %v1262 = vpack.c.b16 %v798, %v794
    %v1263 = vpack.c.b16 %v799, %v795
    %v1264 = vpack.c.b16 %v800, %v796
    %v1265 = vpack.c.b16 %v801, %v797
    %v1266 = vpack.c.b16 %v806, %v802
    %v1267 = vpack.c.b16 %v807, %v803
    %v1268 = vpack.c.b16 %v808, %v804
    %v1269 = vpack.c.b16 %v809, %v805
    %v1270 = vpack.c.b16 %v814, %v810
    %v1271 = vpack.c.b16 %v815, %v811
    %v1272 = vpack.c.b16 %v816, %v812
    %v1273 = vpack.c.b16 %v817, %v813
    %v1274 = vpack.c.b16 %v822, %v818
    %v1275 = vpack.c.b16 %v823, %v819
    %v1276 = vpack.c.b16 %v824, %v820
    %v1277 = vpack.c.b16 %v825, %v821
    %v1278 = vpack.c.b16 %v830, %v826
    %v1279 = vpack.c.b16 %v831, %v827
    %v1280 = vpack.c.b16 %v832, %v828
    %v1281 = vpack.c.b16 %v833, %v829
    %v1282 = vpack.c.b16 %v838, %v834
    %v1283 = vpack.c.b16 %v839, %v835
    %v1284 = vpack.c.b16 %v840, %v836
    %v1285 = vpack.c.b16 %v841, %v837
    %v1286 = vpack.c.b16 %v846, %v842
    %v1287 = vpack.c.b16 %v847, %v843
    %v1288 = vpack.c.b16 %v848, %v844
    %v1289 = vpack.c.b16 %v849, %v845
    %v1290 = vpack.c.b16 %v854, %v850
    %v1291 = vpack.c.b16 %v855, %v851
    %v1292 = vpack.c.b16 %v856, %v852
    %v1293 = vpack.c.b16 %v857, %v853
    %v1294 = vpack.c.b16 %v862, %v858
    %v1295 = vpack.c.b16 %v863, %v859
    %v1296 = vpack.c.b16 %v864, %v860
    %v1297 = vpack.c.b16 %v865, %v861
    %v1298 = vpack.c.b16 %v870, %v866
    %v1299 = vpack.c.b16 %v871, %v867
    %v1300 = vpack.c.b16 %v872, %v868
    %v1301 = vpack.c.b16 %v873, %v869
    %v1302 = vpack.c.b16 %v878, %v874
    %v1303 = vpack.c.b16 %v879, %v875
    %v1304 = vpack.c.b16 %v880, %v876
    %v1305 = vpack.c.b16 %v881, %v877
    %v1306 = vpack.c.b16 %v886, %v882
    %v1307 = vpack.c.b16 %v887, %v883
    %v1308 = vpack.c.b16 %v888, %v884
    %v1309 = vpack.c.b16 %v889, %v885
    %v1310 = vpack.c.b16 %v894, %v890
    %v1311 = vpack.c.b16 %v895, %v891
    %v1312 = vpack.c.b16 %v896, %v892
    %v1313 = vpack.c.b16 %v897, %v893
    %v1314 = vpack.c.b16 %v902, %v898
    %v1315 = vpack.c.b16 %v903, %v899
    %v1316 = vpack.c.b16 %v904, %v900
    %v1317 = vpack.c.b16 %v905, %v901
    %v1318 = vpack.c.b16 %v910, %v906
    %v1319 = vpack.c.b16 %v911, %v907
    %v1320 = vpack.c.b16 %v912, %v908
    %v1321 = vpack.c.b16 %v913, %v909
    %v1322 = vpack.c.b16 %v918, %v914
    %v1323 = vpack.c.b16 %v919, %v915
    %v1324 = vpack.c.b16 %v920, %v916
    %v1325 = vpack.c.b16 %v921, %v917
    %v1326 = vpack.c.b16 %v926, %v922
    %v1327 = vpack.c.b16 %v927, %v923
    %v1328 = vpack.c.b16 %v928, %v924
    %v1329 = vpack.c.b16 %v929, %v925
    %v1330 = vpack.c.b16 %v934, %v930
    %v1331 = vpack.c.b16 %v935, %v931
    %v1332 = vpack.c.b16 %v936, %v932
    %v1333 = vpack.c.b16 %v937, %v933
    %v1334 = vpack.c.b16 %v942, %v938
    %v1335 = vpack.c.b16 %v943, %v939
    %v1336 = vpack.c.b16 %v944, %v940
    %v1337 = vpack.c.b16 %v945, %v941
    %v1338 = vpack.c.b16 %v950, %v946
    %v1339 = vpack.c.b16 %v951, %v947
    %v1340 = vpack.c.b16 %v952, %v948
    %v1341 = vpack.c.b16 %v953, %v949
    %v1342 = vpack.c.b16 %v958, %v954
    %v1343 = vpack.c.b16 %v959, %v955
    %v1344 = vpack.c.b16 %v960, %v956
    %v1345 = vpack.c.b16 %v961, %v957
    %v1346 = vpack.c.b16 %v966, %v962
    %v1347 = vpack.c.b16 %v967, %v963
    %v1348 = vpack.c.b16 %v968, %v964
    %v1349 = vpack.c.b16 %v969, %v965
    %v1350 = vpack.c.b16 %v974, %v970
    %v1351 = vpack.c.b16 %v975, %v971
    %v1352 = vpack.c.b16 %v976, %v972
    %v1353 = vpack.c.b16 %v977, %v973
    %v1354 = vpack.c.b16 %v982, %v978
    %v1355 = vpack.c.b16 %v983, %v979
    %v1356 = vpack.c.b16 %v984, %v980
    %v1357 = vpack.c.b16 %v985, %v981
    %v1358 = vpack.c.b16 %v990, %v986
    %v1359 = vpack.c.b16 %v991, %v987
    %v1360 = vpack.c.b16 %v992, %v988
    %v1361 = vpack.c.b16 %v993, %v989
    %v1362 = vpack.c.b16 %v998, %v994
    %v1363 = vpack.c.b16 %v999, %v995
    %v1364 = vpack.c.b16 %v1000, %v996
    %v1365 = vpack.c.b16 %v1001, %v997
    %v1366 = vpack.c.b16 %v1006, %v1002
    %v1367 = vpack.c.b16 %v1007, %v1003
    %v1368 = vpack.c.b16 %v1008, %v1004
    %v1369 = vpack.c.b16 %v1009, %v1005
    %v1370 = vpack.c.b16 %v1014, %v1010
    %v1371 = vpack.c.b16 %v1015, %v1011
    %v1372 = vpack.c.b16 %v1016, %v1012
    %v1373 = vpack.c.b16 %v1017, %v1013
    %v1374 = vpack.c.b16 %v1022, %v1018
    %v1375 = vpack.c.b16 %v1023, %v1019
    %v1376 = vpack.c.b16 %v1024, %v1020
    %v1377 = vpack.c.b16 %v1025, %v1021
    %v1378 = vpack.c.b16 %v1030, %v1026
    %v1379 = vpack.c.b16 %v1031, %v1027
    %v1380 = vpack.c.b16 %v1032, %v1028
    %v1381 = vpack.c.b16 %v1033, %v1029
    %v1382 = vpack.c.b16 %v1038, %v1034
    %v1383 = vpack.c.b16 %v1039, %v1035
    %v1384 = vpack.c.b16 %v1040, %v1036
    %v1385 = vpack.c.b16 %v1041, %v1037
    %v1386 = vpack.c.b16 %v1046, %v1042
    %v1387 = vpack.c.b16 %v1047, %v1043
    %v1388 = vpack.c.b16 %v1048, %v1044
    %v1389 = vpack.c.b16 %v1049, %v1045
    %v1390 = vpack.c.b16 %v1054, %v1050
    %v1391 = vpack.c.b16 %v1055, %v1051
    %v1392 = vpack.c.b16 %v1056, %v1052
    %v1393 = vpack.c.b16 %v1057, %v1053
    %v1394 = vpack.c.b16 %v1062, %v1058
    %v1395 = vpack.c.b16 %v1063, %v1059
    %v1396 = vpack.c.b16 %v1064, %v1060
    %v1397 = vpack.c.b16 %v1065, %v1061
    %v1398 = vpack.c.b16 %v1070, %v1066
    %v1399 = vpack.c.b16 %v1071, %v1067
    %v1400 = vpack.c.b16 %v1072, %v1068
    %v1401 = vpack.c.b16 %v1073, %v1069
    %v1402 = vpack.c.b16 %v1078, %v1074
    %v1403 = vpack.c.b16 %v1079, %v1075
    %v1404 = vpack.c.b16 %v1080, %v1076
    %v1405 = vpack.c.b16 %v1081, %v1077
    %v1406 = vpack.c.b16 %v1086, %v1082
    %v1407 = vpack.c.b16 %v1087, %v1083
    %v1408 = vpack.c.b16 %v1088, %v1084
    %v1409 = vpack.c.b16 %v1089, %v1085
    %v1410 = vpack.c.b16 %v1094, %v1090
    %v1411 = vpack.c.b16 %v1095, %v1091
    %v1412 = vpack.c.b16 %v1096, %v1092
    %v1413 = vpack.c.b16 %v1097, %v1093
    %v1414 = vpack.c.b16 %v1102, %v1098
    %v1415 = vpack.c.b16 %v1103, %v1099
    %v1416 = vpack.c.b16 %v1104, %v1100
    %v1417 = vpack.c.b16 %v1105, %v1101
    %v1418 = vpack.c.b16 %v1110, %v1106
    %v1419 = vpack.c.b16 %v1111, %v1107
    %v1420 = vpack.c.b16 %v1112, %v1108
    %v1421 = vpack.c.b16 %v1113, %v1109
    %v1422 = vpack.c.b16 %v1118, %v1114
    %v1423 = vpack.c.b16 %v1119, %v1115
    %v1424 = vpack.c.b16 %v1120, %v1116
    %v1425 = vpack.c.b16 %v1121, %v1117
    %v1426 = vpack.c.b16 %v1126, %v1122
    %v1427 = vpack.c.b16 %v1127, %v1123
    %v1428 = vpack.c.b16 %v1128, %v1124
    %v1429 = vpack.c.b16 %v1129, %v1125
    %v1430 = vpack.c.b16 %v1134, %v1130
    %v1431 = vpack.c.b16 %v1135, %v1131
    %v1432 = vpack.c.b16 %v1136, %v1132
    %v1433 = vpack.c.b16 %v1137, %v1133
    %v1434 = vpack.c.b16 %v1142, %v1138
    %v1435 = vpack.c.b16 %v1143, %v1139
    %v1436 = vpack.c.b16 %v1144, %v1140
    %v1437 = vpack.c.b16 %v1145, %v1141
    %v1438 = vpack.c.b16 %v1150, %v1146
    %v1439 = vpack.c.b16 %v1151, %v1147
    %v1440 = vpack.c.b16 %v1152, %v1148
    %v1441 = vpack.c.b16 %v1153, %v1149
    %v1442 = vpack.c.b16 %v1158, %v1154
    %v1443 = vpack.c.b16 %v1159, %v1155
    %v1444 = vpack.c.b16 %v1160, %v1156
    %v1445 = vpack.c.b16 %v1161, %v1157
    %v1446 = vpack.c.b16 %v1166, %v1162
    %v1447 = vpack.c.b16 %v1167, %v1163
    %v1448 = vpack.c.b16 %v1168, %v1164
    %v1449 = vpack.c.b16 %v1169, %v1165
    %v1450 = vpack.c.b16 %v1174, %v1170
    %v1451 = vpack.c.b16 %v1175, %v1171
    %v1452 = vpack.c.b16 %v1176, %v1172
    %v1453 = vpack.c.b16 %v1177, %v1173
    %v1454 = vpack.c.b16 %v1182, %v1178
    %v1455 = vpack.c.b16 %v1183, %v1179
    %v1456 = vpack.c.b16 %v1184, %v1180
    %v1457 = vpack.c.b16 %v1185, %v1181
    %v1458 = vpack.c.b16 %v1190, %v1186
    %v1459 = vpack.c.b16 %v1191, %v1187
    %v1460 = vpack.c.b16 %v1192, %v1188
    %v1461 = vpack.c.b16 %v1193, %v1189
    %v1462 = vpack.c.b16 %v1198, %v1194
    %v1463 = vpack.c.b16 %v1199, %v1195
    %v1464 = vpack.c.b16 %v1200, %v1196
    %v1465 = vpack.c.b16 %v1201, %v1197
    %v1466 = vpack.c.b16 %v1206, %v1202
    %v1467 = vpack.c.b16 %v1207, %v1203
    %v1468 = vpack.c.b16 %v1208, %v1204
    %v1469 = vpack.c.b16 %v1209, %v1205
    %v1470 = vpack.c.b16 %v1214, %v1210
    %v1471 = vpack.c.b16 %v1215, %v1211
    %v1472 = vpack.c.b16 %v1216, %v1212
    %v1473 = vpack.c.b16 %v1217, %v1213
    %1730 = vmatprep.subr.bf16.mxu0 %v1219
    %1731 = vmatpush1.bf16.msra.mxu0 %v1218
    %1732 = vmatprep.subr.bf16.mxu0 %v1223
    %1733 = vmatpush1.bf16.msra.mxu0 %v1222
    %1734 = vmatprep.subr.bf16.mxu0 %v1227
    %1735 = vmatpush1.bf16.msra.mxu0 %v1226
    %1736 = vmatprep.subr.bf16.mxu0 %v1231
    %1737 = vmatpush1.bf16.msra.mxu0 %v1230
    %1738 = vmatprep.subr.bf16.mxu0 %v1235
    %1739 = vmatpush1.bf16.msra.mxu0 %v1234
    %1740 = vmatprep.subr.bf16.mxu0 %v1239
    %1741 = vmatpush1.bf16.msra.mxu0 %v1238
    %1742 = vmatprep.subr.bf16.mxu0 %v1243
    %1743 = vmatpush1.bf16.msra.mxu0 %v1242
    %1744 = vmatprep.subr.bf16.mxu0 %v1247
    %1745 = vmatpush1.bf16.msra.mxu0 %v1246
    %1746 = vmatprep.subr.bf16.mxu0 %v1251
    %1747 = vmatpush1.bf16.msra.mxu0 %v1250
    %1748 = vmatprep.subr.bf16.mxu0 %v1255
    %1749 = vmatpush1.bf16.msra.mxu0 %v1254
    %1750 = vmatprep.subr.bf16.mxu0 %v1259
    %1751 = vmatpush1.bf16.msra.mxu0 %v1258
    %1752 = vmatprep.subr.bf16.mxu0 %v1263
    %1753 = vmatpush1.bf16.msra.mxu0 %v1262
    %1754 = vmatprep.subr.bf16.mxu0 %v1267
    %1755 = vmatpush1.bf16.msra.mxu0 %v1266
    %1756 = vmatprep.subr.bf16.mxu0 %v1271
    %1757 = vmatpush1.bf16.msra.mxu0 %v1270
    %1758 = vmatprep.subr.bf16.mxu0 %v1275
    %1759 = vmatpush1.bf16.msra.mxu0 %v1274
    %1760 = vmatprep.subr.bf16.mxu0 %v1279
    %1761 = vmatpush1.bf16.msra.mxu0 %v1278
    %1762 = vmatprep.mubr.bf16.mxu0 %v435
    %1763 = vmatmul.mubr.bf16.gmra.mrb[0].mxu0 %v434
    %v1764 = vpop.f32.mrb[0].mxu0
    %v1765 = vadd.f32 %v393, %v1764
    %v1766 = vpop.f32.mrb[0].mxu0
    %v1767 = vadd.f32 %v397, %v1766
    %v1768 = vpop.f32.mrb[0].mxu0
    %v1769 = vadd.f32 %v393, %v1768
    %v1770 = vpop.f32.mrb[0].mxu0
    %v1771 = vadd.f32 %v397, %v1770
    %1772 = vdwg.mxu0
    %1773 = vmatprep.subr.bf16.mxu0 %v1283
    %1774 = vmatpush1.bf16.msra.mxu0 %v1282
    %1775 = vmatprep.subr.bf16.mxu0 %v1287
    %1776 = vmatpush1.bf16.msra.mxu0 %v1286
    %1777 = vmatprep.subr.bf16.mxu0 %v1291
    %1778 = vmatpush1.bf16.msra.mxu0 %v1290
    %1779 = vmatprep.subr.bf16.mxu0 %v1295
    %1780 = vmatpush1.bf16.msra.mxu0 %v1294
    %1781 = vmatprep.subr.bf16.mxu0 %v1299
    %1782 = vmatpush1.bf16.msra.mxu0 %v1298
    %1783 = vmatprep.subr.bf16.mxu0 %v1303
    %1784 = vmatpush1.bf16.msra.mxu0 %v1302
    %1785 = vmatprep.subr.bf16.mxu0 %v1307
    %1786 = vmatpush1.bf16.msra.mxu0 %v1306
    %1787 = vmatprep.subr.bf16.mxu0 %v1311
    %1788 = vmatpush1.bf16.msra.mxu0 %v1310
    %1789 = vmatprep.subr.bf16.mxu0 %v1315
    %1790 = vmatpush1.bf16.msra.mxu0 %v1314
    %1791 = vmatprep.subr.bf16.mxu0 %v1319
    %1792 = vmatpush1.bf16.msra.mxu0 %v1318
    %1793 = vmatprep.subr.bf16.mxu0 %v1323
    %1794 = vmatpush1.bf16.msra.mxu0 %v1322
    %1795 = vmatprep.subr.bf16.mxu0 %v1327
    %1796 = vmatpush1.bf16.msra.mxu0 %v1326
    %1797 = vmatprep.subr.bf16.mxu0 %v1331
    %1798 = vmatpush1.bf16.msra.mxu0 %v1330
    %1799 = vmatprep.subr.bf16.mxu0 %v1335
    %1800 = vmatpush1.bf16.msra.mxu0 %v1334
    %1801 = vmatprep.subr.bf16.mxu0 %v1339
    %1802 = vmatpush1.bf16.msra.mxu0 %v1338
    %1803 = vmatprep.subr.bf16.mxu0 %v1343
    %1804 = vmatpush1.bf16.msra.mxu0 %v1342
    %1805 = vmatprep.mubr.bf16.mxu0 %v437
    %1806 = vmatmul.mubr.bf16.gmra.mrb[0].mxu0 %v436
    %v1807 = vpop.f32.mrb[0].mxu0
    %v1808 = vadd.f32 %v1765, %v1807
    %v1809 = vpop.f32.mrb[0].mxu0
    %v1810 = vadd.f32 %v1767, %v1809
    %v1811 = vpop.f32.mrb[0].mxu0
    %v1812 = vadd.f32 %v1769, %v1811
    %v1813 = vpop.f32.mrb[0].mxu0
    %v1814 = vadd.f32 %v1771, %v1813
    %1815 = vdwg.mxu0
    %1816 = vmatprep.subr.bf16.mxu0 %v1347
    %1817 = vmatpush1.bf16.msra.mxu0 %v1346
    %1818 = vmatprep.subr.bf16.mxu0 %v1351
    %1819 = vmatpush1.bf16.msra.mxu0 %v1350
    %1820 = vmatprep.subr.bf16.mxu0 %v1355
    %1821 = vmatpush1.bf16.msra.mxu0 %v1354
    %1822 = vmatprep.subr.bf16.mxu0 %v1359
    %1823 = vmatpush1.bf16.msra.mxu0 %v1358
    %1824 = vmatprep.subr.bf16.mxu0 %v1363
    %1825 = vmatpush1.bf16.msra.mxu0 %v1362
    %1826 = vmatprep.subr.bf16.mxu0 %v1367
    %1827 = vmatpush1.bf16.msra.mxu0 %v1366
    %1828 = vmatprep.subr.bf16.mxu0 %v1371
    %1829 = vmatpush1.bf16.msra.mxu0 %v1370
    %1830 = vmatprep.subr.bf16.mxu0 %v1375
    %1831 = vmatpush1.bf16.msra.mxu0 %v1374
    %1832 = vmatprep.subr.bf16.mxu0 %v1379
    %1833 = vmatpush1.bf16.msra.mxu0 %v1378
    %1834 = vmatprep.subr.bf16.mxu0 %v1383
    %1835 = vmatpush1.bf16.msra.mxu0 %v1382
    %1836 = vmatprep.subr.bf16.mxu0 %v1387
    %1837 = vmatpush1.bf16.msra.mxu0 %v1386
    %1838 = vmatprep.subr.bf16.mxu0 %v1391
    %1839 = vmatpush1.bf16.msra.mxu0 %v1390
    %1840 = vmatprep.subr.bf16.mxu0 %v1395
    %1841 = vmatpush1.bf16.msra.mxu0 %v1394
    %1842 = vmatprep.subr.bf16.mxu0 %v1399
    %1843 = vmatpush1.bf16.msra.mxu0 %v1398
    %1844 = vmatprep.subr.bf16.mxu0 %v1403
    %1845 = vmatpush1.bf16.msra.mxu0 %v1402
    %1846 = vmatprep.subr.bf16.mxu0 %v1407
    %1847 = vmatpush1.bf16.msra.mxu0 %v1406
    %1848 = vmatprep.mubr.bf16.mxu0 %v439
    %1849 = vmatmul.mubr.bf16.gmra.mrb[0].mxu0 %v438
    %v1850 = vpop.f32.mrb[0].mxu0
    %v1851 = vadd.f32 %v1808, %v1850
    %v1852 = vpop.f32.mrb[0].mxu0
    %v1853 = vadd.f32 %v1810, %v1852
    %v1854 = vpop.f32.mrb[0].mxu0
    %v1855 = vadd.f32 %v1812, %v1854
    %v1856 = vpop.f32.mrb[0].mxu0
    %v1857 = vadd.f32 %v1814, %v1856
    %1858 = vdwg.mxu0
    %1859 = vmatprep.subr.bf16.mxu0 %v1411
    %1860 = vmatpush1.bf16.msra.mxu0 %v1410
    %1861 = vmatprep.subr.bf16.mxu0 %v1415
    %1862 = vmatpush1.bf16.msra.mxu0 %v1414
    %1863 = vmatprep.subr.bf16.mxu0 %v1419
    %1864 = vmatpush1.bf16.msra.mxu0 %v1418
    %1865 = vmatprep.subr.bf16.mxu0 %v1423
    %1866 = vmatpush1.bf16.msra.mxu0 %v1422
    %1867 = vmatprep.subr.bf16.mxu0 %v1427
    %1868 = vmatpush1.bf16.msra.mxu0 %v1426
    %1869 = vmatprep.subr.bf16.mxu0 %v1431
    %1870 = vmatpush1.bf16.msra.mxu0 %v1430
    %1871 = vmatprep.subr.bf16.mxu0 %v1435
    %1872 = vmatpush1.bf16.msra.mxu0 %v1434
    %1873 = vmatprep.subr.bf16.mxu0 %v1439
    %1874 = vmatpush1.bf16.msra.mxu0 %v1438
    %1875 = vmatprep.subr.bf16.mxu0 %v1443
    %1876 = vmatpush1.bf16.msra.mxu0 %v1442
    %1877 = vmatprep.subr.bf16.mxu0 %v1447
    %1878 = vmatpush1.bf16.msra.mxu0 %v1446
    %1879 = vmatprep.subr.bf16.mxu0 %v1451
    %1880 = vmatpush1.bf16.msra.mxu0 %v1450
    %1881 = vmatprep.subr.bf16.mxu0 %v1455
    %1882 = vmatpush1.bf16.msra.mxu0 %v1454
    %1883 = vmatprep.subr.bf16.mxu0 %v1459
    %1884 = vmatpush1.bf16.msra.mxu0 %v1458
    %1885 = vmatprep.subr.bf16.mxu0 %v1463
    %1886 = vmatpush1.bf16.msra.mxu0 %v1462
    %1887 = vmatprep.subr.bf16.mxu0 %v1467
    %1888 = vmatpush1.bf16.msra.mxu0 %v1466
    %1889 = vmatprep.subr.bf16.mxu0 %v1471
    %1890 = vmatpush1.bf16.msra.mxu0 %v1470
    %1891 = vmatprep.mubr.bf16.mxu0 %v441
    %1892 = vmatmul.mubr.bf16.gmra.mrb[0].mxu0 %v440
    %v1893 = vpop.f32.mrb[0].mxu0
    %v1894 = vadd.f32 %v1851, %v1893
    %v1895 = vpop.f32.mrb[0].mxu0
    %v1896 = vadd.f32 %v1853, %v1895
    %v1897 = vpop.f32.mrb[0].mxu0
    %v1898 = vadd.f32 %v1855, %v1897
    %v1899 = vpop.f32.mrb[0].mxu0
    %v1900 = vadd.f32 %v1857, %v1899
    %1901 = vdwg.mxu0
    %1902 = vmatprep.subr.bf16.mxu0 %v1221
    %1903 = vmatpush1.bf16.msra.mxu0 %v1220
    %1904 = vmatprep.subr.bf16.mxu0 %v1225
    %1905 = vmatpush1.bf16.msra.mxu0 %v1224
    %1906 = vmatprep.subr.bf16.mxu0 %v1229
    %1907 = vmatpush1.bf16.msra.mxu0 %v1228
    %1908 = vmatprep.subr.bf16.mxu0 %v1233
    %1909 = vmatpush1.bf16.msra.mxu0 %v1232
    %1910 = vmatprep.subr.bf16.mxu0 %v1237
    %1911 = vmatpush1.bf16.msra.mxu0 %v1236
    %1912 = vmatprep.subr.bf16.mxu0 %v1241
    %1913 = vmatpush1.bf16.msra.mxu0 %v1240
    %1914 = vmatprep.subr.bf16.mxu0 %v1245
    %1915 = vmatpush1.bf16.msra.mxu0 %v1244
    %1916 = vmatprep.subr.bf16.mxu0 %v1249
    %1917 = vmatpush1.bf16.msra.mxu0 %v1248
    %1918 = vmatprep.subr.bf16.mxu0 %v1253
    %1919 = vmatpush1.bf16.msra.mxu0 %v1252
    %1920 = vmatprep.subr.bf16.mxu0 %v1257
    %1921 = vmatpush1.bf16.msra.mxu0 %v1256
    %1922 = vmatprep.subr.bf16.mxu0 %v1261
    %1923 = vmatpush1.bf16.msra.mxu0 %v1260
    %1924 = vmatprep.subr.bf16.mxu0 %v1265
    %1925 = vmatpush1.bf16.msra.mxu0 %v1264
    %1926 = vmatprep.subr.bf16.mxu0 %v1269
    %1927 = vmatpush1.bf16.msra.mxu0 %v1268
    %1928 = vmatprep.subr.bf16.mxu0 %v1273
    %1929 = vmatpush1.bf16.msra.mxu0 %v1272
    %1930 = vmatprep.subr.bf16.mxu0 %v1277
    %1931 = vmatpush1.bf16.msra.mxu0 %v1276
    %1932 = vmatprep.subr.bf16.mxu0 %v1281
    %1933 = vmatpush1.bf16.msra.mxu0 %v1280
    %1934 = vmatprep.mubr.bf16.mxu0 %v435
    %1935 = vmatmul.mubr.bf16.gmra.mrb[0].mxu0 %v434
    %v1936 = vpop.f32.mrb[0].mxu0
    %v1937 = vadd.f32 %v401, %v1936
    %v1938 = vpop.f32.mrb[0].mxu0
    %v1939 = vadd.f32 %v405, %v1938
    %v1940 = vpop.f32.mrb[0].mxu0
    %v1941 = vadd.f32 %v401, %v1940
    %v1942 = vpop.f32.mrb[0].mxu0
    %v1943 = vadd.f32 %v405, %v1942
    %1944 = vdwg.mxu0
    %1945 = vmatprep.subr.bf16.mxu0 %v1285
    %1946 = vmatpush1.bf16.msra.mxu0 %v1284
    %1947 = vmatprep.subr.bf16.mxu0 %v1289
    %1948 = vmatpush1.bf16.msra.mxu0 %v1288
    %1949 = vmatprep.subr.bf16.mxu0 %v1293
    %1950 = vmatpush1.bf16.msra.mxu0 %v1292
    %1951 = vmatprep.subr.bf16.mxu0 %v1297
    %1952 = vmatpush1.bf16.msra.mxu0 %v1296
    %1953 = vmatprep.subr.bf16.mxu0 %v1301
    %1954 = vmatpush1.bf16.msra.mxu0 %v1300
    %1955 = vmatprep.subr.bf16.mxu0 %v1305
    %1956 = vmatpush1.bf16.msra.mxu0 %v1304
    %1957 = vmatprep.subr.bf16.mxu0 %v1309
    %1958 = vmatpush1.bf16.msra.mxu0 %v1308
    %1959 = vmatprep.subr.bf16.mxu0 %v1313
    %1960 = vmatpush1.bf16.msra.mxu0 %v1312
    %1961 = vmatprep.subr.bf16.mxu0 %v1317
    %1962 = vmatpush1.bf16.msra.mxu0 %v1316
    %1963 = vmatprep.subr.bf16.mxu0 %v1321
    %1964 = vmatpush1.bf16.msra.mxu0 %v1320
    %1965 = vmatprep.subr.bf16.mxu0 %v1325
    %1966 = vmatpush1.bf16.msra.mxu0 %v1324
    %1967 = vmatprep.subr.bf16.mxu0 %v1329
    %1968 = vmatpush1.bf16.msra.mxu0 %v1328
    %1969 = vmatprep.subr.bf16.mxu0 %v1333
    %1970 = vmatpush1.bf16.msra.mxu0 %v1332
    %1971 = vmatprep.subr.bf16.mxu0 %v1337
    %1972 = vmatpush1.bf16.msra.mxu0 %v1336
    %1973 = vmatprep.subr.bf16.mxu0 %v1341
    %1974 = vmatpush1.bf16.msra.mxu0 %v1340
    %1975 = vmatprep.subr.bf16.mxu0 %v1345
    %1976 = vmatpush1.bf16.msra.mxu0 %v1344
    %1977 = vmatprep.mubr.bf16.mxu0 %v437
    %1978 = vmatmul.mubr.bf16.gmra.mrb[0].mxu0 %v436
    %v1979 = vpop.f32.mrb[0].mxu0
    %v1980 = vadd.f32 %v1937, %v1979
    %v1981 = vpop.f32.mrb[0].mxu0
    %v1982 = vadd.f32 %v1939, %v1981
    %v1983 = vpop.f32.mrb[0].mxu0
    %v1984 = vadd.f32 %v1941, %v1983
    %v1985 = vpop.f32.mrb[0].mxu0
    %v1986 = vadd.f32 %v1943, %v1985
    %1987 = vdwg.mxu0
    %1988 = vmatprep.subr.bf16.mxu0 %v1349
    %1989 = vmatpush1.bf16.msra.mxu0 %v1348
    %1990 = vmatprep.subr.bf16.mxu0 %v1353
    %1991 = vmatpush1.bf16.msra.mxu0 %v1352
    %1992 = vmatprep.subr.bf16.mxu0 %v1357
    %1993 = vmatpush1.bf16.msra.mxu0 %v1356
    %1994 = vmatprep.subr.bf16.mxu0 %v1361
    %1995 = vmatpush1.bf16.msra.mxu0 %v1360
    %1996 = vmatprep.subr.bf16.mxu0 %v1365
    %1997 = vmatpush1.bf16.msra.mxu0 %v1364
    %1998 = vmatprep.subr.bf16.mxu0 %v1369
    %1999 = vmatpush1.bf16.msra.mxu0 %v1368
    %2000 = vmatprep.subr.bf16.mxu0 %v1373
    %2001 = vmatpush1.bf16.msra.mxu0 %v1372
    %2002 = vmatprep.subr.bf16.mxu0 %v1377
    %2003 = vmatpush1.bf16.msra.mxu0 %v1376
    %2004 = vmatprep.subr.bf16.mxu0 %v1381
    %2005 = vmatpush1.bf16.msra.mxu0 %v1380
    %2006 = vmatprep.subr.bf16.mxu0 %v1385
    %2007 = vmatpush1.bf16.msra.mxu0 %v1384
    %2008 = vmatprep.subr.bf16.mxu0 %v1389
    %2009 = vmatpush1.bf16.msra.mxu0 %v1388
    %2010 = vmatprep.subr.bf16.mxu0 %v1393
    %2011 = vmatpush1.bf16.msra.mxu0 %v1392
    %2012 = vmatprep.subr.bf16.mxu0 %v1397
    %2013 = vmatpush1.bf16.msra.mxu0 %v1396
    %2014 = vmatprep.subr.bf16.mxu0 %v1401
    %2015 = vmatpush1.bf16.msra.mxu0 %v1400
    %2016 = vmatprep.subr.bf16.mxu0 %v1405
    %2017 = vmatpush1.bf16.msra.mxu0 %v1404
    %2018 = vmatprep.subr.bf16.mxu0 %v1409
    %2019 = vmatpush1.bf16.msra.mxu0 %v1408
    %2020 = vmatprep.mubr.bf16.mxu0 %v439
    %2021 = vmatmul.mubr.bf16.gmra.mrb[0].mxu0 %v438
    %v2022 = vpop.f32.mrb[0].mxu0
    %v2023 = vadd.f32 %v1980, %v2022
    %v2024 = vpop.f32.mrb[0].mxu0
    %v2025 = vadd.f32 %v1982, %v2024
    %v2026 = vpop.f32.mrb[0].mxu0
    %v2027 = vadd.f32 %v1984, %v2026
    %v2028 = vpop.f32.mrb[0].mxu0
    %v2029 = vadd.f32 %v1986, %v2028
    %2030 = vdwg.mxu0
    %2031 = vmatprep.subr.bf16.mxu0 %v1413
    %2032 = vmatpush1.bf16.msra.mxu0 %v1412
    %2033 = vmatprep.subr.bf16.mxu0 %v1417
    %2034 = vmatpush1.bf16.msra.mxu0 %v1416
    %2035 = vmatprep.subr.bf16.mxu0 %v1421
    %2036 = vmatpush1.bf16.msra.mxu0 %v1420
    %2037 = vmatprep.subr.bf16.mxu0 %v1425
    %2038 = vmatpush1.bf16.msra.mxu0 %v1424
    %2039 = vmatprep.subr.bf16.mxu0 %v1429
    %2040 = vmatpush1.bf16.msra.mxu0 %v1428
    %2041 = vmatprep.subr.bf16.mxu0 %v1433
    %2042 = vmatpush1.bf16.msra.mxu0 %v1432
    %2043 = vmatprep.subr.bf16.mxu0 %v1437
    %2044 = vmatpush1.bf16.msra.mxu0 %v1436
    %2045 = vmatprep.subr.bf16.mxu0 %v1441
    %2046 = vmatpush1.bf16.msra.mxu0 %v1440
    %2047 = vmatprep.subr.bf16.mxu0 %v1445
    %2048 = vmatpush1.bf16.msra.mxu0 %v1444
    %2049 = vmatprep.subr.bf16.mxu0 %v1449
    %2050 = vmatpush1.bf16.msra.mxu0 %v1448
    %2051 = vmatprep.subr.bf16.mxu0 %v1453
    %2052 = vmatpush1.bf16.msra.mxu0 %v1452
    %2053 = vmatprep.subr.bf16.mxu0 %v1457
    %2054 = vmatpush1.bf16.msra.mxu0 %v1456
    %2055 = vmatprep.subr.bf16.mxu0 %v1461
    %2056 = vmatpush1.bf16.msra.mxu0 %v1460
    %2057 = vmatprep.subr.bf16.mxu0 %v1465
    %2058 = vmatpush1.bf16.msra.mxu0 %v1464
    %2059 = vmatprep.subr.bf16.mxu0 %v1469
    %2060 = vmatpush1.bf16.msra.mxu0 %v1468
    %2061 = vmatprep.subr.bf16.mxu0 %v1473
    %2062 = vmatpush1.bf16.msra.mxu0 %v1472
    %2063 = vmatprep.mubr.bf16.mxu0 %v441
    %2064 = vmatmul.mubr.bf16.gmra.mrb[0].mxu0 %v440
    %v2065 = vpop.f32.mrb[0].mxu0
    %v2066 = vadd.f32 %v2023, %v2065
    %v2067 = vpop.f32.mrb[0].mxu0
    %v2068 = vadd.f32 %v2025, %v2067
    %v2069 = vpop.f32.mrb[0].mxu0
    %v2070 = vadd.f32 %v2027, %v2069
    %v2071 = vpop.f32.mrb[0].mxu0
    %v2072 = vadd.f32 %v2029, %v2071
    %2073 = vdwg.mxu0
    %v2074 = vmax.f32 %v1894, 0.0
    %v2075 = vmax.f32 %v1896, 0.0
    %v2076 = vmax.f32 %v2066, 0.0
    %v2077 = vmax.f32 %v2068, 0.0
    %v2078 = vmax.f32 %v1898, 0.0
    %v2079 = vmax.f32 %v1900, 0.0
    %v2080 = vmax.f32 %v2070, 0.0
    %v2081 = vmax.f32 %v2072, 0.0
    %v2082 = vpack.c.bf16 %v2078, %v2074
    %v2083 = vpack.c.bf16 %v2079, %v2075
    %v2084 = vpack.c.bf16 %v2080, %v2076
    %v2085 = vpack.c.bf16 %v2081, %v2077
    %v2086 = vld [vmem:[#allocation4] sm:$0xff]
    %v2087 = vld [vmem:[#allocation4 + $0x8] sm:$0xff]
    %v2088 = vld [vmem:[#allocation4 + $0x10] sm:$0xff]
    %v2089 = vld [vmem:[#allocation4 + $0x18] sm:$0xff]
    %v2090 = vld [vmem:[#allocation4 + $0x20] sm:$0xff]
    %v2091 = vld [vmem:[#allocation4 + $0x28] sm:$0xff]
    %v2092 = vld [vmem:[#allocation4 + $0x30] sm:$0xff]
    %v2093 = vld [vmem:[#allocation4 + $0x38] sm:$0xff]
    %v2094 = vld [vmem:[#allocation4 + $0x40] sm:$0xff]
    %v2095 = vld [vmem:[#allocation4 + $0x48] sm:$0xff]
    %v2096 = vld [vmem:[#allocation4 + $0x50] sm:$0xff]
    %v2097 = vld [vmem:[#allocation4 + $0x58] sm:$0xff]
    %v2098 = vld [vmem:[#allocation4 + $0x60] sm:$0xff]
    %v2099 = vld [vmem:[#allocation4 + $0x68] sm:$0xff]
    %v2100 = vld [vmem:[#allocation4 + $0x70] sm:$0xff]
    %v2101 = vld [vmem:[#allocation4 + $0x78] sm:$0xff]
    %v2102 = vld [vmem:[#allocation4 + $0x80] sm:$0xff]
    %v2103 = vld [vmem:[#allocation4 + $0x88] sm:$0xff]
    %v2104 = vld [vmem:[#allocation4 + $0x90] sm:$0xff]
    %v2105 = vld [vmem:[#allocation4 + $0x98] sm:$0xff]
    %v2106 = vld [vmem:[#allocation4 + $0xa0] sm:$0xff]
    %v2107 = vld [vmem:[#allocation4 + $0xa8] sm:$0xff]
    %v2108 = vld [vmem:[#allocation4 + $0xb0] sm:$0xff]
    %v2109 = vld [vmem:[#allocation4 + $0xb8] sm:$0xff]
    %v2110 = vld [vmem:[#allocation4 + $0xc0] sm:$0xff]
    %v2111 = vld [vmem:[#allocation4 + $0xc8] sm:$0xff]
    %v2112 = vld [vmem:[#allocation4 + $0xd0] sm:$0xff]
    %v2113 = vld [vmem:[#allocation4 + $0xd8] sm:$0xff]
    %v2114 = vld [vmem:[#allocation4 + $0xe0] sm:$0xff]
    %v2115 = vld [vmem:[#allocation4 + $0xe8] sm:$0xff]
    %v2116 = vld [vmem:[#allocation4 + $0xf0] sm:$0xff]
    %v2117 = vld [vmem:[#allocation4 + $0xf8] sm:$0xff]
    %v2118 = vld [vmem:[#allocation4 + $0x100] sm:$0xff]
    %v2119 = vld [vmem:[#allocation4 + $0x108] sm:$0xff]
    %v2120 = vld [vmem:[#allocation4 + $0x110] sm:$0xff]
    %v2121 = vld [vmem:[#allocation4 + $0x118] sm:$0xff]
    %v2122 = vld [vmem:[#allocation4 + $0x120] sm:$0xff]
    %v2123 = vld [vmem:[#allocation4 + $0x128] sm:$0xff]
    %v2124 = vld [vmem:[#allocation4 + $0x130] sm:$0xff]
    %v2125 = vld [vmem:[#allocation4 + $0x138] sm:$0xff]
    %v2126 = vld [vmem:[#allocation4 + $0x140] sm:$0xff]
    %v2127 = vld [vmem:[#allocation4 + $0x148] sm:$0xff]
    %v2128 = vld [vmem:[#allocation4 + $0x150] sm:$0xff]
    %v2129 = vld [vmem:[#allocation4 + $0x158] sm:$0xff]
    %v2130 = vld [vmem:[#allocation4 + $0x160] sm:$0xff]
    %v2131 = vld [vmem:[#allocation4 + $0x168] sm:$0xff]
    %v2132 = vld [vmem:[#allocation4 + $0x170] sm:$0xff]
    %v2133 = vld [vmem:[#allocation4 + $0x178] sm:$0xff]
    %v2134 = vld [vmem:[#allocation4 + $0x180] sm:$0xff]
    %v2135 = vld [vmem:[#allocation4 + $0x188] sm:$0xff]
    %v2136 = vld [vmem:[#allocation4 + $0x190] sm:$0xff]
    %v2137 = vld [vmem:[#allocation4 + $0x198] sm:$0xff]
    %v2138 = vld [vmem:[#allocation4 + $0x1a0] sm:$0xff]
    %v2139 = vld [vmem:[#allocation4 + $0x1a8] sm:$0xff]
    %v2140 = vld [vmem:[#allocation4 + $0x1b0] sm:$0xff]
    %v2141 = vld [vmem:[#allocation4 + $0x1b8] sm:$0xff]
    %v2142 = vld [vmem:[#allocation4 + $0x1c0] sm:$0xff]
    %v2143 = vld [vmem:[#allocation4 + $0x1c8] sm:$0xff]
    %v2144 = vld [vmem:[#allocation4 + $0x1d0] sm:$0xff]
    %v2145 = vld [vmem:[#allocation4 + $0x1d8] sm:$0xff]
    %v2146 = vld [vmem:[#allocation4 + $0x1e0] sm:$0xff]
    %v2147 = vld [vmem:[#allocation4 + $0x1e8] sm:$0xff]
    %v2148 = vld [vmem:[#allocation4 + $0x1f0] sm:$0xff]
    %v2149 = vld [vmem:[#allocation4 + $0x1f8] sm:$0xff]
    %v2150 = vld [vmem:[%s5] sm:$0x3]
    %v2152 = vlaneseq
    %v2153 = vshrl.u32 %v2152, 7
    %v2154 = vsub.s32 0, %v2153
    %v2155 = vrot.slane %v2150, %v2154
    %v2156 = vlaneseq
    %v2157 = vshrl.u32 %v2156, 7
    %v2158 = vsub.s32 1, %v2157
    %v2159 = vrot.slane %v2150, %v2158
    %v2226 = vunpack.c.l.b16 %v2086
    %v2227 = vunpack.c.h.b16 %v2086
    %v2228 = vunpack.c.l.b16 %v2087
    %v2229 = vunpack.c.h.b16 %v2087
    %v2230 = vunpack.c.l.b16 %v2088
    %v2231 = vunpack.c.h.b16 %v2088
    %v2232 = vunpack.c.l.b16 %v2089
    %v2233 = vunpack.c.h.b16 %v2089
    %v2234 = vunpack.c.l.b16 %v2090
    %v2235 = vunpack.c.h.b16 %v2090
    %v2236 = vunpack.c.l.b16 %v2091
    %v2237 = vunpack.c.h.b16 %v2091
    %v2238 = vunpack.c.l.b16 %v2092
    %v2239 = vunpack.c.h.b16 %v2092
    %v2240 = vunpack.c.l.b16 %v2093
    %v2241 = vunpack.c.h.b16 %v2093
    %v2242 = vunpack.c.l.b16 %v2094
    %v2243 = vunpack.c.h.b16 %v2094
    %v2244 = vunpack.c.l.b16 %v2095
    %v2245 = vunpack.c.h.b16 %v2095
    %v2246 = vunpack.c.l.b16 %v2096
    %v2247 = vunpack.c.h.b16 %v2096
    %v2248 = vunpack.c.l.b16 %v2097
    %v2249 = vunpack.c.h.b16 %v2097
    %v2250 = vunpack.c.l.b16 %v2098
    %v2251 = vunpack.c.h.b16 %v2098
    %v2252 = vunpack.c.l.b16 %v2099
    %v2253 = vunpack.c.h.b16 %v2099
    %v2254 = vunpack.c.l.b16 %v2100
    %v2255 = vunpack.c.h.b16 %v2100
    %v2256 = vunpack.c.l.b16 %v2101
    %v2257 = vunpack.c.h.b16 %v2101
    %v2258 = vunpack.c.l.b16 %v2102
    %v2259 = vunpack.c.h.b16 %v2102
    %v2260 = vunpack.c.l.b16 %v2103
    %v2261 = vunpack.c.h.b16 %v2103
    %v2262 = vunpack.c.l.b16 %v2104
    %v2263 = vunpack.c.h.b16 %v2104
    %v2264 = vunpack.c.l.b16 %v2105
    %v2265 = vunpack.c.h.b16 %v2105
    %v2266 = vunpack.c.l.b16 %v2106
    %v2267 = vunpack.c.h.b16 %v2106
    %v2268 = vunpack.c.l.b16 %v2107
    %v2269 = vunpack.c.h.b16 %v2107
    %v2270 = vunpack.c.l.b16 %v2108
    %v2271 = vunpack.c.h.b16 %v2108
    %v2272 = vunpack.c.l.b16 %v2109
    %v2273 = vunpack.c.h.b16 %v2109
    %v2274 = vunpack.c.l.b16 %v2110
    %v2275 = vunpack.c.h.b16 %v2110
    %v2276 = vunpack.c.l.b16 %v2111
    %v2277 = vunpack.c.h.b16 %v2111
    %v2278 = vunpack.c.l.b16 %v2112
    %v2279 = vunpack.c.h.b16 %v2112
    %v2280 = vunpack.c.l.b16 %v2113
    %v2281 = vunpack.c.h.b16 %v2113
    %v2282 = vunpack.c.l.b16 %v2114
    %v2283 = vunpack.c.h.b16 %v2114
    %v2284 = vunpack.c.l.b16 %v2115
    %v2285 = vunpack.c.h.b16 %v2115
    %v2286 = vunpack.c.l.b16 %v2116
    %v2287 = vunpack.c.h.b16 %v2116
    %v2288 = vunpack.c.l.b16 %v2117
    %v2289 = vunpack.c.h.b16 %v2117
    %v2290 = vunpack.c.l.b16 %v2118
    %v2291 = vunpack.c.h.b16 %v2118
    %v2292 = vunpack.c.l.b16 %v2119
    %v2293 = vunpack.c.h.b16 %v2119
    %v2294 = vunpack.c.l.b16 %v2120
    %v2295 = vunpack.c.h.b16 %v2120
    %v2296 = vunpack.c.l.b16 %v2121
    %v2297 = vunpack.c.h.b16 %v2121
    %v2298 = vunpack.c.l.b16 %v2122
    %v2299 = vunpack.c.h.b16 %v2122
    %v2300 = vunpack.c.l.b16 %v2123
    %v2301 = vunpack.c.h.b16 %v2123
    %v2302 = vunpack.c.l.b16 %v2124
    %v2303 = vunpack.c.h.b16 %v2124
    %v2304 = vunpack.c.l.b16 %v2125
    %v2305 = vunpack.c.h.b16 %v2125
    %v2306 = vunpack.c.l.b16 %v2126
    %v2307 = vunpack.c.h.b16 %v2126
    %v2308 = vunpack.c.l.b16 %v2127
    %v2309 = vunpack.c.h.b16 %v2127
    %v2310 = vunpack.c.l.b16 %v2128
    %v2311 = vunpack.c.h.b16 %v2128
    %v2312 = vunpack.c.l.b16 %v2129
    %v2313 = vunpack.c.h.b16 %v2129
    %v2314 = vunpack.c.l.b16 %v2130
    %v2315 = vunpack.c.h.b16 %v2130
    %v2316 = vunpack.c.l.b16 %v2131
    %v2317 = vunpack.c.h.b16 %v2131
    %v2318 = vunpack.c.l.b16 %v2132
    %v2319 = vunpack.c.h.b16 %v2132
    %v2320 = vunpack.c.l.b16 %v2133
    %v2321 = vunpack.c.h.b16 %v2133
    %v2322 = vunpack.c.l.b16 %v2134
    %v2323 = vunpack.c.h.b16 %v2134
    %v2324 = vunpack.c.l.b16 %v2135
    %v2325 = vunpack.c.h.b16 %v2135
    %v2326 = vunpack.c.l.b16 %v2136
    %v2327 = vunpack.c.h.b16 %v2136
    %v2328 = vunpack.c.l.b16 %v2137
    %v2329 = vunpack.c.h.b16 %v2137
    %v2330 = vunpack.c.l.b16 %v2138
    %v2331 = vunpack.c.h.b16 %v2138
    %v2332 = vunpack.c.l.b16 %v2139
    %v2333 = vunpack.c.h.b16 %v2139
    %v2334 = vunpack.c.l.b16 %v2140
    %v2335 = vunpack.c.h.b16 %v2140
    %v2336 = vunpack.c.l.b16 %v2141
    %v2337 = vunpack.c.h.b16 %v2141
    %v2338 = vunpack.c.l.b16 %v2142
    %v2339 = vunpack.c.h.b16 %v2142
    %v2340 = vunpack.c.l.b16 %v2143
    %v2341 = vunpack.c.h.b16 %v2143
    %v2342 = vunpack.c.l.b16 %v2144
    %v2343 = vunpack.c.h.b16 %v2144
    %v2344 = vunpack.c.l.b16 %v2145
    %v2345 = vunpack.c.h.b16 %v2145
    %v2346 = vunpack.c.l.b16 %v2146
    %v2347 = vunpack.c.h.b16 %v2146
    %v2348 = vunpack.c.l.b16 %v2147
    %v2349 = vunpack.c.h.b16 %v2147
    %v2350 = vunpack.c.l.b16 %v2148
    %v2351 = vunpack.c.h.b16 %v2148
    %v2352 = vunpack.c.l.b16 %v2149
    %v2353 = vunpack.c.h.b16 %v2149
    %v2354 = vpack.c.b16 %v2228, %v2226
    %v2355 = vpack.c.b16 %v2229, %v2227
    %v2356 = vpack.c.b16 %v2232, %v2230
    %v2357 = vpack.c.b16 %v2233, %v2231
    %v2358 = vpack.c.b16 %v2236, %v2234
    %v2359 = vpack.c.b16 %v2237, %v2235
    %v2360 = vpack.c.b16 %v2240, %v2238
    %v2361 = vpack.c.b16 %v2241, %v2239
    %v2362 = vpack.c.b16 %v2244, %v2242
    %v2363 = vpack.c.b16 %v2245, %v2243
    %v2364 = vpack.c.b16 %v2248, %v2246
    %v2365 = vpack.c.b16 %v2249, %v2247
    %v2366 = vpack.c.b16 %v2252, %v2250
    %v2367 = vpack.c.b16 %v2253, %v2251
    %v2368 = vpack.c.b16 %v2256, %v2254
    %v2369 = vpack.c.b16 %v2257, %v2255
    %v2370 = vpack.c.b16 %v2260, %v2258
    %v2371 = vpack.c.b16 %v2261, %v2259
    %v2372 = vpack.c.b16 %v2264, %v2262
    %v2373 = vpack.c.b16 %v2265, %v2263
    %v2374 = vpack.c.b16 %v2268, %v2266
    %v2375 = vpack.c.b16 %v2269, %v2267
    %v2376 = vpack.c.b16 %v2272, %v2270
    %v2377 = vpack.c.b16 %v2273, %v2271
    %v2378 = vpack.c.b16 %v2276, %v2274
    %v2379 = vpack.c.b16 %v2277, %v2275
    %v2380 = vpack.c.b16 %v2280, %v2278
    %v2381 = vpack.c.b16 %v2281, %v2279
    %v2382 = vpack.c.b16 %v2284, %v2282
    %v2383 = vpack.c.b16 %v2285, %v2283
    %v2384 = vpack.c.b16 %v2288, %v2286
    %v2385 = vpack.c.b16 %v2289, %v2287
    %v2386 = vpack.c.b16 %v2292, %v2290
    %v2387 = vpack.c.b16 %v2293, %v2291
    %v2388 = vpack.c.b16 %v2296, %v2294
    %v2389 = vpack.c.b16 %v2297, %v2295
    %v2390 = vpack.c.b16 %v2300, %v2298
    %v2391 = vpack.c.b16 %v2301, %v2299
    %v2392 = vpack.c.b16 %v2304, %v2302
    %v2393 = vpack.c.b16 %v2305, %v2303
    %v2394 = vpack.c.b16 %v2308, %v2306
    %v2395 = vpack.c.b16 %v2309, %v2307
    %v2396 = vpack.c.b16 %v2312, %v2310
    %v2397 = vpack.c.b16 %v2313, %v2311
    %v2398 = vpack.c.b16 %v2316, %v2314
    %v2399 = vpack.c.b16 %v2317, %v2315
    %v2400 = vpack.c.b16 %v2320, %v2318
    %v2401 = vpack.c.b16 %v2321, %v2319
    %v2402 = vpack.c.b16 %v2324, %v2322
    %v2403 = vpack.c.b16 %v2325, %v2323
    %v2404 = vpack.c.b16 %v2328, %v2326
    %v2405 = vpack.c.b16 %v2329, %v2327
    %v2406 = vpack.c.b16 %v2332, %v2330
    %v2407 = vpack.c.b16 %v2333, %v2331
    %v2408 = vpack.c.b16 %v2336, %v2334
    %v2409 = vpack.c.b16 %v2337, %v2335
    %v2410 = vpack.c.b16 %v2340, %v2338
    %v2411 = vpack.c.b16 %v2341, %v2339
    %v2412 = vpack.c.b16 %v2344, %v2342
    %v2413 = vpack.c.b16 %v2345, %v2343
    %v2414 = vpack.c.b16 %v2348, %v2346
    %v2415 = vpack.c.b16 %v2349, %v2347
    %v2416 = vpack.c.b16 %v2352, %v2350
    %v2417 = vpack.c.b16 %v2353, %v2351
    %2482 = vmatprep.subr.bf16.mxu0 %v2355
    %2483 = vmatpush1.bf16.msra.mxu0 %v2354
    %2484 = vmatprep.subr.bf16.mxu0 %v2357
    %2485 = vmatpush1.bf16.msra.mxu0 %v2356
    %2486 = vmatprep.subr.bf16.mxu0 %v2359
    %2487 = vmatpush1.bf16.msra.mxu0 %v2358
    %2488 = vmatprep.subr.bf16.mxu0 %v2361
    %2489 = vmatpush1.bf16.msra.mxu0 %v2360
    %2490 = vmatprep.subr.bf16.mxu0 %v2363
    %2491 = vmatpush1.bf16.msra.mxu0 %v2362
    %2492 = vmatprep.subr.bf16.mxu0 %v2365
    %2493 = vmatpush1.bf16.msra.mxu0 %v2364
    %2494 = vmatprep.subr.bf16.mxu0 %v2367
    %2495 = vmatpush1.bf16.msra.mxu0 %v2366
    %2496 = vmatprep.subr.bf16.mxu0 %v2369
    %2497 = vmatpush1.bf16.msra.mxu0 %v2368
    %2498 = vmatprep.subr.bf16.mxu0 %v2371
    %2499 = vmatpush1.bf16.msra.mxu0 %v2370
    %2500 = vmatprep.subr.bf16.mxu0 %v2373
    %2501 = vmatpush1.bf16.msra.mxu0 %v2372
    %2502 = vmatprep.subr.bf16.mxu0 %v2375
    %2503 = vmatpush1.bf16.msra.mxu0 %v2374
    %2504 = vmatprep.subr.bf16.mxu0 %v2377
    %2505 = vmatpush1.bf16.msra.mxu0 %v2376
    %2506 = vmatprep.subr.bf16.mxu0 %v2379
    %2507 = vmatpush1.bf16.msra.mxu0 %v2378
    %2508 = vmatprep.subr.bf16.mxu0 %v2381
    %2509 = vmatpush1.bf16.msra.mxu0 %v2380
    %2510 = vmatprep.subr.bf16.mxu0 %v2383
    %2511 = vmatpush1.bf16.msra.mxu0 %v2382
    %2512 = vmatprep.subr.bf16.mxu0 %v2385
    %2513 = vmatpush1.bf16.msra.mxu0 %v2384
    %2514 = vmatprep.mubr.bf16.mxu0 %v2083
    %2515 = vmatmul.mubr.bf16.gmra.mrb[0].mxu0 %v2082
    %v2516 = vpop.f32.mrb[0].mxu0
    %v2517 = vadd.f32 %v2155, %v2516
    %v2518 = vpop.f32.mrb[0].mxu0
    %v2519 = vadd.f32 %v2159, %v2518
    %v2520 = vpop.f32.mrb[0].mxu0
    %v2521 = vadd.f32 %v2155, %v2520
    %v2522 = vpop.f32.mrb[0].mxu0
    %v2523 = vadd.f32 %v2159, %v2522
    %2524 = vdwg.mxu0
    %2525 = vmatprep.subr.bf16.mxu0 %v2387
    %2526 = vmatpush1.bf16.msra.mxu0 %v2386
    %2527 = vmatprep.subr.bf16.mxu0 %v2389
    %2528 = vmatpush1.bf16.msra.mxu0 %v2388
    %2529 = vmatprep.subr.bf16.mxu0 %v2391
    %2530 = vmatpush1.bf16.msra.mxu0 %v2390
    %2531 = vmatprep.subr.bf16.mxu0 %v2393
    %2532 = vmatpush1.bf16.msra.mxu0 %v2392
    %2533 = vmatprep.subr.bf16.mxu0 %v2395
    %2534 = vmatpush1.bf16.msra.mxu0 %v2394
    %2535 = vmatprep.subr.bf16.mxu0 %v2397
    %2536 = vmatpush1.bf16.msra.mxu0 %v2396
    %2537 = vmatprep.subr.bf16.mxu0 %v2399
    %2538 = vmatpush1.bf16.msra.mxu0 %v2398
    %2539 = vmatprep.subr.bf16.mxu0 %v2401
    %2540 = vmatpush1.bf16.msra.mxu0 %v2400
    %2541 = vmatprep.subr.bf16.mxu0 %v2403
    %2542 = vmatpush1.bf16.msra.mxu0 %v2402
    %2543 = vmatprep.subr.bf16.mxu0 %v2405
    %2544 = vmatpush1.bf16.msra.mxu0 %v2404
    %2545 = vmatprep.subr.bf16.mxu0 %v2407
    %2546 = vmatpush1.bf16.msra.mxu0 %v2406
    %2547 = vmatprep.subr.bf16.mxu0 %v2409
    %2548 = vmatpush1.bf16.msra.mxu0 %v2408
    %2549 = vmatprep.subr.bf16.mxu0 %v2411
    %2550 = vmatpush1.bf16.msra.mxu0 %v2410
    %2551 = vmatprep.subr.bf16.mxu0 %v2413
    %2552 = vmatpush1.bf16.msra.mxu0 %v2412
    %2553 = vmatprep.subr.bf16.mxu0 %v2415
    %2554 = vmatpush1.bf16.msra.mxu0 %v2414
    %2555 = vmatprep.subr.bf16.mxu0 %v2417
    %2556 = vmatpush1.bf16.msra.mxu0 %v2416
    %2557 = vmatprep.mubr.bf16.mxu0 %v2085
    %2558 = vmatmul.mubr.bf16.gmra.mrb[0].mxu0 %v2084
    %v2559 = vpop.f32.mrb[0].mxu0
    %v2560 = vadd.f32 %v2517, %v2559
    %v2561 = vpop.f32.mrb[0].mxu0
    %v2562 = vadd.f32 %v2519, %v2561
    %v2563 = vpop.f32.mrb[0].mxu0
    %v2564 = vadd.f32 %v2521, %v2563
    %v2565 = vpop.f32.mrb[0].mxu0
    %v2566 = vadd.f32 %v2523, %v2565
    %2567 = vdwg.mxu0
    %v2568 = vmax.f32 %v2560, 0.0
    %v2569 = vmax.f32 %v2562, 0.0
    %v2570 = vmax.f32 %v2564, 0.0
    %v2571 = vmax.f32 %v2566, 0.0
    %v2572 = vpack.c.bf16 %v2570, %v2568
    %v2573 = vpack.c.bf16 %v2571, %v2569
    %v2574 = vld [vmem:[%s6] sm:$0xf]
    %v2575 = vld [vmem:[%s6 + $0x4] sm:$0xf]
    %v2576 = vld [vmem:[%s6 + $0x8] sm:$0xf]
    %v2577 = vld [vmem:[%s6 + $0xc] sm:$0xf]
    %v2578 = vld [vmem:[%s6 + $0x10] sm:$0xf]
    %v2579 = vld [vmem:[%s6 + $0x14] sm:$0xf]
    %v2580 = vld [vmem:[%s6 + $0x18] sm:$0xf]
    %v2581 = vld [vmem:[%s6 + $0x1c] sm:$0xf]
    %v2582 = vld [vmem:[%s6 + $0x20] sm:$0xf]
    %v2583 = vld [vmem:[%s6 + $0x24] sm:$0xf]
    %v2584 = vld [vmem:[%s6 + $0x28] sm:$0xf]
    %v2585 = vld [vmem:[%s6 + $0x2c] sm:$0xf]
    %v2586 = vld [vmem:[%s6 + $0x30] sm:$0xf]
    %v2587 = vld [vmem:[%s6 + $0x34] sm:$0xf]
    %v2588 = vld [vmem:[%s6 + $0x38] sm:$0xf]
    %v2589 = vld [vmem:[%s6 + $0x3c] sm:$0xf]
    %v2590 = vld [vmem:[%s6 + $0x40] sm:$0xf]
    %v2591 = vld [vmem:[%s6 + $0x44] sm:$0xf]
    %v2592 = vld [vmem:[%s6 + $0x48] sm:$0xf]
    %v2593 = vld [vmem:[%s6 + $0x4c] sm:$0xf]
    %v2594 = vld [vmem:[%s6 + $0x50] sm:$0xf]
    %v2595 = vld [vmem:[%s6 + $0x54] sm:$0xf]
    %v2596 = vld [vmem:[%s6 + $0x58] sm:$0xf]
    %v2597 = vld [vmem:[%s6 + $0x5c] sm:$0xf]
    %v2598 = vld [vmem:[%s6 + $0x60] sm:$0xf]
    %v2599 = vld [vmem:[%s6 + $0x64] sm:$0xf]
    %v2600 = vld [vmem:[%s6 + $0x68] sm:$0xf]
    %v2601 = vld [vmem:[%s6 + $0x6c] sm:$0xf]
    %v2602 = vld [vmem:[%s6 + $0x70] sm:$0xf]
    %v2603 = vld [vmem:[%s6 + $0x74] sm:$0xf]
    %v2604 = vld [vmem:[%s6 + $0x78] sm:$0xf]
    %v2605 = vld [vmem:[%s6 + $0x7c] sm:$0xf]
    %v2606 = vld [vmem:[%s7] sm:$0x1]
    %v2608 = vlaneseq
    %v2609 = vshrl.u32 %v2608, 7
    %v2610 = vsub.s32 0, %v2609
    %v2611 = vrot.slane %v2606, %v2610
    %v2645 = vunpack.c.l.b16 %v2574
    %v2646 = vunpack.c.l.b16 %v2575
    %v2647 = vunpack.c.l.b16 %v2576
    %v2648 = vunpack.c.l.b16 %v2577
    %v2649 = vunpack.c.l.b16 %v2578
    %v2650 = vunpack.c.l.b16 %v2579
    %v2651 = vunpack.c.l.b16 %v2580
    %v2652 = vunpack.c.l.b16 %v2581
    %v2653 = vunpack.c.l.b16 %v2582
    %v2654 = vunpack.c.l.b16 %v2583
    %v2655 = vunpack.c.l.b16 %v2584
    %v2656 = vunpack.c.l.b16 %v2585
    %v2657 = vunpack.c.l.b16 %v2586
    %v2658 = vunpack.c.l.b16 %v2587
    %v2659 = vunpack.c.l.b16 %v2588
    %v2660 = vunpack.c.l.b16 %v2589
    %v2661 = vunpack.c.l.b16 %v2590
    %v2662 = vunpack.c.l.b16 %v2591
    %v2663 = vunpack.c.l.b16 %v2592
    %v2664 = vunpack.c.l.b16 %v2593
    %v2665 = vunpack.c.l.b16 %v2594
    %v2666 = vunpack.c.l.b16 %v2595
    %v2667 = vunpack.c.l.b16 %v2596
    %v2668 = vunpack.c.l.b16 %v2597
    %v2669 = vunpack.c.l.b16 %v2598
    %v2670 = vunpack.c.l.b16 %v2599
    %v2671 = vunpack.c.l.b16 %v2600
    %v2672 = vunpack.c.l.b16 %v2601
    %v2673 = vunpack.c.l.b16 %v2602
    %v2674 = vunpack.c.l.b16 %v2603
    %v2675 = vunpack.c.l.b16 %v2604
    %v2676 = vunpack.c.l.b16 %v2605
    %v2677 = vpack.c.b16 %v2646, %v2645
    %v2678 = vpack.c.b16 %v2648, %v2647
    %v2679 = vpack.c.b16 %v2650, %v2649
    %v2680 = vpack.c.b16 %v2652, %v2651
    %v2681 = vpack.c.b16 %v2654, %v2653
    %v2682 = vpack.c.b16 %v2656, %v2655
    %v2683 = vpack.c.b16 %v2658, %v2657
    %v2684 = vpack.c.b16 %v2660, %v2659
    %v2685 = vpack.c.b16 %v2662, %v2661
    %v2686 = vpack.c.b16 %v2664, %v2663
    %v2687 = vpack.c.b16 %v2666, %v2665
    %v2688 = vpack.c.b16 %v2668, %v2667
    %v2689 = vpack.c.b16 %v2670, %v2669
    %v2690 = vpack.c.b16 %v2672, %v2671
    %v2691 = vpack.c.b16 %v2674, %v2673
    %v2692 = vpack.c.b16 %v2676, %v2675
    %2709 = vmatprep.subr.bf16.mxu0 0
    %2710 = vmatpush1.bf16.msra.mxu0 %v2677
    %2711 = vmatprep.subr.bf16.mxu0 0
    %2712 = vmatpush1.bf16.msra.mxu0 %v2678
    %2713 = vmatprep.subr.bf16.mxu0 0
    %2714 = vmatpush1.bf16.msra.mxu0 %v2679
    %2715 = vmatprep.subr.bf16.mxu0 0
    %2716 = vmatpush1.bf16.msra.mxu0 %v2680
    %2717 = vmatprep.subr.bf16.mxu0 0
    %2718 = vmatpush1.bf16.msra.mxu0 %v2681
    %2719 = vmatprep.subr.bf16.mxu0 0
    %2720 = vmatpush1.bf16.msra.mxu0 %v2682
    %2721 = vmatprep.subr.bf16.mxu0 0
    %2722 = vmatpush1.bf16.msra.mxu0 %v2683
    %2723 = vmatprep.subr.bf16.mxu0 0
    %2724 = vmatpush1.bf16.msra.mxu0 %v2684
    %2725 = vmatprep.subr.bf16.mxu0 0
    %2726 = vmatpush1.bf16.msra.mxu0 %v2685
    %2727 = vmatprep.subr.bf16.mxu0 0
    %2728 = vmatpush1.bf16.msra.mxu0 %v2686
    %2729 = vmatprep.subr.bf16.mxu0 0
    %2730 = vmatpush1.bf16.msra.mxu0 %v2687
    %2731 = vmatprep.subr.bf16.mxu0 0
    %2732 = vmatpush1.bf16.msra.mxu0 %v2688
    %2733 = vmatprep.subr.bf16.mxu0 0
    %2734 = vmatpush1.bf16.msra.mxu0 %v2689
    %2735 = vmatprep.subr.bf16.mxu0 0
    %2736 = vmatpush1.bf16.msra.mxu0 %v2690
    %2737 = vmatprep.subr.bf16.mxu0 0
    %2738 = vmatpush1.bf16.msra.mxu0 %v2691
    %2739 = vmatprep.subr.bf16.mxu0 0
    %2740 = vmatpush1.bf16.msra.mxu0 %v2692
    %2741 = vmatprep.mubr.bf16.mxu0 %v2573
    %2742 = vmatmul.mubr.bf16.gmra.mrb[0].mxu0 %v2572
    %v2743 = vpop.f32.mrb[0].mxu0
    %v2744 = vadd.f32 %v2611, %v2743
    %v2745 = vpop.f32.mrb[0].mxu0
    %v2746 = vpop.f32.mrb[0].mxu0
    %v2747 = vadd.f32 %v2611, %v2746
    %v2748 = vpop.f32.mrb[0].mxu0
    %2749 = vdwg.mxu0
    %v2750 = vmax.f32 %v2744, 0.0
    %v2751 = vmax.f32 %v2747, 0.0
    %v2752 = vpack.c.bf16 %v2751, %v2750
    %v2753 = vld [vmem:[%s8] sm:$0xf]
    %v2754 = vld [vmem:[%s8 + $0x4] sm:$0xf]
    %v2755 = vld [vmem:[%s8 + $0x8] sm:$0xf]
    %v2756 = vld [vmem:[%s8 + $0xc] sm:$0xf]
    %v2757 = vld [vmem:[%s8 + $0x10] sm:$0xf]
    %v2758 = vld [vmem:[%s8 + $0x14] sm:$0xf]
    %v2759 = vld [vmem:[%s8 + $0x18] sm:$0xf]
    %v2760 = vld [vmem:[%s8 + $0x1c] sm:$0xf]
    %v2761 = vld [vmem:[%s8 + $0x20] sm:$0xf]
    %v2762 = vld [vmem:[%s8 + $0x24] sm:$0xf]
    %v2763 = vld [vmem:[%s8 + $0x28] sm:$0xf]
    %v2764 = vld [vmem:[%s8 + $0x2c] sm:$0xf]
    %v2765 = vld [vmem:[%s8 + $0x30] sm:$0xf]
    %v2766 = vld [vmem:[%s8 + $0x34] sm:$0xf]
    %v2767 = vld [vmem:[%s8 + $0x38] sm:$0xf]
    %v2768 = vld [vmem:[%s8 + $0x3c] sm:$0xf]
    %v2769 = vld [vmem:[%s9] sm:$0x1]
    %v2771 = vlaneseq
    %v2772 = vshrl.u32 %v2771, 7
    %v2773 = vsub.s32 0, %v2772
    %v2774 = vrot.slane %v2769, %v2773
    %v2792 = vunpack.c.l.b16 %v2753
    %v2793 = vunpack.c.l.b16 %v2754
    %v2794 = vunpack.c.l.b16 %v2755
    %v2795 = vunpack.c.l.b16 %v2756
    %v2796 = vunpack.c.l.b16 %v2757
    %v2797 = vunpack.c.l.b16 %v2758
    %v2798 = vunpack.c.l.b16 %v2759
    %v2799 = vunpack.c.l.b16 %v2760
    %v2800 = vunpack.c.l.b16 %v2761
    %v2801 = vunpack.c.l.b16 %v2762
    %v2802 = vunpack.c.l.b16 %v2763
    %v2803 = vunpack.c.l.b16 %v2764
    %v2804 = vunpack.c.l.b16 %v2765
    %v2805 = vunpack.c.l.b16 %v2766
    %v2806 = vunpack.c.l.b16 %v2767
    %v2807 = vunpack.c.l.b16 %v2768
    %v2808 = vpack.c.b16 %v2793, %v2792
    %v2809 = vpack.c.b16 %v2795, %v2794
    %v2810 = vpack.c.b16 %v2797, %v2796
    %v2811 = vpack.c.b16 %v2799, %v2798
    %v2812 = vpack.c.b16 %v2801, %v2800
    %v2813 = vpack.c.b16 %v2803, %v2802
    %v2814 = vpack.c.b16 %v2805, %v2804
    %v2815 = vpack.c.b16 %v2807, %v2806
    %2824 = vmatprep.subr.bf16.mxu0 0
    %2825 = vmatpush1.bf16.msra.mxu0 %v2808
    %2826 = vmatprep.subr.bf16.mxu0 0
    %2827 = vmatpush1.bf16.msra.mxu0 %v2809
    %2828 = vmatprep.subr.bf16.mxu0 0
    %2829 = vmatpush1.bf16.msra.mxu0 %v2810
    %2830 = vmatprep.subr.bf16.mxu0 0
    %2831 = vmatpush1.bf16.msra.mxu0 %v2811
    %2832 = vmatprep.subr.bf16.mxu0 0
    %2833 = vmatpush1.bf16.msra.mxu0 %v2812
    %2834 = vmatprep.subr.bf16.mxu0 0
    %2835 = vmatpush1.bf16.msra.mxu0 %v2813
    %2836 = vmatprep.subr.bf16.mxu0 0
    %2837 = vmatpush1.bf16.msra.mxu0 %v2814
    %2838 = vmatprep.subr.bf16.mxu0 0
    %2839 = vmatpush1.bf16.msra.mxu0 %v2815
    %2840 = vmatprep.subr.bf16.mxu0 0
    %2841 = vmatpush1.bf16.msra.mxu0 0
    %2842 = vmatprep.subr.bf16.mxu0 0
    %2843 = vmatpush1.bf16.msra.mxu0 0
    %2844 = vmatprep.subr.bf16.mxu0 0
    %2845 = vmatpush1.bf16.msra.mxu0 0
    %2846 = vmatprep.subr.bf16.mxu0 0
    %2847 = vmatpush1.bf16.msra.mxu0 0
    %2848 = vmatprep.subr.bf16.mxu0 0
    %2849 = vmatpush1.bf16.msra.mxu0 0
    %2850 = vmatprep.subr.bf16.mxu0 0
    %2851 = vmatpush1.bf16.msra.mxu0 0
    %2852 = vmatprep.subr.bf16.mxu0 0
    %2853 = vmatpush1.bf16.msra.mxu0 0
    %2854 = vmatprep.subr.bf16.mxu0 0
    %2855 = vmatpush1.bf16.msra.mxu0 0
    %2856 = vmatprep.mubr.bf16.mxu0 0
    %2857 = vmatmul.mubr.bf16.gmra.mrb[0].mxu0 %v2752
    %v2858 = vpop.f32.mrb[0].mxu0
    %v2859 = vadd.f32 %v2774, %v2858
    %v2860 = vpop.f32.mrb[0].mxu0
    %v2861 = vpop.f32.mrb[0].mxu0
    %v2862 = vadd.f32 %v2774, %v2861
    %v2863 = vpop.f32.mrb[0].mxu0
    %2864 = vdwg.mxu0
    %2865 = vst [vmem:[%s17] sm:$0xff] %v2859
    %2866 = vst [vmem:[%s17 + $0x8] sm:$0xff] %v2862
    %v2867 = vmul.f32 %v2859, 0.5
    %v2868 = vmul.f32 %v2862, 0.5
    %v2869 = vmul.f32 %v2867, 1.442695
    %v2870 = vpow.pop %v2869
    %v2871 = vmul.f32 %v2868, 1.442695
    %v2872 = vpow.pop %v2871
    %v2873 = vld [vmem:[%s1] sm:$0xff]
    %v2874 = vld [vmem:[%s1 + $0x8] sm:$0xff]
    %2877 = vrot.lane.b32.xlu0 %v2873, 64
    %v2878 = vpop.permute.xlu0 %2877
    %2879 = vrot.lane.b32.xlu0 %v2874, 64
    %v2880 = vpop.permute.xlu0 %2879
    %v2883 = vmul.f32 %v2870, %v2878
    %v2884 = vmul.f32 %v2872, %v2880
    %2887 = vrot.lane.b32.xlu0 %v2883, 64
    %v2888 = vpop.permute.xlu0 %2887
    %2889 = vrot.lane.b32.xlu0 %v2884, 64
    %v2890 = vpop.permute.xlu0 %2889
    %v2893 = vadd.f32 %v2859, %v2888
    %v2894 = vadd.f32 %v2862, %v2890
    %v2895 = vpack.c.bf16 %v2894, %v2893
    %v2896 = vld [vmem:[#allocation6] sm:$0xff]
    %v2897 = vld [vmem:[#allocation6 + $0x8] sm:$0xff]
    %v2898 = vld [vmem:[#allocation6 + $0x10] sm:$0xff]
    %v2899 = vld [vmem:[#allocation6 + $0x18] sm:$0xff]
    %v2900 = vld [vmem:[#allocation6 + $0x20] sm:$0xff]
    %v2901 = vld [vmem:[#allocation6 + $0x28] sm:$0xff]
    %v2902 = vld [vmem:[#allocation6 + $0x30] sm:$0xff]
    %v2903 = vld [vmem:[#allocation6 + $0x38] sm:$0xff]
    %v2904 = vld [vmem:[%s11] sm:$0x3]
    %v2906 = vlaneseq
    %v2907 = vshrl.u32 %v2906, 7
    %v2908 = vsub.s32 0, %v2907
    %v2909 = vrot.slane %v2904, %v2908
    %v2910 = vlaneseq
    %v2911 = vshrl.u32 %v2910, 7
    %v2912 = vsub.s32 1, %v2911
    %v2913 = vrot.slane %v2904, %v2912
    %v2924 = vunpack.c.l.b16 %v2896
    %v2925 = vunpack.c.h.b16 %v2896
    %v2926 = vunpack.c.l.b16 %v2897
    %v2927 = vunpack.c.h.b16 %v2897
    %v2928 = vunpack.c.l.b16 %v2898
    %v2929 = vunpack.c.h.b16 %v2898
    %v2930 = vunpack.c.l.b16 %v2899
    %v2931 = vunpack.c.h.b16 %v2899
    %v2932 = vunpack.c.l.b16 %v2900
    %v2933 = vunpack.c.h.b16 %v2900
    %v2934 = vunpack.c.l.b16 %v2901
    %v2935 = vunpack.c.h.b16 %v2901
    %v2936 = vunpack.c.l.b16 %v2902
    %v2937 = vunpack.c.h.b16 %v2902
    %v2938 = vunpack.c.l.b16 %v2903
    %v2939 = vunpack.c.h.b16 %v2903
    %v2940 = vpack.c.b16 %v2926, %v2924
    %v2941 = vpack.c.b16 %v2927, %v2925
    %v2942 = vpack.c.b16 %v2930, %v2928
    %v2943 = vpack.c.b16 %v2931, %v2929
    %v2944 = vpack.c.b16 %v2934, %v2932
    %v2945 = vpack.c.b16 %v2935, %v2933
    %v2946 = vpack.c.b16 %v2938, %v2936
    %v2947 = vpack.c.b16 %v2939, %v2937
    %vm2956 = vcmask 523264
    %v2958 = vsel %vm2956, %v2895, 0
    %2960 = vmatprep.subr.bf16.mxu0 %v2941
    %2961 = vmatpush1.bf16.msra.mxu0 %v2940
    %2962 = vmatprep.subr.bf16.mxu0 %v2943
    %2963 = vmatpush1.bf16.msra.mxu0 %v2942
    %2964 = vmatprep.subr.bf16.mxu0 %v2945
    %2965 = vmatpush1.bf16.msra.mxu0 %v2944
    %2966 = vmatprep.subr.bf16.mxu0 %v2947
    %2967 = vmatpush1.bf16.msra.mxu0 %v2946
    %2968 = vmatprep.subr.bf16.mxu0 0
    %2969 = vmatpush1.bf16.msra.mxu0 0
    %2970 = vmatprep.subr.bf16.mxu0 0
    %2971 = vmatpush1.bf16.msra.mxu0 0
    %2972 = vmatprep.subr.bf16.mxu0 0
    %2973 = vmatpush1.bf16.msra.mxu0 0
    %2974 = vmatprep.subr.bf16.mxu0 0
    %2975 = vmatpush1.bf16.msra.mxu0 0
    %2976 = vmatprep.subr.bf16.mxu0 0
    %2977 = vmatpush1.bf16.msra.mxu0 0
    %2978 = vmatprep.subr.bf16.mxu0 0
    %2979 = vmatpush1.bf16.msra.mxu0 0
    %2980 = vmatprep.subr.bf16.mxu0 0
    %2981 = vmatpush1.bf16.msra.mxu0 0
    %2982 = vmatprep.subr.bf16.mxu0 0
    %2983 = vmatpush1.bf16.msra.mxu0 0
    %2984 = vmatprep.subr.bf16.mxu0 0
    %2985 = vmatpush1.bf16.msra.mxu0 0
    %2986 = vmatprep.subr.bf16.mxu0 0
    %2987 = vmatpush1.bf16.msra.mxu0 0
    %2988 = vmatprep.subr.bf16.mxu0 0
    %2989 = vmatpush1.bf16.msra.mxu0 0
    %2990 = vmatprep.subr.bf16.mxu0 0
    %2991 = vmatpush1.bf16.msra.mxu0 0
    %2992 = vmatprep.mubr.bf16.mxu0 0
    %2993 = vmatmul.mubr.bf16.gmra.mrb[0].mxu0 %v2958
    %v2994 = vpop.f32.mrb[0].mxu0
    %v2995 = vadd.f32 %v2909, %v2994
    %v2996 = vpop.f32.mrb[0].mxu0
    %v2997 = vadd.f32 %v2913, %v2996
    %v2998 = vpop.f32.mrb[0].mxu0
    %v2999 = vadd.f32 %v2909, %v2998
    %v3000 = vpop.f32.mrb[0].mxu0
    %v3001 = vadd.f32 %v2913, %v3000
    %3002 = vdwg.mxu0
    %v3003 = vmax.f32 %v2995, 0.0
    %v3004 = vmax.f32 %v2997, 0.0
    %v3005 = vmax.f32 %v2999, 0.0
    %v3006 = vmax.f32 %v3001, 0.0
    %v3007 = vpack.c.bf16 %v3005, %v3003
    %v3008 = vpack.c.bf16 %v3006, %v3004
    %v3009 = vld [vmem:[#allocation7] sm:$0xff]
    %v3010 = vld [vmem:[#allocation7 + $0x8] sm:$0xff]
    %v3011 = vld [vmem:[#allocation7 + $0x10] sm:$0xff]
    %v3012 = vld [vmem:[#allocation7 + $0x18] sm:$0xff]
    %v3013 = vld [vmem:[#allocation7 + $0x20] sm:$0xff]
    %v3014 = vld [vmem:[#allocation7 + $0x28] sm:$0xff]
    %v3015 = vld [vmem:[#allocation7 + $0x30] sm:$0xff]
    %v3016 = vld [vmem:[#allocation7 + $0x38] sm:$0xff]
    %v3017 = vld [vmem:[#allocation7 + $0x40] sm:$0xff]
    %v3018 = vld [vmem:[#allocation7 + $0x48] sm:$0xff]
    %v3019 = vld [vmem:[#allocation7 + $0x50] sm:$0xff]
    %v3020 = vld [vmem:[#allocation7 + $0x58] sm:$0xff]
    %v3021 = vld [vmem:[#allocation7 + $0x60] sm:$0xff]
    %v3022 = vld [vmem:[#allocation7 + $0x68] sm:$0xff]
    %v3023 = vld [vmem:[#allocation7 + $0x70] sm:$0xff]
    %v3024 = vld [vmem:[#allocation7 + $0x78] sm:$0xff]
    %v3025 = vld [vmem:[#allocation7 + $0x80] sm:$0xff]
    %v3026 = vld [vmem:[#allocation7 + $0x88] sm:$0xff]
    %v3027 = vld [vmem:[#allocation7 + $0x90] sm:$0xff]
    %v3028 = vld [vmem:[#allocation7 + $0x98] sm:$0xff]
    %v3029 = vld [vmem:[#allocation7 + $0xa0] sm:$0xff]
    %v3030 = vld [vmem:[#allocation7 + $0xa8] sm:$0xff]
    %v3031 = vld [vmem:[#allocation7 + $0xb0] sm:$0xff]
    %v3032 = vld [vmem:[#allocation7 + $0xb8] sm:$0xff]
    %v3033 = vld [vmem:[#allocation7 + $0xc0] sm:$0xff]
    %v3034 = vld [vmem:[#allocation7 + $0xc8] sm:$0xff]
    %v3035 = vld [vmem:[#allocation7 + $0xd0] sm:$0xff]
    %v3036 = vld [vmem:[#allocation7 + $0xd8] sm:$0xff]
    %v3037 = vld [vmem:[#allocation7 + $0xe0] sm:$0xff]
    %v3038 = vld [vmem:[#allocation7 + $0xe8] sm:$0xff]
    %v3039 = vld [vmem:[#allocation7 + $0xf0] sm:$0xff]
    %v3040 = vld [vmem:[#allocation7 + $0xf8] sm:$0xff]
    %v3041 = vld [vmem:[#allocation7 + $0x100] sm:$0xff]
    %v3042 = vld [vmem:[#allocation7 + $0x108] sm:$0xff]
    %v3043 = vld [vmem:[#allocation7 + $0x110] sm:$0xff]
    %v3044 = vld [vmem:[#allocation7 + $0x118] sm:$0xff]
    %v3045 = vld [vmem:[#allocation7 + $0x120] sm:$0xff]
    %v3046 = vld [vmem:[#allocation7 + $0x128] sm:$0xff]
    %v3047 = vld [vmem:[#allocation7 + $0x130] sm:$0xff]
    %v3048 = vld [vmem:[#allocation7 + $0x138] sm:$0xff]
    %v3049 = vld [vmem:[#allocation7 + $0x140] sm:$0xff]
    %v3050 = vld [vmem:[#allocation7 + $0x148] sm:$0xff]
    %v3051 = vld [vmem:[#allocation7 + $0x150] sm:$0xff]
    %v3052 = vld [vmem:[#allocation7 + $0x158] sm:$0xff]
    %v3053 = vld [vmem:[#allocation7 + $0x160] sm:$0xff]
    %v3054 = vld [vmem:[#allocation7 + $0x168] sm:$0xff]
    %v3055 = vld [vmem:[#allocation7 + $0x170] sm:$0xff]
    %v3056 = vld [vmem:[#allocation7 + $0x178] sm:$0xff]
    %v3057 = vld [vmem:[#allocation7 + $0x180] sm:$0xff]
    %v3058 = vld [vmem:[#allocation7 + $0x188] sm:$0xff]
    %v3059 = vld [vmem:[#allocation7 + $0x190] sm:$0xff]
    %v3060 = vld [vmem:[#allocation7 + $0x198] sm:$0xff]
    %v3061 = vld [vmem:[#allocation7 + $0x1a0] sm:$0xff]
    %v3062 = vld [vmem:[#allocation7 + $0x1a8] sm:$0xff]
    %v3063 = vld [vmem:[#allocation7 + $0x1b0] sm:$0xff]
    %v3064 = vld [vmem:[#allocation7 + $0x1b8] sm:$0xff]
    %v3065 = vld [vmem:[#allocation7 + $0x1c0] sm:$0xff]
    %v3066 = vld [vmem:[#allocation7 + $0x1c8] sm:$0xff]
    %v3067 = vld [vmem:[#allocation7 + $0x1d0] sm:$0xff]
    %v3068 = vld [vmem:[#allocation7 + $0x1d8] sm:$0xff]
    %v3069 = vld [vmem:[#allocation7 + $0x1e0] sm:$0xff]
    %v3070 = vld [vmem:[#allocation7 + $0x1e8] sm:$0xff]
    %v3071 = vld [vmem:[#allocation7 + $0x1f0] sm:$0xff]
    %v3072 = vld [vmem:[#allocation7 + $0x1f8] sm:$0xff]
    %v3073 = vld [vmem:[%s13] sm:$0xf]
    %v3075 = vlaneseq
    %v3076 = vshrl.u32 %v3075, 7
    %v3077 = vsub.s32 0, %v3076
    %v3078 = vrot.slane %v3073, %v3077
    %v3079 = vlaneseq
    %v3080 = vshrl.u32 %v3079, 7
    %v3081 = vsub.s32 1, %v3080
    %v3082 = vrot.slane %v3073, %v3081
    %v3083 = vlaneseq
    %v3084 = vshrl.u32 %v3083, 7
    %v3085 = vsub.s32 2, %v3084
    %v3086 = vrot.slane %v3073, %v3085
    %v3087 = vlaneseq
    %v3088 = vshrl.u32 %v3087, 7
    %v3089 = vsub.s32 3, %v3088
    %v3090 = vrot.slane %v3073, %v3089
    %v3159 = vunpack.c.l.b16 %v3009
    %v3160 = vunpack.c.h.b16 %v3009
    %v3161 = vunpack.c.l.b16 %v3010
    %v3162 = vunpack.c.h.b16 %v3010
    %v3163 = vunpack.c.l.b16 %v3011
    %v3164 = vunpack.c.h.b16 %v3011
    %v3165 = vunpack.c.l.b16 %v3012
    %v3166 = vunpack.c.h.b16 %v3012
    %v3167 = vunpack.c.l.b16 %v3013
    %v3168 = vunpack.c.h.b16 %v3013
    %v3169 = vunpack.c.l.b16 %v3014
    %v3170 = vunpack.c.h.b16 %v3014
    %v3171 = vunpack.c.l.b16 %v3015
    %v3172 = vunpack.c.h.b16 %v3015
    %v3173 = vunpack.c.l.b16 %v3016
    %v3174 = vunpack.c.h.b16 %v3016
    %v3175 = vunpack.c.l.b16 %v3017
    %v3176 = vunpack.c.h.b16 %v3017
    %v3177 = vunpack.c.l.b16 %v3018
    %v3178 = vunpack.c.h.b16 %v3018
    %v3179 = vunpack.c.l.b16 %v3019
    %v3180 = vunpack.c.h.b16 %v3019
    %v3181 = vunpack.c.l.b16 %v3020
    %v3182 = vunpack.c.h.b16 %v3020
    %v3183 = vunpack.c.l.b16 %v3021
    %v3184 = vunpack.c.h.b16 %v3021
    %v3185 = vunpack.c.l.b16 %v3022
    %v3186 = vunpack.c.h.b16 %v3022
    %v3187 = vunpack.c.l.b16 %v3023
    %v3188 = vunpack.c.h.b16 %v3023
    %v3189 = vunpack.c.l.b16 %v3024
    %v3190 = vunpack.c.h.b16 %v3024
    %v3191 = vunpack.c.l.b16 %v3025
    %v3192 = vunpack.c.h.b16 %v3025
    %v3193 = vunpack.c.l.b16 %v3026
    %v3194 = vunpack.c.h.b16 %v3026
    %v3195 = vunpack.c.l.b16 %v3027
    %v3196 = vunpack.c.h.b16 %v3027
    %v3197 = vunpack.c.l.b16 %v3028
    %v3198 = vunpack.c.h.b16 %v3028
    %v3199 = vunpack.c.l.b16 %v3029
    %v3200 = vunpack.c.h.b16 %v3029
    %v3201 = vunpack.c.l.b16 %v3030
    %v3202 = vunpack.c.h.b16 %v3030
    %v3203 = vunpack.c.l.b16 %v3031
    %v3204 = vunpack.c.h.b16 %v3031
    %v3205 = vunpack.c.l.b16 %v3032
    %v3206 = vunpack.c.h.b16 %v3032
    %v3207 = vunpack.c.l.b16 %v3033
    %v3208 = vunpack.c.h.b16 %v3033
    %v3209 = vunpack.c.l.b16 %v3034
    %v3210 = vunpack.c.h.b16 %v3034
    %v3211 = vunpack.c.l.b16 %v3035
    %v3212 = vunpack.c.h.b16 %v3035
    %v3213 = vunpack.c.l.b16 %v3036
    %v3214 = vunpack.c.h.b16 %v3036
    %v3215 = vunpack.c.l.b16 %v3037
    %v3216 = vunpack.c.h.b16 %v3037
    %v3217 = vunpack.c.l.b16 %v3038
    %v3218 = vunpack.c.h.b16 %v3038
    %v3219 = vunpack.c.l.b16 %v3039
    %v3220 = vunpack.c.h.b16 %v3039
    %v3221 = vunpack.c.l.b16 %v3040
    %v3222 = vunpack.c.h.b16 %v3040
    %v3223 = vunpack.c.l.b16 %v3041
    %v3224 = vunpack.c.h.b16 %v3041
    %v3225 = vunpack.c.l.b16 %v3042
    %v3226 = vunpack.c.h.b16 %v3042
    %v3227 = vunpack.c.l.b16 %v3043
    %v3228 = vunpack.c.h.b16 %v3043
    %v3229 = vunpack.c.l.b16 %v3044
    %v3230 = vunpack.c.h.b16 %v3044
    %v3231 = vunpack.c.l.b16 %v3045
    %v3232 = vunpack.c.h.b16 %v3045
    %v3233 = vunpack.c.l.b16 %v3046
    %v3234 = vunpack.c.h.b16 %v3046
    %v3235 = vunpack.c.l.b16 %v3047
    %v3236 = vunpack.c.h.b16 %v3047
    %v3237 = vunpack.c.l.b16 %v3048
    %v3238 = vunpack.c.h.b16 %v3048
    %v3239 = vunpack.c.l.b16 %v3049
    %v3240 = vunpack.c.h.b16 %v3049
    %v3241 = vunpack.c.l.b16 %v3050
    %v3242 = vunpack.c.h.b16 %v3050
    %v3243 = vunpack.c.l.b16 %v3051
    %v3244 = vunpack.c.h.b16 %v3051
    %v3245 = vunpack.c.l.b16 %v3052
    %v3246 = vunpack.c.h.b16 %v3052
    %v3247 = vunpack.c.l.b16 %v3053
    %v3248 = vunpack.c.h.b16 %v3053
    %v3249 = vunpack.c.l.b16 %v3054
    %v3250 = vunpack.c.h.b16 %v3054
    %v3251 = vunpack.c.l.b16 %v3055
    %v3252 = vunpack.c.h.b16 %v3055
    %v3253 = vunpack.c.l.b16 %v3056
    %v3254 = vunpack.c.h.b16 %v3056
    %v3255 = vunpack.c.l.b16 %v3057
    %v3256 = vunpack.c.h.b16 %v3057
    %v3257 = vunpack.c.l.b16 %v3058
    %v3258 = vunpack.c.h.b16 %v3058
    %v3259 = vunpack.c.l.b16 %v3059
    %v3260 = vunpack.c.h.b16 %v3059
    %v3261 = vunpack.c.l.b16 %v3060
    %v3262 = vunpack.c.h.b16 %v3060
    %v3263 = vunpack.c.l.b16 %v3061
    %v3264 = vunpack.c.h.b16 %v3061
    %v3265 = vunpack.c.l.b16 %v3062
    %v3266 = vunpack.c.h.b16 %v3062
    %v3267 = vunpack.c.l.b16 %v3063
    %v3268 = vunpack.c.h.b16 %v3063
    %v3269 = vunpack.c.l.b16 %v3064
    %v3270 = vunpack.c.h.b16 %v3064
    %v3271 = vunpack.c.l.b16 %v3065
    %v3272 = vunpack.c.h.b16 %v3065
    %v3273 = vunpack.c.l.b16 %v3066
    %v3274 = vunpack.c.h.b16 %v3066
    %v3275 = vunpack.c.l.b16 %v3067
    %v3276 = vunpack.c.h.b16 %v3067
    %v3277 = vunpack.c.l.b16 %v3068
    %v3278 = vunpack.c.h.b16 %v3068
    %v3279 = vunpack.c.l.b16 %v3069
    %v3280 = vunpack.c.h.b16 %v3069
    %v3281 = vunpack.c.l.b16 %v3070
    %v3282 = vunpack.c.h.b16 %v3070
    %v3283 = vunpack.c.l.b16 %v3071
    %v3284 = vunpack.c.h.b16 %v3071
    %v3285 = vunpack.c.l.b16 %v3072
    %v3286 = vunpack.c.h.b16 %v3072
    %v3287 = vpack.c.b16 %v3163, %v3159
    %v3288 = vpack.c.b16 %v3164, %v3160
    %v3289 = vpack.c.b16 %v3165, %v3161
    %v3290 = vpack.c.b16 %v3166, %v3162
    %v3291 = vpack.c.b16 %v3171, %v3167
    %v3292 = vpack.c.b16 %v3172, %v3168
    %v3293 = vpack.c.b16 %v3173, %v3169
    %v3294 = vpack.c.b16 %v3174, %v3170
    %v3295 = vpack.c.b16 %v3179, %v3175
    %v3296 = vpack.c.b16 %v3180, %v3176
    %v3297 = vpack.c.b16 %v3181, %v3177
    %v3298 = vpack.c.b16 %v3182, %v3178
    %v3299 = vpack.c.b16 %v3187, %v3183
    %v3300 = vpack.c.b16 %v3188, %v3184
    %v3301 = vpack.c.b16 %v3189, %v3185
    %v3302 = vpack.c.b16 %v3190, %v3186
    %v3303 = vpack.c.b16 %v3195, %v3191
    %v3304 = vpack.c.b16 %v3196, %v3192
    %v3305 = vpack.c.b16 %v3197, %v3193
    %v3306 = vpack.c.b16 %v3198, %v3194
    %v3307 = vpack.c.b16 %v3203, %v3199
    %v3308 = vpack.c.b16 %v3204, %v3200
    %v3309 = vpack.c.b16 %v3205, %v3201
    %v3310 = vpack.c.b16 %v3206, %v3202
    %v3311 = vpack.c.b16 %v3211, %v3207
    %v3312 = vpack.c.b16 %v3212, %v3208
    %v3313 = vpack.c.b16 %v3213, %v3209
    %v3314 = vpack.c.b16 %v3214, %v3210
    %v3315 = vpack.c.b16 %v3219, %v3215
    %v3316 = vpack.c.b16 %v3220, %v3216
    %v3317 = vpack.c.b16 %v3221, %v3217
    %v3318 = vpack.c.b16 %v3222, %v3218
    %v3319 = vpack.c.b16 %v3227, %v3223
    %v3320 = vpack.c.b16 %v3228, %v3224
    %v3321 = vpack.c.b16 %v3229, %v3225
    %v3322 = vpack.c.b16 %v3230, %v3226
    %v3323 = vpack.c.b16 %v3235, %v3231
    %v3324 = vpack.c.b16 %v3236, %v3232
    %v3325 = vpack.c.b16 %v3237, %v3233
    %v3326 = vpack.c.b16 %v3238, %v3234
    %v3327 = vpack.c.b16 %v3243, %v3239
    %v3328 = vpack.c.b16 %v3244, %v3240
    %v3329 = vpack.c.b16 %v3245, %v3241
    %v3330 = vpack.c.b16 %v3246, %v3242
    %v3331 = vpack.c.b16 %v3251, %v3247
    %v3332 = vpack.c.b16 %v3252, %v3248
    %v3333 = vpack.c.b16 %v3253, %v3249
    %v3334 = vpack.c.b16 %v3254, %v3250
    %v3335 = vpack.c.b16 %v3259, %v3255
    %v3336 = vpack.c.b16 %v3260, %v3256
    %v3337 = vpack.c.b16 %v3261, %v3257
    %v3338 = vpack.c.b16 %v3262, %v3258
    %v3339 = vpack.c.b16 %v3267, %v3263
    %v3340 = vpack.c.b16 %v3268, %v3264
    %v3341 = vpack.c.b16 %v3269, %v3265
    %v3342 = vpack.c.b16 %v3270, %v3266
    %v3343 = vpack.c.b16 %v3275, %v3271
    %v3344 = vpack.c.b16 %v3276, %v3272
    %v3345 = vpack.c.b16 %v3277, %v3273
    %v3346 = vpack.c.b16 %v3278, %v3274
    %v3347 = vpack.c.b16 %v3283, %v3279
    %v3348 = vpack.c.b16 %v3284, %v3280
    %v3349 = vpack.c.b16 %v3285, %v3281
    %v3350 = vpack.c.b16 %v3286, %v3282
    %3415 = vmatprep.subr.bf16.mxu0 %v3288
    %3416 = vmatpush1.bf16.msra.mxu0 %v3287
    %3417 = vmatprep.subr.bf16.mxu0 %v3292
    %3418 = vmatpush1.bf16.msra.mxu0 %v3291
    %3419 = vmatprep.subr.bf16.mxu0 %v3296
    %3420 = vmatpush1.bf16.msra.mxu0 %v3295
    %3421 = vmatprep.subr.bf16.mxu0 %v3300
    %3422 = vmatpush1.bf16.msra.mxu0 %v3299
    %3423 = vmatprep.subr.bf16.mxu0 %v3304
    %3424 = vmatpush1.bf16.msra.mxu0 %v3303
    %3425 = vmatprep.subr.bf16.mxu0 %v3308
    %3426 = vmatpush1.bf16.msra.mxu0 %v3307
    %3427 = vmatprep.subr.bf16.mxu0 %v3312
    %3428 = vmatpush1.bf16.msra.mxu0 %v3311
    %3429 = vmatprep.subr.bf16.mxu0 %v3316
    %3430 = vmatpush1.bf16.msra.mxu0 %v3315
    %3431 = vmatprep.subr.bf16.mxu0 %v3320
    %3432 = vmatpush1.bf16.msra.mxu0 %v3319
    %3433 = vmatprep.subr.bf16.mxu0 %v3324
    %3434 = vmatpush1.bf16.msra.mxu0 %v3323
    %3435 = vmatprep.subr.bf16.mxu0 %v3328
    %3436 = vmatpush1.bf16.msra.mxu0 %v3327
    %3437 = vmatprep.subr.bf16.mxu0 %v3332
    %3438 = vmatpush1.bf16.msra.mxu0 %v3331
    %3439 = vmatprep.subr.bf16.mxu0 %v3336
    %3440 = vmatpush1.bf16.msra.mxu0 %v3335
    %3441 = vmatprep.subr.bf16.mxu0 %v3340
    %3442 = vmatpush1.bf16.msra.mxu0 %v3339
    %3443 = vmatprep.subr.bf16.mxu0 %v3344
    %3444 = vmatpush1.bf16.msra.mxu0 %v3343
    %3445 = vmatprep.subr.bf16.mxu0 %v3348
    %3446 = vmatpush1.bf16.msra.mxu0 %v3347
    %3447 = vmatprep.mubr.bf16.mxu0 %v3008
    %3448 = vmatmul.mubr.bf16.gmra.mrb[0].mxu0 %v3007
    %v3449 = vpop.f32.mrb[0].mxu0
    %v3450 = vadd.f32 %v3078, %v3449
    %v3451 = vpop.f32.mrb[0].mxu0
    %v3452 = vadd.f32 %v3082, %v3451
    %v3453 = vpop.f32.mrb[0].mxu0
    %v3454 = vadd.f32 %v3078, %v3453
    %v3455 = vpop.f32.mrb[0].mxu0
    %v3456 = vadd.f32 %v3082, %v3455
    %3457 = vdwg.mxu0
    %3458 = vmatprep.subr.bf16.mxu0 %v3290
    %3459 = vmatpush1.bf16.msra.mxu0 %v3289
    %3460 = vmatprep.subr.bf16.mxu0 %v3294
    %3461 = vmatpush1.bf16.msra.mxu0 %v3293
    %3462 = vmatprep.subr.bf16.mxu0 %v3298
    %3463 = vmatpush1.bf16.msra.mxu0 %v3297
    %3464 = vmatprep.subr.bf16.mxu0 %v3302
    %3465 = vmatpush1.bf16.msra.mxu0 %v3301
    %3466 = vmatprep.subr.bf16.mxu0 %v3306
    %3467 = vmatpush1.bf16.msra.mxu0 %v3305
    %3468 = vmatprep.subr.bf16.mxu0 %v3310
    %3469 = vmatpush1.bf16.msra.mxu0 %v3309
    %3470 = vmatprep.subr.bf16.mxu0 %v3314
    %3471 = vmatpush1.bf16.msra.mxu0 %v3313
    %3472 = vmatprep.subr.bf16.mxu0 %v3318
    %3473 = vmatpush1.bf16.msra.mxu0 %v3317
    %3474 = vmatprep.subr.bf16.mxu0 %v3322
    %3475 = vmatpush1.bf16.msra.mxu0 %v3321
    %3476 = vmatprep.subr.bf16.mxu0 %v3326
    %3477 = vmatpush1.bf16.msra.mxu0 %v3325
    %3478 = vmatprep.subr.bf16.mxu0 %v3330
    %3479 = vmatpush1.bf16.msra.mxu0 %v3329
    %3480 = vmatprep.subr.bf16.mxu0 %v3334
    %3481 = vmatpush1.bf16.msra.mxu0 %v3333
    %3482 = vmatprep.subr.bf16.mxu0 %v3338
    %3483 = vmatpush1.bf16.msra.mxu0 %v3337
    %3484 = vmatprep.subr.bf16.mxu0 %v3342
    %3485 = vmatpush1.bf16.msra.mxu0 %v3341
    %3486 = vmatprep.subr.bf16.mxu0 %v3346
    %3487 = vmatpush1.bf16.msra.mxu0 %v3345
    %3488 = vmatprep.subr.bf16.mxu0 %v3350
    %3489 = vmatpush1.bf16.msra.mxu0 %v3349
    %3490 = vmatprep.mubr.bf16.mxu0 %v3008
    %3491 = vmatmul.mubr.bf16.gmra.mrb[0].mxu0 %v3007
    %v3492 = vpop.f32.mrb[0].mxu0
    %v3493 = vadd.f32 %v3086, %v3492
    %v3494 = vpop.f32.mrb[0].mxu0
    %v3495 = vadd.f32 %v3090, %v3494
    %v3496 = vpop.f32.mrb[0].mxu0
    %v3497 = vadd.f32 %v3086, %v3496
    %v3498 = vpop.f32.mrb[0].mxu0
    %v3499 = vadd.f32 %v3090, %v3498
    %3500 = vdwg.mxu0
    %v3501 = vmax.f32 %v3450, 0.0
    %v3502 = vmax.f32 %v3452, 0.0
    %v3503 = vmax.f32 %v3493, 0.0
    %v3504 = vmax.f32 %v3495, 0.0
    %v3505 = vmax.f32 %v3454, 0.0
    %v3506 = vmax.f32 %v3456, 0.0
    %v3507 = vmax.f32 %v3497, 0.0
    %v3508 = vmax.f32 %v3499, 0.0
    %v3509 = vpack.c.bf16 %v3505, %v3501
    %v3510 = vpack.c.bf16 %v3506, %v3502
    %v3511 = vpack.c.bf16 %v3507, %v3503
    %v3512 = vpack.c.bf16 %v3508, %v3504
    %v3513 = vld [vmem:[#allocation9] sm:$0xff]
    %v3514 = vld [vmem:[#allocation9 + $0x8] sm:$0xff]
    %v3515 = vld [vmem:[#allocation9 + $0x10] sm:$0xff]
    %v3516 = vld [vmem:[#allocation9 + $0x18] sm:$0xf]
    %v3517 = vld [vmem:[#allocation9 + $0x1c] sm:$0xff]
    %v3518 = vld [vmem:[#allocation9 + $0x24] sm:$0xff]
    %v3519 = vld [vmem:[#allocation9 + $0x2c] sm:$0xff]
    %v3520 = vld [vmem:[#allocation9 + $0x34] sm:$0xf]
    %v3521 = vld [vmem:[#allocation9 + $0x38] sm:$0xff]
    %v3522 = vld [vmem:[#allocation9 + $0x40] sm:$0xff]
    %v3523 = vld [vmem:[#allocation9 + $0x48] sm:$0xff]
    %v3524 = vld [vmem:[#allocation9 + $0x50] sm:$0xf]
    %v3525 = vld [vmem:[#allocation9 + $0x54] sm:$0xff]
    %v3526 = vld [vmem:[#allocation9 + $0x5c] sm:$0xff]
    %v3527 = vld [vmem:[#allocation9 + $0x64] sm:$0xff]
    %v3528 = vld [vmem:[#allocation9 + $0x6c] sm:$0xf]
    %v3529 = vld [vmem:[#allocation9 + $0x70] sm:$0xff]
    %v3530 = vld [vmem:[#allocation9 + $0x78] sm:$0xff]
    %v3531 = vld [vmem:[#allocation9 + $0x80] sm:$0xff]
    %v3532 = vld [vmem:[#allocation9 + $0x88] sm:$0xf]
    %v3533 = vld [vmem:[#allocation9 + $0x8c] sm:$0xff]
    %v3534 = vld [vmem:[#allocation9 + $0x94] sm:$0xff]
    %v3535 = vld [vmem:[#allocation9 + $0x9c] sm:$0xff]
    %v3536 = vld [vmem:[#allocation9 + $0xa4] sm:$0xf]
    %v3537 = vld [vmem:[#allocation9 + $0xa8] sm:$0xff]
    %v3538 = vld [vmem:[#allocation9 + $0xb0] sm:$0xff]
    %v3539 = vld [vmem:[#allocation9 + $0xb8] sm:$0xff]
    %v3540 = vld [vmem:[#allocation9 + $0xc0] sm:$0xf]
    %v3541 = vld [vmem:[#allocation9 + $0xc4] sm:$0xff]
    %v3542 = vld [vmem:[#allocation9 + $0xcc] sm:$0xff]
    %v3543 = vld [vmem:[#allocation9 + $0xd4] sm:$0xff]
    %v3544 = vld [vmem:[#allocation9 + $0xdc] sm:$0xf]
    %v3545 = vld [vmem:[#allocation9 + $0xe0] sm:$0xff]
    %v3546 = vld [vmem:[#allocation9 + $0xe8] sm:$0xff]
    %v3547 = vld [vmem:[#allocation9 + $0xf0] sm:$0xff]
    %v3548 = vld [vmem:[#allocation9 + $0xf8] sm:$0xf]
    %v3549 = vld [vmem:[#allocation9 + $0xfc] sm:$0xff]
    %v3550 = vld [vmem:[#allocation9 + $0x104] sm:$0xff]
    %v3551 = vld [vmem:[#allocation9 + $0x10c] sm:$0xff]
    %v3552 = vld [vmem:[#allocation9 + $0x114] sm:$0xf]
    %v3553 = vld [vmem:[#allocation9 + $0x118] sm:$0xff]
    %v3554 = vld [vmem:[#allocation9 + $0x120] sm:$0xff]
    %v3555 = vld [vmem:[#allocation9 + $0x128] sm:$0xff]
    %v3556 = vld [vmem:[#allocation9 + $0x130] sm:$0xf]
    %v3557 = vld [vmem:[#allocation9 + $0x134] sm:$0xff]
    %v3558 = vld [vmem:[#allocation9 + $0x13c] sm:$0xff]
    %v3559 = vld [vmem:[#allocation9 + $0x144] sm:$0xff]
    %v3560 = vld [vmem:[#allocation9 + $0x14c] sm:$0xf]
    %v3561 = vld [vmem:[#allocation9 + $0x150] sm:$0xff]
    %v3562 = vld [vmem:[#allocation9 + $0x158] sm:$0xff]
    %v3563 = vld [vmem:[#allocation9 + $0x160] sm:$0xff]
    %v3564 = vld [vmem:[#allocation9 + $0x168] sm:$0xf]
    %v3565 = vld [vmem:[#allocation9 + $0x16c] sm:$0xff]
    %v3566 = vld [vmem:[#allocation9 + $0x174] sm:$0xff]
    %v3567 = vld [vmem:[#allocation9 + $0x17c] sm:$0xff]
    %v3568 = vld [vmem:[#allocation9 + $0x184] sm:$0xf]
    %v3569 = vld [vmem:[#allocation9 + $0x188] sm:$0xff]
    %v3570 = vld [vmem:[#allocation9 + $0x190] sm:$0xff]
    %v3571 = vld [vmem:[#allocation9 + $0x198] sm:$0xff]
    %v3572 = vld [vmem:[#allocation9 + $0x1a0] sm:$0xf]
    %v3573 = vld [vmem:[#allocation9 + $0x1a4] sm:$0xff]
    %v3574 = vld [vmem:[#allocation9 + $0x1ac] sm:$0xff]
    %v3575 = vld [vmem:[#allocation9 + $0x1b4] sm:$0xff]
    %v3576 = vld [vmem:[#allocation9 + $0x1bc] sm:$0xf]
    %v3577 = vld [vmem:[#allocation9 + $0x1c0] sm:$0xff]
    %v3578 = vld [vmem:[#allocation9 + $0x1c8] sm:$0xff]
    %v3579 = vld [vmem:[#allocation9 + $0x1d0] sm:$0xff]
    %v3580 = vld [vmem:[#allocation9 + $0x1d8] sm:$0xf]
    %v3581 = vld [vmem:[#allocation9 + $0x1dc] sm:$0xff]
    %v3582 = vld [vmem:[#allocation9 + $0x1e4] sm:$0xff]
    %v3583 = vld [vmem:[#allocation9 + $0x1ec] sm:$0xff]
    %v3584 = vld [vmem:[#allocation9 + $0x1f4] sm:$0xf]
    %v3585 = vld [vmem:[#allocation9 + $0x1f8] sm:$0xff]
    %v3586 = vld [vmem:[#allocation9 + $0x200] sm:$0xff]
    %v3587 = vld [vmem:[#allocation9 + $0x208] sm:$0xff]
    %v3588 = vld [vmem:[#allocation9 + $0x210] sm:$0xf]
    %v3589 = vld [vmem:[#allocation9 + $0x214] sm:$0xff]
    %v3590 = vld [vmem:[#allocation9 + $0x21c] sm:$0xff]
    %v3591 = vld [vmem:[#allocation9 + $0x224] sm:$0xff]
    %v3592 = vld [vmem:[#allocation9 + $0x22c] sm:$0xf]
    %v3593 = vld [vmem:[#allocation9 + $0x230] sm:$0xff]
    %v3594 = vld [vmem:[#allocation9 + $0x238] sm:$0xff]
    %v3595 = vld [vmem:[#allocation9 + $0x240] sm:$0xff]
    %v3596 = vld [vmem:[#allocation9 + $0x248] sm:$0xf]
    %v3597 = vld [vmem:[#allocation9 + $0x24c] sm:$0xff]
    %v3598 = vld [vmem:[#allocation9 + $0x254] sm:$0xff]
    %v3599 = vld [vmem:[#allocation9 + $0x25c] sm:$0xff]
    %v3600 = vld [vmem:[#allocation9 + $0x264] sm:$0xf]
    %v3601 = vld [vmem:[#allocation9 + $0x268] sm:$0xff]
    %v3602 = vld [vmem:[#allocation9 + $0x270] sm:$0xff]
    %v3603 = vld [vmem:[#allocation9 + $0x278] sm:$0xff]
    %v3604 = vld [vmem:[#allocation9 + $0x280] sm:$0xf]
    %v3605 = vld [vmem:[#allocation9 + $0x284] sm:$0xff]
    %v3606 = vld [vmem:[#allocation9 + $0x28c] sm:$0xff]
    %v3607 = vld [vmem:[#allocation9 + $0x294] sm:$0xff]
    %v3608 = vld [vmem:[#allocation9 + $0x29c] sm:$0xf]
    %v3609 = vld [vmem:[#allocation9 + $0x2a0] sm:$0xff]
    %v3610 = vld [vmem:[#allocation9 + $0x2a8] sm:$0xff]
    %v3611 = vld [vmem:[#allocation9 + $0x2b0] sm:$0xff]
    %v3612 = vld [vmem:[#allocation9 + $0x2b8] sm:$0xf]
    %v3613 = vld [vmem:[#allocation9 + $0x2bc] sm:$0xff]
    %v3614 = vld [vmem:[#allocation9 + $0x2c4] sm:$0xff]
    %v3615 = vld [vmem:[#allocation9 + $0x2cc] sm:$0xff]
    %v3616 = vld [vmem:[#allocation9 + $0x2d4] sm:$0xf]
    %v3617 = vld [vmem:[#allocation9 + $0x2d8] sm:$0xff]
    %v3618 = vld [vmem:[#allocation9 + $0x2e0] sm:$0xff]
    %v3619 = vld [vmem:[#allocation9 + $0x2e8] sm:$0xff]
    %v3620 = vld [vmem:[#allocation9 + $0x2f0] sm:$0xf]
    %v3621 = vld [vmem:[#allocation9 + $0x2f4] sm:$0xff]
    %v3622 = vld [vmem:[#allocation9 + $0x2fc] sm:$0xff]
    %v3623 = vld [vmem:[#allocation9 + $0x304] sm:$0xff]
    %v3624 = vld [vmem:[#allocation9 + $0x30c] sm:$0xf]
    %v3625 = vld [vmem:[#allocation9 + $0x310] sm:$0xff]
    %v3626 = vld [vmem:[#allocation9 + $0x318] sm:$0xff]
    %v3627 = vld [vmem:[#allocation9 + $0x320] sm:$0xff]
    %v3628 = vld [vmem:[#allocation9 + $0x328] sm:$0xf]
    %v3629 = vld [vmem:[#allocation9 + $0x32c] sm:$0xff]
    %v3630 = vld [vmem:[#allocation9 + $0x334] sm:$0xff]
    %v3631 = vld [vmem:[#allocation9 + $0x33c] sm:$0xff]
    %v3632 = vld [vmem:[#allocation9 + $0x344] sm:$0xf]
    %v3633 = vld [vmem:[#allocation9 + $0x348] sm:$0xff]
    %v3634 = vld [vmem:[#allocation9 + $0x350] sm:$0xff]
    %v3635 = vld [vmem:[#allocation9 + $0x358] sm:$0xff]
    %v3636 = vld [vmem:[#allocation9 + $0x360] sm:$0xf]
    %v3637 = vld [vmem:[#allocation9 + $0x364] sm:$0xff]
    %v3638 = vld [vmem:[#allocation9 + $0x36c] sm:$0xff]
    %v3639 = vld [vmem:[#allocation9 + $0x374] sm:$0xff]
    %v3640 = vld [vmem:[#allocation9 + $0x37c] sm:$0xf]
    %v3641 = vld [vmem:[#allocation9 + $0x380] sm:$0xff]
    %v3642 = vld [vmem:[#allocation9 + $0x388] sm:$0xff]
    %v3643 = vld [vmem:[#allocation9 + $0x390] sm:$0xff]
    %v3644 = vld [vmem:[#allocation9 + $0x398] sm:$0xf]
    %v3645 = vld [vmem:[#allocation9 + $0x39c] sm:$0xff]
    %v3646 = vld [vmem:[#allocation9 + $0x3a4] sm:$0xff]
    %v3647 = vld [vmem:[#allocation9 + $0x3ac] sm:$0xff]
    %v3648 = vld [vmem:[#allocation9 + $0x3b4] sm:$0xf]
    %v3649 = vld [vmem:[#allocation9 + $0x3b8] sm:$0xff]
    %v3650 = vld [vmem:[#allocation9 + $0x3c0] sm:$0xff]
    %v3651 = vld [vmem:[#allocation9 + $0x3c8] sm:$0xff]
    %v3652 = vld [vmem:[#allocation9 + $0x3d0] sm:$0xf]
    %v3653 = vld [vmem:[#allocation9 + $0x3d4] sm:$0xff]
    %v3654 = vld [vmem:[#allocation9 + $0x3dc] sm:$0xff]
    %v3655 = vld [vmem:[#allocation9 + $0x3e4] sm:$0xff]
    %v3656 = vld [vmem:[#allocation9 + $0x3ec] sm:$0xf]
    %v3657 = vld [vmem:[#allocation9 + $0x3f0] sm:$0xff]
    %v3658 = vld [vmem:[#allocation9 + $0x3f8] sm:$0xff]
    %v3659 = vld [vmem:[#allocation9 + $0x400] sm:$0xff]
    %v3660 = vld [vmem:[#allocation9 + $0x408] sm:$0xf]
    %v3661 = vld [vmem:[#allocation9 + $0x40c] sm:$0xff]
    %v3662 = vld [vmem:[#allocation9 + $0x414] sm:$0xff]
    %v3663 = vld [vmem:[#allocation9 + $0x41c] sm:$0xff]
    %v3664 = vld [vmem:[#allocation9 + $0x424] sm:$0xf]
    %v3665 = vld [vmem:[#allocation9 + $0x428] sm:$0xff]
    %v3666 = vld [vmem:[#allocation9 + $0x430] sm:$0xff]
    %v3667 = vld [vmem:[#allocation9 + $0x438] sm:$0xff]
    %v3668 = vld [vmem:[#allocation9 + $0x440] sm:$0xf]
    %v3669 = vld [vmem:[#allocation9 + $0x444] sm:$0xff]
    %v3670 = vld [vmem:[#allocation9 + $0x44c] sm:$0xff]
    %v3671 = vld [vmem:[#allocation9 + $0x454] sm:$0xff]
    %v3672 = vld [vmem:[#allocation9 + $0x45c] sm:$0xf]
    %v3673 = vld [vmem:[#allocation9 + $0x460] sm:$0xff]
    %v3674 = vld [vmem:[#allocation9 + $0x468] sm:$0xff]
    %v3675 = vld [vmem:[#allocation9 + $0x470] sm:$0xff]
    %v3676 = vld [vmem:[#allocation9 + $0x478] sm:$0xf]
    %v3677 = vld [vmem:[#allocation9 + $0x47c] sm:$0xff]
    %v3678 = vld [vmem:[#allocation9 + $0x484] sm:$0xff]
    %v3679 = vld [vmem:[#allocation9 + $0x48c] sm:$0xff]
    %v3680 = vld [vmem:[#allocation9 + $0x494] sm:$0xf]
    %v3681 = vld [vmem:[#allocation9 + $0x498] sm:$0xff]
    %v3682 = vld [vmem:[#allocation9 + $0x4a0] sm:$0xff]
    %v3683 = vld [vmem:[#allocation9 + $0x4a8] sm:$0xff]
    %v3684 = vld [vmem:[#allocation9 + $0x4b0] sm:$0xf]
    %v3685 = vld [vmem:[#allocation9 + $0x4b4] sm:$0xff]
    %v3686 = vld [vmem:[#allocation9 + $0x4bc] sm:$0xff]
    %v3687 = vld [vmem:[#allocation9 + $0x4c4] sm:$0xff]
    %v3688 = vld [vmem:[#allocation9 + $0x4cc] sm:$0xf]
    %v3689 = vld [vmem:[#allocation9 + $0x4d0] sm:$0xff]
    %v3690 = vld [vmem:[#allocation9 + $0x4d8] sm:$0xff]
    %v3691 = vld [vmem:[#allocation9 + $0x4e0] sm:$0xff]
    %v3692 = vld [vmem:[#allocation9 + $0x4e8] sm:$0xf]
    %v3693 = vld [vmem:[#allocation9 + $0x4ec] sm:$0xff]
    %v3694 = vld [vmem:[#allocation9 + $0x4f4] sm:$0xff]
    %v3695 = vld [vmem:[#allocation9 + $0x4fc] sm:$0xff]
    %v3696 = vld [vmem:[#allocation9 + $0x504] sm:$0xf]
    %v3697 = vld [vmem:[#allocation9 + $0x508] sm:$0xff]
    %v3698 = vld [vmem:[#allocation9 + $0x510] sm:$0xff]
    %v3699 = vld [vmem:[#allocation9 + $0x518] sm:$0xff]
    %v3700 = vld [vmem:[#allocation9 + $0x520] sm:$0xf]
    %v3701 = vld [vmem:[#allocation9 + $0x524] sm:$0xff]
    %v3702 = vld [vmem:[#allocation9 + $0x52c] sm:$0xff]
    %v3703 = vld [vmem:[#allocation9 + $0x534] sm:$0xff]
    %v3704 = vld [vmem:[#allocation9 + $0x53c] sm:$0xf]
    %v3705 = vld [vmem:[#allocation9 + $0x540] sm:$0xff]
    %v3706 = vld [vmem:[#allocation9 + $0x548] sm:$0xff]
    %v3707 = vld [vmem:[#allocation9 + $0x550] sm:$0xff]
    %v3708 = vld [vmem:[#allocation9 + $0x558] sm:$0xf]
    %v3709 = vld [vmem:[#allocation9 + $0x55c] sm:$0xff]
    %v3710 = vld [vmem:[#allocation9 + $0x564] sm:$0xff]
    %v3711 = vld [vmem:[#allocation9 + $0x56c] sm:$0xff]
    %v3712 = vld [vmem:[#allocation9 + $0x574] sm:$0xf]
    %v3713 = vld [vmem:[#allocation9 + $0x578] sm:$0xff]
    %v3714 = vld [vmem:[#allocation9 + $0x580] sm:$0xff]
    %v3715 = vld [vmem:[#allocation9 + $0x588] sm:$0xff]
    %v3716 = vld [vmem:[#allocation9 + $0x590] sm:$0xf]
    %v3717 = vld [vmem:[#allocation9 + $0x594] sm:$0xff]
    %v3718 = vld [vmem:[#allocation9 + $0x59c] sm:$0xff]
    %v3719 = vld [vmem:[#allocation9 + $0x5a4] sm:$0xff]
    %v3720 = vld [vmem:[#allocation9 + $0x5ac] sm:$0xf]
    %v3721 = vld [vmem:[#allocation9 + $0x5b0] sm:$0xff]
    %v3722 = vld [vmem:[#allocation9 + $0x5b8] sm:$0xff]
    %v3723 = vld [vmem:[#allocation9 + $0x5c0] sm:$0xff]
    %v3724 = vld [vmem:[#allocation9 + $0x5c8] sm:$0xf]
    %v3725 = vld [vmem:[#allocation9 + $0x5cc] sm:$0xff]
    %v3726 = vld [vmem:[#allocation9 + $0x5d4] sm:$0xff]
    %v3727 = vld [vmem:[#allocation9 + $0x5dc] sm:$0xff]
    %v3728 = vld [vmem:[#allocation9 + $0x5e4] sm:$0xf]
    %v3729 = vld [vmem:[#allocation9 + $0x5e8] sm:$0xff]
    %v3730 = vld [vmem:[#allocation9 + $0x5f0] sm:$0xff]
    %v3731 = vld [vmem:[#allocation9 + $0x5f8] sm:$0xff]
    %v3732 = vld [vmem:[#allocation9 + $0x600] sm:$0xf]
    %v3733 = vld [vmem:[#allocation9 + $0x604] sm:$0xff]
    %v3734 = vld [vmem:[#allocation9 + $0x60c] sm:$0xff]
    %v3735 = vld [vmem:[#allocation9 + $0x614] sm:$0xff]
    %v3736 = vld [vmem:[#allocation9 + $0x61c] sm:$0xf]
    %v3737 = vld [vmem:[#allocation9 + $0x620] sm:$0xff]
    %v3738 = vld [vmem:[#allocation9 + $0x628] sm:$0xff]
    %v3739 = vld [vmem:[#allocation9 + $0x630] sm:$0xff]
    %v3740 = vld [vmem:[#allocation9 + $0x638] sm:$0xf]
    %v3741 = vld [vmem:[#allocation9 + $0x63c] sm:$0xff]
    %v3742 = vld [vmem:[#allocation9 + $0x644] sm:$0xff]
    %v3743 = vld [vmem:[#allocation9 + $0x64c] sm:$0xff]
    %v3744 = vld [vmem:[#allocation9 + $0x654] sm:$0xf]
    %v3745 = vld [vmem:[#allocation9 + $0x658] sm:$0xff]
    %v3746 = vld [vmem:[#allocation9 + $0x660] sm:$0xff]
    %v3747 = vld [vmem:[#allocation9 + $0x668] sm:$0xff]
    %v3748 = vld [vmem:[#allocation9 + $0x670] sm:$0xf]
    %v3749 = vld [vmem:[#allocation9 + $0x674] sm:$0xff]
    %v3750 = vld [vmem:[#allocation9 + $0x67c] sm:$0xff]
    %v3751 = vld [vmem:[#allocation9 + $0x684] sm:$0xff]
    %v3752 = vld [vmem:[#allocation9 + $0x68c] sm:$0xf]
    %v3753 = vld [vmem:[#allocation9 + $0x690] sm:$0xff]
    %v3754 = vld [vmem:[#allocation9 + $0x698] sm:$0xff]
    %v3755 = vld [vmem:[#allocation9 + $0x6a0] sm:$0xff]
    %v3756 = vld [vmem:[#allocation9 + $0x6a8] sm:$0xf]
    %v3757 = vld [vmem:[#allocation9 + $0x6ac] sm:$0xff]
    %v3758 = vld [vmem:[#allocation9 + $0x6b4] sm:$0xff]
    %v3759 = vld [vmem:[#allocation9 + $0x6bc] sm:$0xff]
    %v3760 = vld [vmem:[#allocation9 + $0x6c4] sm:$0xf]
    %v3761 = vld [vmem:[#allocation9 + $0x6c8] sm:$0xff]
    %v3762 = vld [vmem:[#allocation9 + $0x6d0] sm:$0xff]
    %v3763 = vld [vmem:[#allocation9 + $0x6d8] sm:$0xff]
    %v3764 = vld [vmem:[#allocation9 + $0x6e0] sm:$0xf]
    %v3765 = vld [vmem:[#allocation9 + $0x6e4] sm:$0xff]
    %v3766 = vld [vmem:[#allocation9 + $0x6ec] sm:$0xff]
    %v3767 = vld [vmem:[#allocation9 + $0x6f4] sm:$0xff]
    %v3768 = vld [vmem:[#allocation9 + $0x6fc] sm:$0xf]
    %v3769 = vld [vmem:[%s15] sm:$0xff]
    %v3771 = vlaneseq
    %v3772 = vshrl.u32 %v3771, 7
    %v3773 = vsub.s32 0, %v3772
    %v3774 = vrot.slane %v3769, %v3773
    %v3775 = vlaneseq
    %v3776 = vshrl.u32 %v3775, 7
    %v3777 = vsub.s32 1, %v3776
    %v3778 = vrot.slane %v3769, %v3777
    %v3779 = vlaneseq
    %v3780 = vshrl.u32 %v3779, 7
    %v3781 = vsub.s32 2, %v3780
    %v3782 = vrot.slane %v3769, %v3781
    %v3783 = vlaneseq
    %v3784 = vshrl.u32 %v3783, 7
    %v3785 = vsub.s32 3, %v3784
    %v3786 = vrot.slane %v3769, %v3785
    %v3787 = vlaneseq
    %v3788 = vshrl.u32 %v3787, 7
    %v3789 = vsub.s32 4, %v3788
    %v3790 = vrot.slane %v3769, %v3789
    %v3791 = vlaneseq
    %v3792 = vshrl.u32 %v3791, 7
    %v3793 = vsub.s32 5, %v3792
    %v3794 = vrot.slane %v3769, %v3793
    %v3795 = vlaneseq
    %v3796 = vshrl.u32 %v3795, 7
    %v3797 = vsub.s32 6, %v3796
    %v3798 = vrot.slane %v3769, %v3797
    %v4062 = vunpack.c.l.b16 %v3513
    %v4063 = vunpack.c.h.b16 %v3513
    %v4064 = vunpack.c.l.b16 %v3514
    %v4065 = vunpack.c.h.b16 %v3514
    %v4066 = vunpack.c.l.b16 %v3515
    %v4067 = vunpack.c.h.b16 %v3515
    %v4068 = vunpack.c.l.b16 %v3516
    %v4069 = vunpack.c.l.b16 %v3517
    %v4070 = vunpack.c.h.b16 %v3517
    %v4071 = vunpack.c.l.b16 %v3518
    %v4072 = vunpack.c.h.b16 %v3518
    %v4073 = vunpack.c.l.b16 %v3519
    %v4074 = vunpack.c.h.b16 %v3519
    %v4075 = vunpack.c.l.b16 %v3520
    %v4076 = vunpack.c.l.b16 %v3521
    %v4077 = vunpack.c.h.b16 %v3521
    %v4078 = vunpack.c.l.b16 %v3522
    %v4079 = vunpack.c.h.b16 %v3522
    %v4080 = vunpack.c.l.b16 %v3523
    %v4081 = vunpack.c.h.b16 %v3523
    %v4082 = vunpack.c.l.b16 %v3524
    %v4083 = vunpack.c.l.b16 %v3525
    %v4084 = vunpack.c.h.b16 %v3525
    %v4085 = vunpack.c.l.b16 %v3526
    %v4086 = vunpack.c.h.b16 %v3526
    %v4087 = vunpack.c.l.b16 %v3527
    %v4088 = vunpack.c.h.b16 %v3527
    %v4089 = vunpack.c.l.b16 %v3528
    %v4090 = vunpack.c.l.b16 %v3529
    %v4091 = vunpack.c.h.b16 %v3529
    %v4092 = vunpack.c.l.b16 %v3530
    %v4093 = vunpack.c.h.b16 %v3530
    %v4094 = vunpack.c.l.b16 %v3531
    %v4095 = vunpack.c.h.b16 %v3531
    %v4096 = vunpack.c.l.b16 %v3532
    %v4097 = vunpack.c.l.b16 %v3533
    %v4098 = vunpack.c.h.b16 %v3533
    %v4099 = vunpack.c.l.b16 %v3534
    %v4100 = vunpack.c.h.b16 %v3534
    %v4101 = vunpack.c.l.b16 %v3535
    %v4102 = vunpack.c.h.b16 %v3535
    %v4103 = vunpack.c.l.b16 %v3536
    %v4104 = vunpack.c.l.b16 %v3537
    %v4105 = vunpack.c.h.b16 %v3537
    %v4106 = vunpack.c.l.b16 %v3538
    %v4107 = vunpack.c.h.b16 %v3538
    %v4108 = vunpack.c.l.b16 %v3539
    %v4109 = vunpack.c.h.b16 %v3539
    %v4110 = vunpack.c.l.b16 %v3540
    %v4111 = vunpack.c.l.b16 %v3541
    %v4112 = vunpack.c.h.b16 %v3541
    %v4113 = vunpack.c.l.b16 %v3542
    %v4114 = vunpack.c.h.b16 %v3542
    %v4115 = vunpack.c.l.b16 %v3543
    %v4116 = vunpack.c.h.b16 %v3543
    %v4117 = vunpack.c.l.b16 %v3544
    %v4118 = vunpack.c.l.b16 %v3545
    %v4119 = vunpack.c.h.b16 %v3545
    %v4120 = vunpack.c.l.b16 %v3546
    %v4121 = vunpack.c.h.b16 %v3546
    %v4122 = vunpack.c.l.b16 %v3547
    %v4123 = vunpack.c.h.b16 %v3547
    %v4124 = vunpack.c.l.b16 %v3548
    %v4125 = vunpack.c.l.b16 %v3549
    %v4126 = vunpack.c.h.b16 %v3549
    %v4127 = vunpack.c.l.b16 %v3550
    %v4128 = vunpack.c.h.b16 %v3550
    %v4129 = vunpack.c.l.b16 %v3551
    %v4130 = vunpack.c.h.b16 %v3551
    %v4131 = vunpack.c.l.b16 %v3552
    %v4132 = vunpack.c.l.b16 %v3553
    %v4133 = vunpack.c.h.b16 %v3553
    %v4134 = vunpack.c.l.b16 %v3554
    %v4135 = vunpack.c.h.b16 %v3554
    %v4136 = vunpack.c.l.b16 %v3555
    %v4137 = vunpack.c.h.b16 %v3555
    %v4138 = vunpack.c.l.b16 %v3556
    %v4139 = vunpack.c.l.b16 %v3557
    %v4140 = vunpack.c.h.b16 %v3557
    %v4141 = vunpack.c.l.b16 %v3558
    %v4142 = vunpack.c.h.b16 %v3558
    %v4143 = vunpack.c.l.b16 %v3559
    %v4144 = vunpack.c.h.b16 %v3559
    %v4145 = vunpack.c.l.b16 %v3560
    %v4146 = vunpack.c.l.b16 %v3561
    %v4147 = vunpack.c.h.b16 %v3561
    %v4148 = vunpack.c.l.b16 %v3562
    %v4149 = vunpack.c.h.b16 %v3562
    %v4150 = vunpack.c.l.b16 %v3563
    %v4151 = vunpack.c.h.b16 %v3563
    %v4152 = vunpack.c.l.b16 %v3564
    %v4153 = vunpack.c.l.b16 %v3565
    %v4154 = vunpack.c.h.b16 %v3565
    %v4155 = vunpack.c.l.b16 %v3566
    %v4156 = vunpack.c.h.b16 %v3566
    %v4157 = vunpack.c.l.b16 %v3567
    %v4158 = vunpack.c.h.b16 %v3567
    %v4159 = vunpack.c.l.b16 %v3568
    %v4160 = vunpack.c.l.b16 %v3569
    %v4161 = vunpack.c.h.b16 %v3569
    %v4162 = vunpack.c.l.b16 %v3570
    %v4163 = vunpack.c.h.b16 %v3570
    %v4164 = vunpack.c.l.b16 %v3571
    %v4165 = vunpack.c.h.b16 %v3571
    %v4166 = vunpack.c.l.b16 %v3572
    %v4167 = vunpack.c.l.b16 %v3573
    %v4168 = vunpack.c.h.b16 %v3573
    %v4169 = vunpack.c.l.b16 %v3574
    %v4170 = vunpack.c.h.b16 %v3574
    %v4171 = vunpack.c.l.b16 %v3575
    %v4172 = vunpack.c.h.b16 %v3575
    %v4173 = vunpack.c.l.b16 %v3576
    %v4174 = vunpack.c.l.b16 %v3577
    %v4175 = vunpack.c.h.b16 %v3577
    %v4176 = vunpack.c.l.b16 %v3578
    %v4177 = vunpack.c.h.b16 %v3578
    %v4178 = vunpack.c.l.b16 %v3579
    %v4179 = vunpack.c.h.b16 %v3579
    %v4180 = vunpack.c.l.b16 %v3580
    %v4181 = vunpack.c.l.b16 %v3581
    %v4182 = vunpack.c.h.b16 %v3581
    %v4183 = vunpack.c.l.b16 %v3582
    %v4184 = vunpack.c.h.b16 %v3582
    %v4185 = vunpack.c.l.b16 %v3583
    %v4186 = vunpack.c.h.b16 %v3583
    %v4187 = vunpack.c.l.b16 %v3584
    %v4188 = vunpack.c.l.b16 %v3585
    %v4189 = vunpack.c.h.b16 %v3585
    %v4190 = vunpack.c.l.b16 %v3586
    %v4191 = vunpack.c.h.b16 %v3586
    %v4192 = vunpack.c.l.b16 %v3587
    %v4193 = vunpack.c.h.b16 %v3587
    %v4194 = vunpack.c.l.b16 %v3588
    %v4195 = vunpack.c.l.b16 %v3589
    %v4196 = vunpack.c.h.b16 %v3589
    %v4197 = vunpack.c.l.b16 %v3590
    %v4198 = vunpack.c.h.b16 %v3590
    %v4199 = vunpack.c.l.b16 %v3591
    %v4200 = vunpack.c.h.b16 %v3591
    %v4201 = vunpack.c.l.b16 %v3592
    %v4202 = vunpack.c.l.b16 %v3593
    %v4203 = vunpack.c.h.b16 %v3593
    %v4204 = vunpack.c.l.b16 %v3594
    %v4205 = vunpack.c.h.b16 %v3594
    %v4206 = vunpack.c.l.b16 %v3595
    %v4207 = vunpack.c.h.b16 %v3595
    %v4208 = vunpack.c.l.b16 %v3596
    %v4209 = vunpack.c.l.b16 %v3597
    %v4210 = vunpack.c.h.b16 %v3597
    %v4211 = vunpack.c.l.b16 %v3598
    %v4212 = vunpack.c.h.b16 %v3598
    %v4213 = vunpack.c.l.b16 %v3599
    %v4214 = vunpack.c.h.b16 %v3599
    %v4215 = vunpack.c.l.b16 %v3600
    %v4216 = vunpack.c.l.b16 %v3601
    %v4217 = vunpack.c.h.b16 %v3601
    %v4218 = vunpack.c.l.b16 %v3602
    %v4219 = vunpack.c.h.b16 %v3602
    %v4220 = vunpack.c.l.b16 %v3603
    %v4221 = vunpack.c.h.b16 %v3603
    %v4222 = vunpack.c.l.b16 %v3604
    %v4223 = vunpack.c.l.b16 %v3605
    %v4224 = vunpack.c.h.b16 %v3605
    %v4225 = vunpack.c.l.b16 %v3606
    %v4226 = vunpack.c.h.b16 %v3606
    %v4227 = vunpack.c.l.b16 %v3607
    %v4228 = vunpack.c.h.b16 %v3607
    %v4229 = vunpack.c.l.b16 %v3608
    %v4230 = vunpack.c.l.b16 %v3609
    %v4231 = vunpack.c.h.b16 %v3609
    %v4232 = vunpack.c.l.b16 %v3610
    %v4233 = vunpack.c.h.b16 %v3610
    %v4234 = vunpack.c.l.b16 %v3611
    %v4235 = vunpack.c.h.b16 %v3611
    %v4236 = vunpack.c.l.b16 %v3612
    %v4237 = vunpack.c.l.b16 %v3613
    %v4238 = vunpack.c.h.b16 %v3613
    %v4239 = vunpack.c.l.b16 %v3614
    %v4240 = vunpack.c.h.b16 %v3614
    %v4241 = vunpack.c.l.b16 %v3615
    %v4242 = vunpack.c.h.b16 %v3615
    %v4243 = vunpack.c.l.b16 %v3616
    %v4244 = vunpack.c.l.b16 %v3617
    %v4245 = vunpack.c.h.b16 %v3617
    %v4246 = vunpack.c.l.b16 %v3618
    %v4247 = vunpack.c.h.b16 %v3618
    %v4248 = vunpack.c.l.b16 %v3619
    %v4249 = vunpack.c.h.b16 %v3619
    %v4250 = vunpack.c.l.b16 %v3620
    %v4251 = vunpack.c.l.b16 %v3621
    %v4252 = vunpack.c.h.b16 %v3621
    %v4253 = vunpack.c.l.b16 %v3622
    %v4254 = vunpack.c.h.b16 %v3622
    %v4255 = vunpack.c.l.b16 %v3623
    %v4256 = vunpack.c.h.b16 %v3623
    %v4257 = vunpack.c.l.b16 %v3624
    %v4258 = vunpack.c.l.b16 %v3625
    %v4259 = vunpack.c.h.b16 %v3625
    %v4260 = vunpack.c.l.b16 %v3626
    %v4261 = vunpack.c.h.b16 %v3626
    %v4262 = vunpack.c.l.b16 %v3627
    %v4263 = vunpack.c.h.b16 %v3627
    %v4264 = vunpack.c.l.b16 %v3628
    %v4265 = vunpack.c.l.b16 %v3629
    %v4266 = vunpack.c.h.b16 %v3629
    %v4267 = vunpack.c.l.b16 %v3630
    %v4268 = vunpack.c.h.b16 %v3630
    %v4269 = vunpack.c.l.b16 %v3631
    %v4270 = vunpack.c.h.b16 %v3631
    %v4271 = vunpack.c.l.b16 %v3632
    %v4272 = vunpack.c.l.b16 %v3633
    %v4273 = vunpack.c.h.b16 %v3633
    %v4274 = vunpack.c.l.b16 %v3634
    %v4275 = vunpack.c.h.b16 %v3634
    %v4276 = vunpack.c.l.b16 %v3635
    %v4277 = vunpack.c.h.b16 %v3635
    %v4278 = vunpack.c.l.b16 %v3636
    %v4279 = vunpack.c.l.b16 %v3637
    %v4280 = vunpack.c.h.b16 %v3637
    %v4281 = vunpack.c.l.b16 %v3638
    %v4282 = vunpack.c.h.b16 %v3638
    %v4283 = vunpack.c.l.b16 %v3639
    %v4284 = vunpack.c.h.b16 %v3639
    %v4285 = vunpack.c.l.b16 %v3640
    %v4286 = vunpack.c.l.b16 %v3641
    %v4287 = vunpack.c.h.b16 %v3641
    %v4288 = vunpack.c.l.b16 %v3642
    %v4289 = vunpack.c.h.b16 %v3642
    %v4290 = vunpack.c.l.b16 %v3643
    %v4291 = vunpack.c.h.b16 %v3643
    %v4292 = vunpack.c.l.b16 %v3644
    %v4293 = vunpack.c.l.b16 %v3645
    %v4294 = vunpack.c.h.b16 %v3645
    %v4295 = vunpack.c.l.b16 %v3646
    %v4296 = vunpack.c.h.b16 %v3646
    %v4297 = vunpack.c.l.b16 %v3647
    %v4298 = vunpack.c.h.b16 %v3647
    %v4299 = vunpack.c.l.b16 %v3648
    %v4300 = vunpack.c.l.b16 %v3649
    %v4301 = vunpack.c.h.b16 %v3649
    %v4302 = vunpack.c.l.b16 %v3650
    %v4303 = vunpack.c.h.b16 %v3650
    %v4304 = vunpack.c.l.b16 %v3651
    %v4305 = vunpack.c.h.b16 %v3651
    %v4306 = vunpack.c.l.b16 %v3652
    %v4307 = vunpack.c.l.b16 %v3653
    %v4308 = vunpack.c.h.b16 %v3653
    %v4309 = vunpack.c.l.b16 %v3654
    %v4310 = vunpack.c.h.b16 %v3654
    %v4311 = vunpack.c.l.b16 %v3655
    %v4312 = vunpack.c.h.b16 %v3655
    %v4313 = vunpack.c.l.b16 %v3656
    %v4314 = vunpack.c.l.b16 %v3657
    %v4315 = vunpack.c.h.b16 %v3657
    %v4316 = vunpack.c.l.b16 %v3658
    %v4317 = vunpack.c.h.b16 %v3658
    %v4318 = vunpack.c.l.b16 %v3659
    %v4319 = vunpack.c.h.b16 %v3659
    %v4320 = vunpack.c.l.b16 %v3660
    %v4321 = vunpack.c.l.b16 %v3661
    %v4322 = vunpack.c.h.b16 %v3661
    %v4323 = vunpack.c.l.b16 %v3662
    %v4324 = vunpack.c.h.b16 %v3662
    %v4325 = vunpack.c.l.b16 %v3663
    %v4326 = vunpack.c.h.b16 %v3663
    %v4327 = vunpack.c.l.b16 %v3664
    %v4328 = vunpack.c.l.b16 %v3665
    %v4329 = vunpack.c.h.b16 %v3665
    %v4330 = vunpack.c.l.b16 %v3666
    %v4331 = vunpack.c.h.b16 %v3666
    %v4332 = vunpack.c.l.b16 %v3667
    %v4333 = vunpack.c.h.b16 %v3667
    %v4334 = vunpack.c.l.b16 %v3668
    %v4335 = vunpack.c.l.b16 %v3669
    %v4336 = vunpack.c.h.b16 %v3669
    %v4337 = vunpack.c.l.b16 %v3670
    %v4338 = vunpack.c.h.b16 %v3670
    %v4339 = vunpack.c.l.b16 %v3671
    %v4340 = vunpack.c.h.b16 %v3671
    %v4341 = vunpack.c.l.b16 %v3672
    %v4342 = vunpack.c.l.b16 %v3673
    %v4343 = vunpack.c.h.b16 %v3673
    %v4344 = vunpack.c.l.b16 %v3674
    %v4345 = vunpack.c.h.b16 %v3674
    %v4346 = vunpack.c.l.b16 %v3675
    %v4347 = vunpack.c.h.b16 %v3675
    %v4348 = vunpack.c.l.b16 %v3676
    %v4349 = vunpack.c.l.b16 %v3677
    %v4350 = vunpack.c.h.b16 %v3677
    %v4351 = vunpack.c.l.b16 %v3678
    %v4352 = vunpack.c.h.b16 %v3678
    %v4353 = vunpack.c.l.b16 %v3679
    %v4354 = vunpack.c.h.b16 %v3679
    %v4355 = vunpack.c.l.b16 %v3680
    %v4356 = vunpack.c.l.b16 %v3681
    %v4357 = vunpack.c.h.b16 %v3681
    %v4358 = vunpack.c.l.b16 %v3682
    %v4359 = vunpack.c.h.b16 %v3682
    %v4360 = vunpack.c.l.b16 %v3683
    %v4361 = vunpack.c.h.b16 %v3683
    %v4362 = vunpack.c.l.b16 %v3684
    %v4363 = vunpack.c.l.b16 %v3685
    %v4364 = vunpack.c.h.b16 %v3685
    %v4365 = vunpack.c.l.b16 %v3686
    %v4366 = vunpack.c.h.b16 %v3686
    %v4367 = vunpack.c.l.b16 %v3687
    %v4368 = vunpack.c.h.b16 %v3687
    %v4369 = vunpack.c.l.b16 %v3688
    %v4370 = vunpack.c.l.b16 %v3689
    %v4371 = vunpack.c.h.b16 %v3689
    %v4372 = vunpack.c.l.b16 %v3690
    %v4373 = vunpack.c.h.b16 %v3690
    %v4374 = vunpack.c.l.b16 %v3691
    %v4375 = vunpack.c.h.b16 %v3691
    %v4376 = vunpack.c.l.b16 %v3692
    %v4377 = vunpack.c.l.b16 %v3693
    %v4378 = vunpack.c.h.b16 %v3693
    %v4379 = vunpack.c.l.b16 %v3694
    %v4380 = vunpack.c.h.b16 %v3694
    %v4381 = vunpack.c.l.b16 %v3695
    %v4382 = vunpack.c.h.b16 %v3695
    %v4383 = vunpack.c.l.b16 %v3696
    %v4384 = vunpack.c.l.b16 %v3697
    %v4385 = vunpack.c.h.b16 %v3697
    %v4386 = vunpack.c.l.b16 %v3698
    %v4387 = vunpack.c.h.b16 %v3698
    %v4388 = vunpack.c.l.b16 %v3699
    %v4389 = vunpack.c.h.b16 %v3699
    %v4390 = vunpack.c.l.b16 %v3700
    %v4391 = vunpack.c.l.b16 %v3701
    %v4392 = vunpack.c.h.b16 %v3701
    %v4393 = vunpack.c.l.b16 %v3702
    %v4394 = vunpack.c.h.b16 %v3702
    %v4395 = vunpack.c.l.b16 %v3703
    %v4396 = vunpack.c.h.b16 %v3703
    %v4397 = vunpack.c.l.b16 %v3704
    %v4398 = vunpack.c.l.b16 %v3705
    %v4399 = vunpack.c.h.b16 %v3705
    %v4400 = vunpack.c.l.b16 %v3706
    %v4401 = vunpack.c.h.b16 %v3706
    %v4402 = vunpack.c.l.b16 %v3707
    %v4403 = vunpack.c.h.b16 %v3707
    %v4404 = vunpack.c.l.b16 %v3708
    %v4405 = vunpack.c.l.b16 %v3709
    %v4406 = vunpack.c.h.b16 %v3709
    %v4407 = vunpack.c.l.b16 %v3710
    %v4408 = vunpack.c.h.b16 %v3710
    %v4409 = vunpack.c.l.b16 %v3711
    %v4410 = vunpack.c.h.b16 %v3711
    %v4411 = vunpack.c.l.b16 %v3712
    %v4412 = vunpack.c.l.b16 %v3713
    %v4413 = vunpack.c.h.b16 %v3713
    %v4414 = vunpack.c.l.b16 %v3714
    %v4415 = vunpack.c.h.b16 %v3714
    %v4416 = vunpack.c.l.b16 %v3715
    %v4417 = vunpack.c.h.b16 %v3715
    %v4418 = vunpack.c.l.b16 %v3716
    %v4419 = vunpack.c.l.b16 %v3717
    %v4420 = vunpack.c.h.b16 %v3717
    %v4421 = vunpack.c.l.b16 %v3718
    %v4422 = vunpack.c.h.b16 %v3718
    %v4423 = vunpack.c.l.b16 %v3719
    %v4424 = vunpack.c.h.b16 %v3719
    %v4425 = vunpack.c.l.b16 %v3720
    %v4426 = vunpack.c.l.b16 %v3721
    %v4427 = vunpack.c.h.b16 %v3721
    %v4428 = vunpack.c.l.b16 %v3722
    %v4429 = vunpack.c.h.b16 %v3722
    %v4430 = vunpack.c.l.b16 %v3723
    %v4431 = vunpack.c.h.b16 %v3723
    %v4432 = vunpack.c.l.b16 %v3724
    %v4433 = vunpack.c.l.b16 %v3725
    %v4434 = vunpack.c.h.b16 %v3725
    %v4435 = vunpack.c.l.b16 %v3726
    %v4436 = vunpack.c.h.b16 %v3726
    %v4437 = vunpack.c.l.b16 %v3727
    %v4438 = vunpack.c.h.b16 %v3727
    %v4439 = vunpack.c.l.b16 %v3728
    %v4440 = vunpack.c.l.b16 %v3729
    %v4441 = vunpack.c.h.b16 %v3729
    %v4442 = vunpack.c.l.b16 %v3730
    %v4443 = vunpack.c.h.b16 %v3730
    %v4444 = vunpack.c.l.b16 %v3731
    %v4445 = vunpack.c.h.b16 %v3731
    %v4446 = vunpack.c.l.b16 %v3732
    %v4447 = vunpack.c.l.b16 %v3733
    %v4448 = vunpack.c.h.b16 %v3733
    %v4449 = vunpack.c.l.b16 %v3734
    %v4450 = vunpack.c.h.b16 %v3734
    %v4451 = vunpack.c.l.b16 %v3735
    %v4452 = vunpack.c.h.b16 %v3735
    %v4453 = vunpack.c.l.b16 %v3736
    %v4454 = vunpack.c.l.b16 %v3737
    %v4455 = vunpack.c.h.b16 %v3737
    %v4456 = vunpack.c.l.b16 %v3738
    %v4457 = vunpack.c.h.b16 %v3738
    %v4458 = vunpack.c.l.b16 %v3739
    %v4459 = vunpack.c.h.b16 %v3739
    %v4460 = vunpack.c.l.b16 %v3740
    %v4461 = vunpack.c.l.b16 %v3741
    %v4462 = vunpack.c.h.b16 %v3741
    %v4463 = vunpack.c.l.b16 %v3742
    %v4464 = vunpack.c.h.b16 %v3742
    %v4465 = vunpack.c.l.b16 %v3743
    %v4466 = vunpack.c.h.b16 %v3743
    %v4467 = vunpack.c.l.b16 %v3744
    %v4468 = vunpack.c.l.b16 %v3745
    %v4469 = vunpack.c.h.b16 %v3745
    %v4470 = vunpack.c.l.b16 %v3746
    %v4471 = vunpack.c.h.b16 %v3746
    %v4472 = vunpack.c.l.b16 %v3747
    %v4473 = vunpack.c.h.b16 %v3747
    %v4474 = vunpack.c.l.b16 %v3748
    %v4475 = vunpack.c.l.b16 %v3749
    %v4476 = vunpack.c.h.b16 %v3749
    %v4477 = vunpack.c.l.b16 %v3750
    %v4478 = vunpack.c.h.b16 %v3750
    %v4479 = vunpack.c.l.b16 %v3751
    %v4480 = vunpack.c.h.b16 %v3751
    %v4481 = vunpack.c.l.b16 %v3752
    %v4482 = vunpack.c.l.b16 %v3753
    %v4483 = vunpack.c.h.b16 %v3753
    %v4484 = vunpack.c.l.b16 %v3754
    %v4485 = vunpack.c.h.b16 %v3754
    %v4486 = vunpack.c.l.b16 %v3755
    %v4487 = vunpack.c.h.b16 %v3755
    %v4488 = vunpack.c.l.b16 %v3756
    %v4489 = vunpack.c.l.b16 %v3757
    %v4490 = vunpack.c.h.b16 %v3757
    %v4491 = vunpack.c.l.b16 %v3758
    %v4492 = vunpack.c.h.b16 %v3758
    %v4493 = vunpack.c.l.b16 %v3759
    %v4494 = vunpack.c.h.b16 %v3759
    %v4495 = vunpack.c.l.b16 %v3760
    %v4496 = vunpack.c.l.b16 %v3761
    %v4497 = vunpack.c.h.b16 %v3761
    %v4498 = vunpack.c.l.b16 %v3762
    %v4499 = vunpack.c.h.b16 %v3762
    %v4500 = vunpack.c.l.b16 %v3763
    %v4501 = vunpack.c.h.b16 %v3763
    %v4502 = vunpack.c.l.b16 %v3764
    %v4503 = vunpack.c.l.b16 %v3765
    %v4504 = vunpack.c.h.b16 %v3765
    %v4505 = vunpack.c.l.b16 %v3766
    %v4506 = vunpack.c.h.b16 %v3766
    %v4507 = vunpack.c.l.b16 %v3767
    %v4508 = vunpack.c.h.b16 %v3767
    %v4509 = vunpack.c.l.b16 %v3768
    %v4510 = vpack.c.b16 %v4069, %v4062
    %v4511 = vpack.c.b16 %v4070, %v4063
    %v4512 = vpack.c.b16 %v4071, %v4064
    %v4513 = vpack.c.b16 %v4072, %v4065
    %v4514 = vpack.c.b16 %v4073, %v4066
    %v4515 = vpack.c.b16 %v4074, %v4067
    %v4516 = vpack.c.b16 %v4075, %v4068
    %v4517 = vpack.c.b16 %v4083, %v4076
    %v4518 = vpack.c.b16 %v4084, %v4077
    %v4519 = vpack.c.b16 %v4085, %v4078
    %v4520 = vpack.c.b16 %v4086, %v4079
    %v4521 = vpack.c.b16 %v4087, %v4080
    %v4522 = vpack.c.b16 %v4088, %v4081
    %v4523 = vpack.c.b16 %v4089, %v4082
    %v4524 = vpack.c.b16 %v4097, %v4090
    %v4525 = vpack.c.b16 %v4098, %v4091
    %v4526 = vpack.c.b16 %v4099, %v4092
    %v4527 = vpack.c.b16 %v4100, %v4093
    %v4528 = vpack.c.b16 %v4101, %v4094
    %v4529 = vpack.c.b16 %v4102, %v4095
    %v4530 = vpack.c.b16 %v4103, %v4096
    %v4531 = vpack.c.b16 %v4111, %v4104
    %v4532 = vpack.c.b16 %v4112, %v4105
    %v4533 = vpack.c.b16 %v4113, %v4106
    %v4534 = vpack.c.b16 %v4114, %v4107
    %v4535 = vpack.c.b16 %v4115, %v4108
    %v4536 = vpack.c.b16 %v4116, %v4109
    %v4537 = vpack.c.b16 %v4117, %v4110
    %v4538 = vpack.c.b16 %v4125, %v4118
    %v4539 = vpack.c.b16 %v4126, %v4119
    %v4540 = vpack.c.b16 %v4127, %v4120
    %v4541 = vpack.c.b16 %v4128, %v4121
    %v4542 = vpack.c.b16 %v4129, %v4122
    %v4543 = vpack.c.b16 %v4130, %v4123
    %v4544 = vpack.c.b16 %v4131, %v4124
    %v4545 = vpack.c.b16 %v4139, %v4132
    %v4546 = vpack.c.b16 %v4140, %v4133
    %v4547 = vpack.c.b16 %v4141, %v4134
    %v4548 = vpack.c.b16 %v4142, %v4135
    %v4549 = vpack.c.b16 %v4143, %v4136
    %v4550 = vpack.c.b16 %v4144, %v4137
    %v4551 = vpack.c.b16 %v4145, %v4138
    %v4552 = vpack.c.b16 %v4153, %v4146
    %v4553 = vpack.c.b16 %v4154, %v4147
    %v4554 = vpack.c.b16 %v4155, %v4148
    %v4555 = vpack.c.b16 %v4156, %v4149
    %v4556 = vpack.c.b16 %v4157, %v4150
    %v4557 = vpack.c.b16 %v4158, %v4151
    %v4558 = vpack.c.b16 %v4159, %v4152
    %v4559 = vpack.c.b16 %v4167, %v4160
    %v4560 = vpack.c.b16 %v4168, %v4161
    %v4561 = vpack.c.b16 %v4169, %v4162
    %v4562 = vpack.c.b16 %v4170, %v4163
    %v4563 = vpack.c.b16 %v4171, %v4164
    %v4564 = vpack.c.b16 %v4172, %v4165
    %v4565 = vpack.c.b16 %v4173, %v4166
    %v4566 = vpack.c.b16 %v4181, %v4174
    %v4567 = vpack.c.b16 %v4182, %v4175
    %v4568 = vpack.c.b16 %v4183, %v4176
    %v4569 = vpack.c.b16 %v4184, %v4177
    %v4570 = vpack.c.b16 %v4185, %v4178
    %v4571 = vpack.c.b16 %v4186, %v4179
    %v4572 = vpack.c.b16 %v4187, %v4180
    %v4573 = vpack.c.b16 %v4195, %v4188
    %v4574 = vpack.c.b16 %v4196, %v4189
    %v4575 = vpack.c.b16 %v4197, %v4190
    %v4576 = vpack.c.b16 %v4198, %v4191
    %v4577 = vpack.c.b16 %v4199, %v4192
    %v4578 = vpack.c.b16 %v4200, %v4193
    %v4579 = vpack.c.b16 %v4201, %v4194
    %v4580 = vpack.c.b16 %v4209, %v4202
    %v4581 = vpack.c.b16 %v4210, %v4203
    %v4582 = vpack.c.b16 %v4211, %v4204
    %v4583 = vpack.c.b16 %v4212, %v4205
    %v4584 = vpack.c.b16 %v4213, %v4206
    %v4585 = vpack.c.b16 %v4214, %v4207
    %v4586 = vpack.c.b16 %v4215, %v4208
    %v4587 = vpack.c.b16 %v4223, %v4216
    %v4588 = vpack.c.b16 %v4224, %v4217
    %v4589 = vpack.c.b16 %v4225, %v4218
    %v4590 = vpack.c.b16 %v4226, %v4219
    %v4591 = vpack.c.b16 %v4227, %v4220
    %v4592 = vpack.c.b16 %v4228, %v4221
    %v4593 = vpack.c.b16 %v4229, %v4222
    %v4594 = vpack.c.b16 %v4237, %v4230
    %v4595 = vpack.c.b16 %v4238, %v4231
    %v4596 = vpack.c.b16 %v4239, %v4232
    %v4597 = vpack.c.b16 %v4240, %v4233
    %v4598 = vpack.c.b16 %v4241, %v4234
    %v4599 = vpack.c.b16 %v4242, %v4235
    %v4600 = vpack.c.b16 %v4243, %v4236
    %v4601 = vpack.c.b16 %v4251, %v4244
    %v4602 = vpack.c.b16 %v4252, %v4245
    %v4603 = vpack.c.b16 %v4253, %v4246
    %v4604 = vpack.c.b16 %v4254, %v4247
    %v4605 = vpack.c.b16 %v4255, %v4248
    %v4606 = vpack.c.b16 %v4256, %v4249
    %v4607 = vpack.c.b16 %v4257, %v4250
    %v4608 = vpack.c.b16 %v4265, %v4258
    %v4609 = vpack.c.b16 %v4266, %v4259
    %v4610 = vpack.c.b16 %v4267, %v4260
    %v4611 = vpack.c.b16 %v4268, %v4261
    %v4612 = vpack.c.b16 %v4269, %v4262
    %v4613 = vpack.c.b16 %v4270, %v4263
    %v4614 = vpack.c.b16 %v4271, %v4264
    %v4615 = vpack.c.b16 %v4279, %v4272
    %v4616 = vpack.c.b16 %v4280, %v4273
    %v4617 = vpack.c.b16 %v4281, %v4274
    %v4618 = vpack.c.b16 %v4282, %v4275
    %v4619 = vpack.c.b16 %v4283, %v4276
    %v4620 = vpack.c.b16 %v4284, %v4277
    %v4621 = vpack.c.b16 %v4285, %v4278
    %v4622 = vpack.c.b16 %v4293, %v4286
    %v4623 = vpack.c.b16 %v4294, %v4287
    %v4624 = vpack.c.b16 %v4295, %v4288
    %v4625 = vpack.c.b16 %v4296, %v4289
    %v4626 = vpack.c.b16 %v4297, %v4290
    %v4627 = vpack.c.b16 %v4298, %v4291
    %v4628 = vpack.c.b16 %v4299, %v4292
    %v4629 = vpack.c.b16 %v4307, %v4300
    %v4630 = vpack.c.b16 %v4308, %v4301
    %v4631 = vpack.c.b16 %v4309, %v4302
    %v4632 = vpack.c.b16 %v4310, %v4303
    %v4633 = vpack.c.b16 %v4311, %v4304
    %v4634 = vpack.c.b16 %v4312, %v4305
    %v4635 = vpack.c.b16 %v4313, %v4306
    %v4636 = vpack.c.b16 %v4321, %v4314
    %v4637 = vpack.c.b16 %v4322, %v4315
    %v4638 = vpack.c.b16 %v4323, %v4316
    %v4639 = vpack.c.b16 %v4324, %v4317
    %v4640 = vpack.c.b16 %v4325, %v4318
    %v4641 = vpack.c.b16 %v4326, %v4319
    %v4642 = vpack.c.b16 %v4327, %v4320
    %v4643 = vpack.c.b16 %v4335, %v4328
    %v4644 = vpack.c.b16 %v4336, %v4329
    %v4645 = vpack.c.b16 %v4337, %v4330
    %v4646 = vpack.c.b16 %v4338, %v4331
    %v4647 = vpack.c.b16 %v4339, %v4332
    %v4648 = vpack.c.b16 %v4340, %v4333
    %v4649 = vpack.c.b16 %v4341, %v4334
    %v4650 = vpack.c.b16 %v4349, %v4342
    %v4651 = vpack.c.b16 %v4350, %v4343
    %v4652 = vpack.c.b16 %v4351, %v4344
    %v4653 = vpack.c.b16 %v4352, %v4345
    %v4654 = vpack.c.b16 %v4353, %v4346
    %v4655 = vpack.c.b16 %v4354, %v4347
    %v4656 = vpack.c.b16 %v4355, %v4348
    %v4657 = vpack.c.b16 %v4363, %v4356
    %v4658 = vpack.c.b16 %v4364, %v4357
    %v4659 = vpack.c.b16 %v4365, %v4358
    %v4660 = vpack.c.b16 %v4366, %v4359
    %v4661 = vpack.c.b16 %v4367, %v4360
    %v4662 = vpack.c.b16 %v4368, %v4361
    %v4663 = vpack.c.b16 %v4369, %v4362
    %v4664 = vpack.c.b16 %v4377, %v4370
    %v4665 = vpack.c.b16 %v4378, %v4371
    %v4666 = vpack.c.b16 %v4379, %v4372
    %v4667 = vpack.c.b16 %v4380, %v4373
    %v4668 = vpack.c.b16 %v4381, %v4374
    %v4669 = vpack.c.b16 %v4382, %v4375
    %v4670 = vpack.c.b16 %v4383, %v4376
    %v4671 = vpack.c.b16 %v4391, %v4384
    %v4672 = vpack.c.b16 %v4392, %v4385
    %v4673 = vpack.c.b16 %v4393, %v4386
    %v4674 = vpack.c.b16 %v4394, %v4387
    %v4675 = vpack.c.b16 %v4395, %v4388
    %v4676 = vpack.c.b16 %v4396, %v4389
    %v4677 = vpack.c.b16 %v4397, %v4390
    %v4678 = vpack.c.b16 %v4405, %v4398
    %v4679 = vpack.c.b16 %v4406, %v4399
    %v4680 = vpack.c.b16 %v4407, %v4400
    %v4681 = vpack.c.b16 %v4408, %v4401
    %v4682 = vpack.c.b16 %v4409, %v4402
    %v4683 = vpack.c.b16 %v4410, %v4403
    %v4684 = vpack.c.b16 %v4411, %v4404
    %v4685 = vpack.c.b16 %v4419, %v4412
    %v4686 = vpack.c.b16 %v4420, %v4413
    %v4687 = vpack.c.b16 %v4421, %v4414
    %v4688 = vpack.c.b16 %v4422, %v4415
    %v4689 = vpack.c.b16 %v4423, %v4416
    %v4690 = vpack.c.b16 %v4424, %v4417
    %v4691 = vpack.c.b16 %v4425, %v4418
    %v4692 = vpack.c.b16 %v4433, %v4426
    %v4693 = vpack.c.b16 %v4434, %v4427
    %v4694 = vpack.c.b16 %v4435, %v4428
    %v4695 = vpack.c.b16 %v4436, %v4429
    %v4696 = vpack.c.b16 %v4437, %v4430
    %v4697 = vpack.c.b16 %v4438, %v4431
    %v4698 = vpack.c.b16 %v4439, %v4432
    %v4699 = vpack.c.b16 %v4447, %v4440
    %v4700 = vpack.c.b16 %v4448, %v4441
    %v4701 = vpack.c.b16 %v4449, %v4442
    %v4702 = vpack.c.b16 %v4450, %v4443
    %v4703 = vpack.c.b16 %v4451, %v4444
    %v4704 = vpack.c.b16 %v4452, %v4445
    %v4705 = vpack.c.b16 %v4453, %v4446
    %v4706 = vpack.c.b16 %v4461, %v4454
    %v4707 = vpack.c.b16 %v4462, %v4455
    %v4708 = vpack.c.b16 %v4463, %v4456
    %v4709 = vpack.c.b16 %v4464, %v4457
    %v4710 = vpack.c.b16 %v4465, %v4458
    %v4711 = vpack.c.b16 %v4466, %v4459
    %v4712 = vpack.c.b16 %v4467, %v4460
    %v4713 = vpack.c.b16 %v4475, %v4468
    %v4714 = vpack.c.b16 %v4476, %v4469
    %v4715 = vpack.c.b16 %v4477, %v4470
    %v4716 = vpack.c.b16 %v4478, %v4471
    %v4717 = vpack.c.b16 %v4479, %v4472
    %v4718 = vpack.c.b16 %v4480, %v4473
    %v4719 = vpack.c.b16 %v4481, %v4474
    %v4720 = vpack.c.b16 %v4489, %v4482
    %v4721 = vpack.c.b16 %v4490, %v4483
    %v4722 = vpack.c.b16 %v4491, %v4484
    %v4723 = vpack.c.b16 %v4492, %v4485
    %v4724 = vpack.c.b16 %v4493, %v4486
    %v4725 = vpack.c.b16 %v4494, %v4487
    %v4726 = vpack.c.b16 %v4495, %v4488
    %v4727 = vpack.c.b16 %v4503, %v4496
    %v4728 = vpack.c.b16 %v4504, %v4497
    %v4729 = vpack.c.b16 %v4505, %v4498
    %v4730 = vpack.c.b16 %v4506, %v4499
    %v4731 = vpack.c.b16 %v4507, %v4500
    %v4732 = vpack.c.b16 %v4508, %v4501
    %v4733 = vpack.c.b16 %v4509, %v4502
    %4958 = vmatprep.subr.bf16.mxu0 %v4511
    %4959 = vmatpush1.bf16.msra.mxu0 %v4510
    %4960 = vmatprep.subr.bf16.mxu0 %v4518
    %4961 = vmatpush1.bf16.msra.mxu0 %v4517
    %4962 = vmatprep.subr.bf16.mxu0 %v4525
    %4963 = vmatpush1.bf16.msra.mxu0 %v4524
    %4964 = vmatprep.subr.bf16.mxu0 %v4532
    %4965 = vmatpush1.bf16.msra.mxu0 %v4531
    %4966 = vmatprep.subr.bf16.mxu0 %v4539
    %4967 = vmatpush1.bf16.msra.mxu0 %v4538
    %4968 = vmatprep.subr.bf16.mxu0 %v4546
    %4969 = vmatpush1.bf16.msra.mxu0 %v4545
    %4970 = vmatprep.subr.bf16.mxu0 %v4553
    %4971 = vmatpush1.bf16.msra.mxu0 %v4552
    %4972 = vmatprep.subr.bf16.mxu0 %v4560
    %4973 = vmatpush1.bf16.msra.mxu0 %v4559
    %4974 = vmatprep.subr.bf16.mxu0 %v4567
    %4975 = vmatpush1.bf16.msra.mxu0 %v4566
    %4976 = vmatprep.subr.bf16.mxu0 %v4574
    %4977 = vmatpush1.bf16.msra.mxu0 %v4573
    %4978 = vmatprep.subr.bf16.mxu0 %v4581
    %4979 = vmatpush1.bf16.msra.mxu0 %v4580
    %4980 = vmatprep.subr.bf16.mxu0 %v4588
    %4981 = vmatpush1.bf16.msra.mxu0 %v4587
    %4982 = vmatprep.subr.bf16.mxu0 %v4595
    %4983 = vmatpush1.bf16.msra.mxu0 %v4594
    %4984 = vmatprep.subr.bf16.mxu0 %v4602
    %4985 = vmatpush1.bf16.msra.mxu0 %v4601
    %4986 = vmatprep.subr.bf16.mxu0 %v4609
    %4987 = vmatpush1.bf16.msra.mxu0 %v4608
    %4988 = vmatprep.subr.bf16.mxu0 %v4616
    %4989 = vmatpush1.bf16.msra.mxu0 %v4615
    %4990 = vmatprep.mubr.bf16.mxu0 %v3510
    %4991 = vmatmul.mubr.bf16.gmra.mrb[0].mxu0 %v3509
    %v4992 = vpop.f32.mrb[0].mxu0
    %v4993 = vadd.f32 %v3774, %v4992
    %v4994 = vpop.f32.mrb[0].mxu0
    %v4995 = vadd.f32 %v3778, %v4994
    %v4996 = vpop.f32.mrb[0].mxu0
    %v4997 = vadd.f32 %v3774, %v4996
    %v4998 = vpop.f32.mrb[0].mxu0
    %v4999 = vadd.f32 %v3778, %v4998
    %5000 = vdwg.mxu0
    %5001 = vmatprep.subr.bf16.mxu0 %v4623
    %5002 = vmatpush1.bf16.msra.mxu0 %v4622
    %5003 = vmatprep.subr.bf16.mxu0 %v4630
    %5004 = vmatpush1.bf16.msra.mxu0 %v4629
    %5005 = vmatprep.subr.bf16.mxu0 %v4637
    %5006 = vmatpush1.bf16.msra.mxu0 %v4636
    %5007 = vmatprep.subr.bf16.mxu0 %v4644
    %5008 = vmatpush1.bf16.msra.mxu0 %v4643
    %5009 = vmatprep.subr.bf16.mxu0 %v4651
    %5010 = vmatpush1.bf16.msra.mxu0 %v4650
    %5011 = vmatprep.subr.bf16.mxu0 %v4658
    %5012 = vmatpush1.bf16.msra.mxu0 %v4657
    %5013 = vmatprep.subr.bf16.mxu0 %v4665
    %5014 = vmatpush1.bf16.msra.mxu0 %v4664
    %5015 = vmatprep.subr.bf16.mxu0 %v4672
    %5016 = vmatpush1.bf16.msra.mxu0 %v4671
    %5017 = vmatprep.subr.bf16.mxu0 %v4679
    %5018 = vmatpush1.bf16.msra.mxu0 %v4678
    %5019 = vmatprep.subr.bf16.mxu0 %v4686
    %5020 = vmatpush1.bf16.msra.mxu0 %v4685
    %5021 = vmatprep.subr.bf16.mxu0 %v4693
    %5022 = vmatpush1.bf16.msra.mxu0 %v4692
    %5023 = vmatprep.subr.bf16.mxu0 %v4700
    %5024 = vmatpush1.bf16.msra.mxu0 %v4699
    %5025 = vmatprep.subr.bf16.mxu0 %v4707
    %5026 = vmatpush1.bf16.msra.mxu0 %v4706
    %5027 = vmatprep.subr.bf16.mxu0 %v4714
    %5028 = vmatpush1.bf16.msra.mxu0 %v4713
    %5029 = vmatprep.subr.bf16.mxu0 %v4721
    %5030 = vmatpush1.bf16.msra.mxu0 %v4720
    %5031 = vmatprep.subr.bf16.mxu0 %v4728
    %5032 = vmatpush1.bf16.msra.mxu0 %v4727
    %5033 = vmatprep.mubr.bf16.mxu0 %v3512
    %5034 = vmatmul.mubr.bf16.gmra.mrb[0].mxu0 %v3511
    %v5035 = vpop.f32.mrb[0].mxu0
    %v5036 = vadd.f32 %v4993, %v5035
    %v5037 = vpop.f32.mrb[0].mxu0
    %v5038 = vadd.f32 %v4995, %v5037
    %v5039 = vpop.f32.mrb[0].mxu0
    %v5040 = vadd.f32 %v4997, %v5039
    %v5041 = vpop.f32.mrb[0].mxu0
    %v5042 = vadd.f32 %v4999, %v5041
    %5043 = vdwg.mxu0
    %5044 = vmatprep.subr.bf16.mxu0 %v4513
    %5045 = vmatpush1.bf16.msra.mxu0 %v4512
    %5046 = vmatprep.subr.bf16.mxu0 %v4520
    %5047 = vmatpush1.bf16.msra.mxu0 %v4519
    %5048 = vmatprep.subr.bf16.mxu0 %v4527
    %5049 = vmatpush1.bf16.msra.mxu0 %v4526
    %5050 = vmatprep.subr.bf16.mxu0 %v4534
    %5051 = vmatpush1.bf16.msra.mxu0 %v4533
    %5052 = vmatprep.subr.bf16.mxu0 %v4541
    %5053 = vmatpush1.bf16.msra.mxu0 %v4540
    %5054 = vmatprep.subr.bf16.mxu0 %v4548
    %5055 = vmatpush1.bf16.msra.mxu0 %v4547
    %5056 = vmatprep.subr.bf16.mxu0 %v4555
    %5057 = vmatpush1.bf16.msra.mxu0 %v4554
    %5058 = vmatprep.subr.bf16.mxu0 %v4562
    %5059 = vmatpush1.bf16.msra.mxu0 %v4561
    %5060 = vmatprep.subr.bf16.mxu0 %v4569
    %5061 = vmatpush1.bf16.msra.mxu0 %v4568
    %5062 = vmatprep.subr.bf16.mxu0 %v4576
    %5063 = vmatpush1.bf16.msra.mxu0 %v4575
    %5064 = vmatprep.subr.bf16.mxu0 %v4583
    %5065 = vmatpush1.bf16.msra.mxu0 %v4582
    %5066 = vmatprep.subr.bf16.mxu0 %v4590
    %5067 = vmatpush1.bf16.msra.mxu0 %v4589
    %5068 = vmatprep.subr.bf16.mxu0 %v4597
    %5069 = vmatpush1.bf16.msra.mxu0 %v4596
    %5070 = vmatprep.subr.bf16.mxu0 %v4604
    %5071 = vmatpush1.bf16.msra.mxu0 %v4603
    %5072 = vmatprep.subr.bf16.mxu0 %v4611
    %5073 = vmatpush1.bf16.msra.mxu0 %v4610
    %5074 = vmatprep.subr.bf16.mxu0 %v4618
    %5075 = vmatpush1.bf16.msra.mxu0 %v4617
    %5076 = vmatprep.mubr.bf16.mxu0 %v3510
    %5077 = vmatmul.mubr.bf16.gmra.mrb[0].mxu0 %v3509
    %v5078 = vpop.f32.mrb[0].mxu0
    %v5079 = vadd.f32 %v3782, %v5078
    %v5080 = vpop.f32.mrb[0].mxu0
    %v5081 = vadd.f32 %v3786, %v5080
    %v5082 = vpop.f32.mrb[0].mxu0
    %v5083 = vadd.f32 %v3782, %v5082
    %v5084 = vpop.f32.mrb[0].mxu0
    %v5085 = vadd.f32 %v3786, %v5084
    %5086 = vdwg.mxu0
    %5087 = vmatprep.subr.bf16.mxu0 %v4625
    %5088 = vmatpush1.bf16.msra.mxu0 %v4624
    %5089 = vmatprep.subr.bf16.mxu0 %v4632
    %5090 = vmatpush1.bf16.msra.mxu0 %v4631
    %5091 = vmatprep.subr.bf16.mxu0 %v4639
    %5092 = vmatpush1.bf16.msra.mxu0 %v4638
    %5093 = vmatprep.subr.bf16.mxu0 %v4646
    %5094 = vmatpush1.bf16.msra.mxu0 %v4645
    %5095 = vmatprep.subr.bf16.mxu0 %v4653
    %5096 = vmatpush1.bf16.msra.mxu0 %v4652
    %5097 = vmatprep.subr.bf16.mxu0 %v4660
    %5098 = vmatpush1.bf16.msra.mxu0 %v4659
    %5099 = vmatprep.subr.bf16.mxu0 %v4667
    %5100 = vmatpush1.bf16.msra.mxu0 %v4666
    %5101 = vmatprep.subr.bf16.mxu0 %v4674
    %5102 = vmatpush1.bf16.msra.mxu0 %v4673
    %5103 = vmatprep.subr.bf16.mxu0 %v4681
    %5104 = vmatpush1.bf16.msra.mxu0 %v4680
    %5105 = vmatprep.subr.bf16.mxu0 %v4688
    %5106 = vmatpush1.bf16.msra.mxu0 %v4687
    %5107 = vmatprep.subr.bf16.mxu0 %v4695
    %5108 = vmatpush1.bf16.msra.mxu0 %v4694
    %5109 = vmatprep.subr.bf16.mxu0 %v4702
    %5110 = vmatpush1.bf16.msra.mxu0 %v4701
    %5111 = vmatprep.subr.bf16.mxu0 %v4709
    %5112 = vmatpush1.bf16.msra.mxu0 %v4708
    %5113 = vmatprep.subr.bf16.mxu0 %v4716
    %5114 = vmatpush1.bf16.msra.mxu0 %v4715
    %5115 = vmatprep.subr.bf16.mxu0 %v4723
    %5116 = vmatpush1.bf16.msra.mxu0 %v4722
    %5117 = vmatprep.subr.bf16.mxu0 %v4730
    %5118 = vmatpush1.bf16.msra.mxu0 %v4729
    %5119 = vmatprep.mubr.bf16.mxu0 %v3512
    %5120 = vmatmul.mubr.bf16.gmra.mrb[0].mxu0 %v3511
    %v5121 = vpop.f32.mrb[0].mxu0
    %v5122 = vadd.f32 %v5079, %v5121
    %v5123 = vpop.f32.mrb[0].mxu0
    %v5124 = vadd.f32 %v5081, %v5123
    %v5125 = vpop.f32.mrb[0].mxu0
    %v5126 = vadd.f32 %v5083, %v5125
    %v5127 = vpop.f32.mrb[0].mxu0
    %v5128 = vadd.f32 %v5085, %v5127
    %5129 = vdwg.mxu0
    %5130 = vmatprep.subr.bf16.mxu0 %v4515
    %5131 = vmatpush1.bf16.msra.mxu0 %v4514
    %5132 = vmatprep.subr.bf16.mxu0 %v4522
    %5133 = vmatpush1.bf16.msra.mxu0 %v4521
    %5134 = vmatprep.subr.bf16.mxu0 %v4529
    %5135 = vmatpush1.bf16.msra.mxu0 %v4528
    %5136 = vmatprep.subr.bf16.mxu0 %v4536
    %5137 = vmatpush1.bf16.msra.mxu0 %v4535
    %5138 = vmatprep.subr.bf16.mxu0 %v4543
    %5139 = vmatpush1.bf16.msra.mxu0 %v4542
    %5140 = vmatprep.subr.bf16.mxu0 %v4550
    %5141 = vmatpush1.bf16.msra.mxu0 %v4549
    %5142 = vmatprep.subr.bf16.mxu0 %v4557
    %5143 = vmatpush1.bf16.msra.mxu0 %v4556
    %5144 = vmatprep.subr.bf16.mxu0 %v4564
    %5145 = vmatpush1.bf16.msra.mxu0 %v4563
    %5146 = vmatprep.subr.bf16.mxu0 %v4571
    %5147 = vmatpush1.bf16.msra.mxu0 %v4570
    %5148 = vmatprep.subr.bf16.mxu0 %v4578
    %5149 = vmatpush1.bf16.msra.mxu0 %v4577
    %5150 = vmatprep.subr.bf16.mxu0 %v4585
    %5151 = vmatpush1.bf16.msra.mxu0 %v4584
    %5152 = vmatprep.subr.bf16.mxu0 %v4592
    %5153 = vmatpush1.bf16.msra.mxu0 %v4591
    %5154 = vmatprep.subr.bf16.mxu0 %v4599
    %5155 = vmatpush1.bf16.msra.mxu0 %v4598
    %5156 = vmatprep.subr.bf16.mxu0 %v4606
    %5157 = vmatpush1.bf16.msra.mxu0 %v4605
    %5158 = vmatprep.subr.bf16.mxu0 %v4613
    %5159 = vmatpush1.bf16.msra.mxu0 %v4612
    %5160 = vmatprep.subr.bf16.mxu0 %v4620
    %5161 = vmatpush1.bf16.msra.mxu0 %v4619
    %5162 = vmatprep.mubr.bf16.mxu0 %v3510
    %5163 = vmatmul.mubr.bf16.gmra.mrb[0].mxu0 %v3509
    %v5164 = vpop.f32.mrb[0].mxu0
    %v5165 = vadd.f32 %v3790, %v5164
    %v5166 = vpop.f32.mrb[0].mxu0
    %v5167 = vadd.f32 %v3794, %v5166
    %v5168 = vpop.f32.mrb[0].mxu0
    %v5169 = vadd.f32 %v3790, %v5168
    %v5170 = vpop.f32.mrb[0].mxu0
    %v5171 = vadd.f32 %v3794, %v5170
    %5172 = vdwg.mxu0
    %5173 = vmatprep.subr.bf16.mxu0 %v4627
    %5174 = vmatpush1.bf16.msra.mxu0 %v4626
    %5175 = vmatprep.subr.bf16.mxu0 %v4634
    %5176 = vmatpush1.bf16.msra.mxu0 %v4633
    %5177 = vmatprep.subr.bf16.mxu0 %v4641
    %5178 = vmatpush1.bf16.msra.mxu0 %v4640
    %5179 = vmatprep.subr.bf16.mxu0 %v4648
    %5180 = vmatpush1.bf16.msra.mxu0 %v4647
    %5181 = vmatprep.subr.bf16.mxu0 %v4655
    %5182 = vmatpush1.bf16.msra.mxu0 %v4654
    %5183 = vmatprep.subr.bf16.mxu0 %v4662
    %5184 = vmatpush1.bf16.msra.mxu0 %v4661
    %5185 = vmatprep.subr.bf16.mxu0 %v4669
    %5186 = vmatpush1.bf16.msra.mxu0 %v4668
    %5187 = vmatprep.subr.bf16.mxu0 %v4676
    %5188 = vmatpush1.bf16.msra.mxu0 %v4675
    %5189 = vmatprep.subr.bf16.mxu0 %v4683
    %5190 = vmatpush1.bf16.msra.mxu0 %v4682
    %5191 = vmatprep.subr.bf16.mxu0 %v4690
    %5192 = vmatpush1.bf16.msra.mxu0 %v4689
    %5193 = vmatprep.subr.bf16.mxu0 %v4697
    %5194 = vmatpush1.bf16.msra.mxu0 %v4696
    %5195 = vmatprep.subr.bf16.mxu0 %v4704
    %5196 = vmatpush1.bf16.msra.mxu0 %v4703
    %5197 = vmatprep.subr.bf16.mxu0 %v4711
    %5198 = vmatpush1.bf16.msra.mxu0 %v4710
    %5199 = vmatprep.subr.bf16.mxu0 %v4718
    %5200 = vmatpush1.bf16.msra.mxu0 %v4717
    %5201 = vmatprep.subr.bf16.mxu0 %v4725
    %5202 = vmatpush1.bf16.msra.mxu0 %v4724
    %5203 = vmatprep.subr.bf16.mxu0 %v4732
    %5204 = vmatpush1.bf16.msra.mxu0 %v4731
    %5205 = vmatprep.mubr.bf16.mxu0 %v3512
    %5206 = vmatmul.mubr.bf16.gmra.mrb[0].mxu0 %v3511
    %v5207 = vpop.f32.mrb[0].mxu0
    %v5208 = vadd.f32 %v5165, %v5207
    %v5209 = vpop.f32.mrb[0].mxu0
    %v5210 = vadd.f32 %v5167, %v5209
    %v5211 = vpop.f32.mrb[0].mxu0
    %v5212 = vadd.f32 %v5169, %v5211
    %v5213 = vpop.f32.mrb[0].mxu0
    %v5214 = vadd.f32 %v5171, %v5213
    %5215 = vdwg.mxu0
    %5216 = vmatprep.subr.bf16.mxu0 0
    %5217 = vmatpush1.bf16.msra.mxu0 %v4516
    %5218 = vmatprep.subr.bf16.mxu0 0
    %5219 = vmatpush1.bf16.msra.mxu0 %v4523
    %5220 = vmatprep.subr.bf16.mxu0 0
    %5221 = vmatpush1.bf16.msra.mxu0 %v4530
    %5222 = vmatprep.subr.bf16.mxu0 0
    %5223 = vmatpush1.bf16.msra.mxu0 %v4537
    %5224 = vmatprep.subr.bf16.mxu0 0
    %5225 = vmatpush1.bf16.msra.mxu0 %v4544
    %5226 = vmatprep.subr.bf16.mxu0 0
    %5227 = vmatpush1.bf16.msra.mxu0 %v4551
    %5228 = vmatprep.subr.bf16.mxu0 0
    %5229 = vmatpush1.bf16.msra.mxu0 %v4558
    %5230 = vmatprep.subr.bf16.mxu0 0
    %5231 = vmatpush1.bf16.msra.mxu0 %v4565
    %5232 = vmatprep.subr.bf16.mxu0 0
    %5233 = vmatpush1.bf16.msra.mxu0 %v4572
    %5234 = vmatprep.subr.bf16.mxu0 0
    %5235 = vmatpush1.bf16.msra.mxu0 %v4579
    %5236 = vmatprep.subr.bf16.mxu0 0
    %5237 = vmatpush1.bf16.msra.mxu0 %v4586
    %5238 = vmatprep.subr.bf16.mxu0 0
    %5239 = vmatpush1.bf16.msra.mxu0 %v4593
    %5240 = vmatprep.subr.bf16.mxu0 0
    %5241 = vmatpush1.bf16.msra.mxu0 %v4600
    %5242 = vmatprep.subr.bf16.mxu0 0
    %5243 = vmatpush1.bf16.msra.mxu0 %v4607
    %5244 = vmatprep.subr.bf16.mxu0 0
    %5245 = vmatpush1.bf16.msra.mxu0 %v4614
    %5246 = vmatprep.subr.bf16.mxu0 0
    %5247 = vmatpush1.bf16.msra.mxu0 %v4621
    %5248 = vmatprep.mubr.bf16.mxu0 %v3510
    %5249 = vmatmul.mubr.bf16.gmra.mrb[0].mxu0 %v3509
    %v5250 = vpop.f32.mrb[0].mxu0
    %v5251 = vadd.f32 %v3798, %v5250
    %v5252 = vpop.f32.mrb[0].mxu0
    %v5253 = vpop.f32.mrb[0].mxu0
    %v5254 = vadd.f32 %v3798, %v5253
    %v5255 = vpop.f32.mrb[0].mxu0
    %5256 = vdwg.mxu0
    %5257 = vmatprep.subr.bf16.mxu0 0
    %5258 = vmatpush1.bf16.msra.mxu0 %v4628
    %5259 = vmatprep.subr.bf16.mxu0 0
    %5260 = vmatpush1.bf16.msra.mxu0 %v4635
    %5261 = vmatprep.subr.bf16.mxu0 0
    %5262 = vmatpush1.bf16.msra.mxu0 %v4642
    %5263 = vmatprep.subr.bf16.mxu0 0
    %5264 = vmatpush1.bf16.msra.mxu0 %v4649
    %5265 = vmatprep.subr.bf16.mxu0 0
    %5266 = vmatpush1.bf16.msra.mxu0 %v4656
    %5267 = vmatprep.subr.bf16.mxu0 0
    %5268 = vmatpush1.bf16.msra.mxu0 %v4663
    %5269 = vmatprep.subr.bf16.mxu0 0
    %5270 = vmatpush1.bf16.msra.mxu0 %v4670
    %5271 = vmatprep.subr.bf16.mxu0 0
    %5272 = vmatpush1.bf16.msra.mxu0 %v4677
    %5273 = vmatprep.subr.bf16.mxu0 0
    %5274 = vmatpush1.bf16.msra.mxu0 %v4684
    %5275 = vmatprep.subr.bf16.mxu0 0
    %5276 = vmatpush1.bf16.msra.mxu0 %v4691
    %5277 = vmatprep.subr.bf16.mxu0 0
    %5278 = vmatpush1.bf16.msra.mxu0 %v4698
    %5279 = vmatprep.subr.bf16.mxu0 0
    %5280 = vmatpush1.bf16.msra.mxu0 %v4705
    %5281 = vmatprep.subr.bf16.mxu0 0
    %5282 = vmatpush1.bf16.msra.mxu0 %v4712
    %5283 = vmatprep.subr.bf16.mxu0 0
    %5284 = vmatpush1.bf16.msra.mxu0 %v4719
    %5285 = vmatprep.subr.bf16.mxu0 0
    %5286 = vmatpush1.bf16.msra.mxu0 %v4726
    %5287 = vmatprep.subr.bf16.mxu0 0
    %5288 = vmatpush1.bf16.msra.mxu0 %v4733
    %5289 = vmatprep.mubr.bf16.mxu0 %v3512
    %5290 = vmatmul.mubr.bf16.gmra.mrb[0].mxu0 %v3511
    %v5291 = vpop.f32.mrb[0].mxu0
    %v5292 = vadd.f32 %v5251, %v5291
    %v5293 = vpop.f32.mrb[0].mxu0
    %v5294 = vpop.f32.mrb[0].mxu0
    %v5295 = vadd.f32 %v5254, %v5294
    %v5296 = vpop.f32.mrb[0].mxu0
    %5297 = vdwg.mxu0
    %v5298 = vxor.u32 %v5036, 2147483648
    %v5299 = vxor.u32 %v5038, 2147483648
    %v5300 = vxor.u32 %v5122, 2147483648
    %v5301 = vxor.u32 %v5124, 2147483648
    %v5302 = vxor.u32 %v5208, 2147483648
    %v5303 = vxor.u32 %v5210, 2147483648
    %v5304 = vxor.u32 %v5292, 2147483648
    %v5305 = vxor.u32 %v5040, 2147483648
    %v5306 = vxor.u32 %v5042, 2147483648
    %v5307 = vxor.u32 %v5126, 2147483648
    %v5308 = vxor.u32 %v5128, 2147483648
    %v5309 = vxor.u32 %v5212, 2147483648
    %v5310 = vxor.u32 %v5214, 2147483648
    %v5311 = vxor.u32 %v5295, 2147483648
    %v5312 = vmul.f32 %v5298, 1.442695
    %v5313 = vpow.pop %v5312
    %v5314 = vmul.f32 %v5299, 1.442695
    %v5315 = vpow.pop %v5314
    %v5316 = vmul.f32 %v5300, 1.442695
    %v5317 = vpow.pop %v5316
    %v5318 = vmul.f32 %v5301, 1.442695
    %v5319 = vpow.pop %v5318
    %v5320 = vmul.f32 %v5302, 1.442695
    %v5321 = vpow.pop %v5320
    %v5322 = vmul.f32 %v5303, 1.442695
    %v5323 = vpow.pop %v5322
    %v5324 = vmul.f32 %v5304, 1.442695
    %v5325 = vpow.pop %v5324
    %v5326 = vmul.f32 %v5305, 1.442695
    %v5327 = vpow.pop %v5326
    %v5328 = vmul.f32 %v5306, 1.442695
    %v5329 = vpow.pop %v5328
    %v5330 = vmul.f32 %v5307, 1.442695
    %v5331 = vpow.pop %v5330
    %v5332 = vmul.f32 %v5308, 1.442695
    %v5333 = vpow.pop %v5332
    %v5334 = vmul.f32 %v5309, 1.442695
    %v5335 = vpow.pop %v5334
    %v5336 = vmul.f32 %v5310, 1.442695
    %v5337 = vpow.pop %v5336
    %v5338 = vmul.f32 %v5311, 1.442695
    %v5339 = vpow.pop %v5338
    %v5340 = vadd.f32 %v5313, 1.0
    %v5341 = vadd.f32 %v5315, 1.0
    %v5342 = vadd.f32 %v5317, 1.0
    %v5343 = vadd.f32 %v5319, 1.0
    %v5344 = vadd.f32 %v5321, 1.0
    %v5345 = vadd.f32 %v5323, 1.0
    %v5346 = vadd.f32 %v5325, 1.0
    %v5347 = vadd.f32 %v5327, 1.0
    %v5348 = vadd.f32 %v5329, 1.0
    %v5349 = vadd.f32 %v5331, 1.0
    %v5350 = vadd.f32 %v5333, 1.0
    %v5351 = vadd.f32 %v5335, 1.0
    %v5352 = vadd.f32 %v5337, 1.0
    %v5353 = vadd.f32 %v5339, 1.0
    %v5354 = vrcp.pop %v5340
    %v5355 = vmul.f32 1.0, %v5354
    %v5356 = vrcp.pop %v5341
    %v5357 = vmul.f32 1.0, %v5356
    %v5358 = vrcp.pop %v5342
    %v5359 = vmul.f32 1.0, %v5358
    %v5360 = vrcp.pop %v5343
    %v5361 = vmul.f32 1.0, %v5360
    %v5362 = vrcp.pop %v5344
    %v5363 = vmul.f32 1.0, %v5362
    %v5364 = vrcp.pop %v5345
    %v5365 = vmul.f32 1.0, %v5364
    %v5366 = vrcp.pop %v5346
    %v5367 = vmul.f32 1.0, %v5366
    %v5368 = vrcp.pop %v5347
    %v5369 = vmul.f32 1.0, %v5368
    %v5370 = vrcp.pop %v5348
    %v5371 = vmul.f32 1.0, %v5370
    %v5372 = vrcp.pop %v5349
    %v5373 = vmul.f32 1.0, %v5372
    %v5374 = vrcp.pop %v5350
    %v5375 = vmul.f32 1.0, %v5374
    %v5376 = vrcp.pop %v5351
    %v5377 = vmul.f32 1.0, %v5376
    %v5378 = vrcp.pop %v5352
    %v5379 = vmul.f32 1.0, %v5378
    %v5380 = vrcp.pop %v5353
    %v5381 = vmul.f32 1.0, %v5380
    %5382 = vst [vmem:[%s16] sm:$0xff] %v5355
    %5383 = vst [vmem:[%s16 + $0x8] sm:$0xff] %v5357
    %5384 = vst [vmem:[%s16 + $0x10] sm:$0xff] %v5359
    %5385 = vst [vmem:[%s16 + $0x18] sm:$0xff] %v5361
    %5386 = vst [vmem:[%s16 + $0x20] sm:$0xff] %v5363
    %5387 = vst [vmem:[%s16 + $0x28] sm:$0xff] %v5365
    %5388 = vst [vmem:[%s16 + $0x30] sm:$0xff] %v5367
    %5389 = vst [vmem:[%s16 + $0x38] sm:$0xff] %v5369
    %5390 = vst [vmem:[%s16 + $0x40] sm:$0xff] %v5371
    %5391 = vst [vmem:[%s16 + $0x48] sm:$0xff] %v5373
    %5392 = vst [vmem:[%s16 + $0x50] sm:$0xff] %v5375
    %5393 = vst [vmem:[%s16 + $0x58] sm:$0xff] %v5377
    %5394 = vst [vmem:[%s16 + $0x60] sm:$0xff] %v5379
    %5395 = vst [vmem:[%s16 + $0x68] sm:$0xff] %v5381
    // Predicated region
    $region86: #{vae_forward.1} parent=1 // pred_check
      _
    $region87: #{vae_forward.1} parent=1 // pred_check_branch
      %5397 = sbr.rel (0) target = $region89
    $region88: #{vae_forward.1} parent=1 // pred_region
      _
    $region89: #{vae_forward.1} parent=1 // pred_fallthru
      _
    // Predicated region
    $region90: #{vae_forward.1} parent=1 // pred_check
      _
    $region91: #{vae_forward.1} parent=1 // pred_check_branch
      %5399 = sbr.rel (0) target = $region93
    $region92: #{vae_forward.1} parent=1 // pred_region
      _
    $region93: #{vae_forward.1} parent=1 // pred_fallthru
      _
    // Predicated region
    $region94: #{vae_forward.1} parent=1 // pred_check
      _
    $region95: #{vae_forward.1} parent=1 // pred_check_branch
      %5401 = sbr.rel (0) target = $region97
    $region96: #{vae_forward.1} parent=1 // pred_region
      _
    $region97: #{vae_forward.1} parent=1 // pred_fallthru
      _
    // Predicated region
    $region98: #{vae_forward.1} parent=1 // pred_check
      _
    $region99: #{vae_forward.1} parent=1 // pred_check_branch
      %5403 = sbr.rel (0) target = $region101
    $region100: #{vae_forward.1} parent=1 // pred_region
      _
    $region101: #{vae_forward.1} parent=1 // pred_fallthru
      _
    %5404 = vsyncpa [#allocation3], 1
    %5405 = vsyncpa [#allocation5], 1
    %5406 = vsyncpa [#allocation8], 1

</llo_original>
